<compile_context>
chip_gen: v7x
topology: tpu7x:2x2x1
jax: 0.10.0
libtpu: 0.0.40
codegen_flags: <defaults>
</compile_context>

<pallas_src>
import numpy as np
import jax
import jax.numpy as jnp
from jax import lax
from jax.experimental import pallas as pl
from jax.experimental.pallas import tpu as pltpu


# ----------------------------------------------------------------------------
# helpers
# ----------------------------------------------------------------------------
def _bilinear_matrix(n_in: int, n_out: int) -> np.ndarray:
    """align_corners=True bilinear interpolation matrix, shape (n_out, n_in)."""
    m = np.zeros((n_out, n_in), dtype=np.float32)
    if n_out == 1 or n_in == 1:
        m[:, 0] = 1.0
        return m
    scale = (n_in - 1) / (n_out - 1)
    for i in range(n_out):
        s = i * scale
        i0 = min(int(np.floor(s)), n_in - 1)
        i1 = min(i0 + 1, n_in - 1)
        f = s - i0
        m[i, i0] += 1.0 - f
        m[i, i1] += f
    return m


def _upsample_operator(h: int, w: int) -> np.ndarray:
    """(Hin*Win, Hout*Wout) operator U^T with U = kron(Mh, Mw), align_corners=True."""
    mh = _bilinear_matrix(h, 2 * h)          # (Hout, Hin)
    mw = _bilinear_matrix(w, 2 * w)          # (Wout, Win)
    return np.kron(mh, mw).T.astype(np.float32)


def _fold_weights(w_kkoc, scale):
    """(kh, kw, Cout, Cin) -> (Cout, kh*kw*Cin), tap-major, BN scale folded in."""
    kh, kw, cout, cin = w_kkoc.shape
    w = w_kkoc.astype(jnp.float32) * scale.astype(jnp.float32)[None, None, :, None]
    return jnp.transpose(w, (2, 0, 1, 3)).reshape(cout, kh * kw * cin)


# ----------------------------------------------------------------------------
# fused Pallas kernel (per batch element)
# ----------------------------------------------------------------------------
def _make_fused_kernel(cin: int, cout: int, hout: int, wout: int):
    p_out = hout * wout
    taps = [(oy, ox) for oy in (-1, 0, 1) for ox in (-1, 0, 1)]  # row-major 3x3

    def kernel(x_ref, u_ref, w1_ref, b1_ref, w2_ref, b2_ref, o_ref,
               patch1_ref, patch2_ref):
        # x_ref:  (1, Cin, Hin*Win)        lane-dense input
        # u_ref:  (Hin*Win, Hout*Wout)     upsample operator U^T
        # w*_ref: (Cout, 9*C)              conv weights, BN scale folded
        # b*_ref: (Cout, 1)                folded BN bias
        # o_ref:  (1, Cout, Hout*Wout)     lane-dense output
        # patch*_ref: VMEM scratch (9*C, Hout*Wout) patch matrices

        # --- boundary masks for the 3x3 halo on the flattened spatial axis ---
        pos = lax.broadcasted_iota(jnp.int32, (1, p_out), 1)
        col = pos % wout
        masks = []
        for oy, ox in taps:
            conds = []
            if oy == -1:
                conds.append(pos >= wout)                  # y - 1 >= 0
            if oy == 1:
                conds.append(pos < (hout - 1) * wout)      # y + 1 <  H
            if ox == -1:
                conds.append(col >= 1)                     # x - 1 >= 0
            if ox == 1:
                conds.append(col < (wout - 1))             # x + 1 <  W
            m = None
            for c in conds:
                m = c if m is None else (m & c)
            masks.append(m)                                # None == all-valid

        def conv3x3_bn_relu(act, w2d, bias, patch_ref, c):
            # act: (c, P); build (9*c, P) patch matrix with rolls + masks,
            # then one MXU matmul with K = 9*c.
            for t, (oy, ox) in enumerate(taps):
                shift = oy * wout + ox
                if shift == 0:
                    v = act
                else:
                    v = pltpu.roll(act, shift=(-shift) % p_out, axis=1)
                if masks[t] is not None:
                    v = jnp.where(masks[t], v, 0.0)
                patch_ref[t * c:(t + 1) * c, :] = v
            acc = jnp.dot(w2d, patch_ref[...],
                          preferred_element_type=jnp.float32)  # (Cout, P)
            return jnp.maximum(acc + bias, 0.0)

        # --- bilinear 2x upsample: one plain 2D matmul, C non-contracting ---
        x = x_ref[0].astype(jnp.float32)                       # (Cin, Hin*Win)
        up = jnp.dot(x, u_ref[...],
                     preferred_element_type=jnp.float32)       # (Cin, P)

        y1 = conv3x3_bn_relu(up, w1_ref[...], b1_ref[...], patch1_ref, cin)
        y2 = conv3x3_bn_relu(y1, w2_ref[...], b2_ref[...], patch2_ref, cout)

        o_ref[0] = y2.astype(o_ref.dtype)

    return kernel


# ----------------------------------------------------------------------------
# wrapper
# ----------------------------------------------------------------------------
def decoder_block_forward(x_nchw, params):
    n, cin, h, w = x_nchw.shape
    hout, wout = 2 * h, 2 * w
    p_in, p_out = h * w, hout * wout
    cout = params["w1"].shape[2]

    u_t = jnp.asarray(_upsample_operator(h, w))                 # (Pin, Pout)
    w1_2d = _fold_weights(params["w1"], params["scale1"])       # (Cout, 9*Cin)
    w2_2d = _fold_weights(params["w2"], params["scale2"])       # (Cout, 9*Cout)
    b1 = params["bias1"].reshape(cout, 1).astype(jnp.float32)
    b2 = params["bias2"].reshape(cout, 1).astype(jnp.float32)

    x_flat = x_nchw.reshape(n, cin, p_in)                       # free reshape

    kernel = _make_fused_kernel(cin, cout, hout, wout)
    # TODO(synk): for N=1 inference add a parallel Cout/H-tile grid axis so
    #             both v7x TensorCores stay busy.
    out_flat = pl.pallas_call(
        kernel,
        out_shape=jax.ShapeDtypeStruct((n, cout, p_out), x_nchw.dtype),
        grid=(n,),
        in_specs=[
            pl.BlockSpec((1, cin, p_in), lambda i: (i, 0, 0)),
            pl.BlockSpec((p_in, p_out), lambda i: (0, 0)),
            pl.BlockSpec((cout, 9 * cin), lambda i: (0, 0)),
            pl.BlockSpec((cout, 1), lambda i: (0, 0)),
            pl.BlockSpec((cout, 9 * cout), lambda i: (0, 0)),
            pl.BlockSpec((cout, 1), lambda i: (0, 0)),
        ],
        out_specs=pl.BlockSpec((1, cout, p_out), lambda i: (i, 0, 0)),
        scratch_shapes=[
            pltpu.VMEM((9 * cin, p_out), jnp.float32),
            pltpu.VMEM((9 * cout, p_out), jnp.float32),
        ],
        compiler_params=pltpu.CompilerParams(
            dimension_semantics=("parallel",),
            vmem_limit_bytes=32 * 1024 * 1024,
        ),
    )(x_flat, u_t, w1_2d, b1, w2_2d, b2)

    return out_flat.reshape(n, cout, hout, wout)


# ----------------------------------------------------------------------------
# parameter init (deterministic, synthetic)
# ----------------------------------------------------------------------------
def init_params(key, in_channels, out_channels, eps=1e-5):
    ks = jax.random.split(key, 10)

    def bn_fold(kg, kb, km, kv, c):
        gamma = jax.random.uniform(kg, (c,), jnp.float32, 0.5, 1.5)
        beta = 0.1 * jax.random.normal(kb, (c,), jnp.float32)
        r_mean = 0.1 * jax.random.normal(km, (c,), jnp.float32)
        r_var = jax.random.uniform(kv, (c,), jnp.float32, 0.5, 1.5)
        scale = gamma / jnp.sqrt(r_var + eps)
        bias = beta - r_mean * scale
        return scale, bias

    # weights stored as (kh, kw, Cout, Cin)
    w1 = 0.1 * jax.random.normal(ks[0], (3, 3, out_channels, in_channels), jnp.float32)
    w2 = 0.1 * jax.random.normal(ks[1], (3, 3, out_channels, out_channels), jnp.float32)
    s1, b1 = bn_fold(ks[2], ks[3], ks[4], ks[5], out_channels)
    s2, b2 = bn_fold(ks[6], ks[7], ks[8], ks[9], out_channels)
    return dict(w1=w1, scale1=s1, bias1=b1, w2=w2, scale2=s2, bias2=b2)


# ----------------------------------------------------------------------------
# pure-JAX reference (for correctness check)
# ----------------------------------------------------------------------------
def reference_forward(x_nchw, params):
    n, c, h, w = x_nchw.shape
    mh = jnp.asarray(_bilinear_matrix(h, 2 * h))
    mw = jnp.asarray(_bilinear_matrix(w, 2 * w))
    up = jnp.einsum("ih,jw,nchw->ncij", mh, mw, x_nchw,
                    precision=lax.Precision.HIGHEST)

    def block(x, w_kkoc, scale, bias):
        w_oihw = jnp.transpose(w_kkoc, (2, 3, 0, 1))   # (Cout, Cin, kh, kw)
        y = lax.conv_general_dilated(
            x, w_oihw, window_strides=(1, 1), padding="SAME",
            dimension_numbers=("NCHW", "OIHW", "NCHW"),
            precision=lax.Precision.HIGHEST)
        y = y * scale[None, :, None, None] + bias[None, :, None, None]
        return jnp.maximum(y, 0.0)

    y = block(up, params["w1"], params["scale1"], params["bias1"])
    y = block(y, params["w2"], params["scale2"], params["bias2"])
    return y


if __name__ == "__main__":
    key = jax.random.PRNGKey(0)
    kx, kp = jax.random.split(key)

    in_channels, out_channels = 4, 8
    x = jax.random.normal(kx, (2, in_channels, 16, 16), jnp.float32)
    params = init_params(kp, in_channels, out_channels)

    fwd = jax.jit(decoder_block_forward)
    out = jax.block_until_ready(fwd(x, params))
    ref = jax.block_until_ready(reference_forward(x, params))

    assert out.shape == (2, out_channels, 32, 32), out.shape
    np.testing.assert_allclose(np.asarray(out), np.asarray(ref),
                               rtol=1e-3, atol=1e-3)
    print("KERNEL_OK")
</pallas_src>

<mosaic_0001>
module attributes {stable_mosaic.version = 11 : i64} {
  func.func @kernel(%arg0: i32, %arg1: memref<1x4x256xf32, #tpu.memory_space<vmem>>, %arg2: memref<256x1024xf32, #tpu.memory_space<vmem>>, %arg3: memref<8x36xf32, #tpu.memory_space<vmem>>, %arg4: memref<8x1xf32, #tpu.memory_space<vmem>>, %arg5: memref<8x72xf32, #tpu.memory_space<vmem>>, %arg6: memref<8x1xf32, #tpu.memory_space<vmem>>, %arg7: memref<1x8x1024xf32, #tpu.memory_space<vmem>>, %arg8: memref<36x1024xf32, #tpu.memory_space<vmem>>, %arg9: memref<72x1024xf32, #tpu.memory_space<vmem>>) attributes {dimension_semantics = [#tpu.dimension_semantics<parallel>], iteration_bounds = array<i64: 2>, scalar_prefetch = 0 : i64, scratch_operands = 2 : i64, tpu.core_type = #tpu.core_type<tc>, window_params = [{transform_indices = @transform_0, window_bounds = array<i64: 1, 4, 256>}, {pipeline_mode = #tpu.pipeline_mode<synchronous>, transform_indices = @transform_1, window_bounds = array<i64: 256, 1024>}, {pipeline_mode = #tpu.pipeline_mode<synchronous>, transform_indices = @transform_2, window_bounds = array<i64: 8, 36>}, {pipeline_mode = #tpu.pipeline_mode<synchronous>, transform_indices = @transform_3, window_bounds = array<i64: 8, 1>}, {pipeline_mode = #tpu.pipeline_mode<synchronous>, transform_indices = @transform_4, window_bounds = array<i64: 8, 72>}, {pipeline_mode = #tpu.pipeline_mode<synchronous>, transform_indices = @transform_5, window_bounds = array<i64: 8, 1>}, {transform_indices = @transform_6, window_bounds = array<i64: 1, 8, 1024>}]} {
    %0 = tpu.iota {dimensions = array<i32: 1>} : vector<1x1024xi32>
    %c32_i32 = arith.constant 32 : i32
    %c0_i32 = arith.constant 0 : i32
    %1 = arith.cmpi eq, %c32_i32, %c0_i32 : i32
    %c1_i32 = arith.constant 1 : i32
    %2 = arith.select %1, %c1_i32, %c32_i32 : i32
    %3 = vector.broadcast %2 : i32 to vector<1x1024xi32>
    %4 = arith.remsi %0, %3 : vector<1x1024xi32>
    %c0_i32_0 = arith.constant 0 : i32
    %5 = vector.broadcast %c0_i32_0 : i32 to vector<1x1024xi32>
    %6 = arith.cmpi ne, %4, %5 : vector<1x1024xi32>
    %c0_i32_1 = arith.constant 0 : i32
    %7 = vector.broadcast %c0_i32_1 : i32 to vector<1x1024xi32>
    %8 = arith.cmpi slt, %4, %7 : vector<1x1024xi32>
    %c0_i32_2 = arith.constant 0 : i32
    %9 = arith.cmpi slt, %2, %c0_i32_2 : i32
    %10 = vector.broadcast %9 : i1 to vector<1x1024xi1>
    %11 = vector.broadcast %10 : vector<1x1024xi1> to vector<1x1024xi1>
    %12 = arith.xori %8, %11 : vector<1x1024xi1>
    %13 = arith.andi %12, %6 : vector<1x1024xi1>
    %14 = vector.broadcast %2 : i32 to vector<1x1024xi32>
    %15 = arith.addi %4, %14 : vector<1x1024xi32>
    %16 = arith.select %13, %15, %4 : vector<1x1024xi1>, vector<1x1024xi32>
    %c32_i32_3 = arith.constant 32 : i32
    %17 = vector.broadcast %c32_i32_3 : i32 to vector<1x1024xi32>
    %18 = arith.cmpi sge, %0, %17 : vector<1x1024xi32>
    %c1_i32_4 = arith.constant 1 : i32
    %19 = vector.broadcast %c1_i32_4 : i32 to vector<1x1024xi32>
    %20 = arith.cmpi sge, %16, %19 : vector<1x1024xi32>
    %21 = arith.andi %18, %20 : vector<1x1024xi1>
    %c32_i32_5 = arith.constant 32 : i32
    %22 = vector.broadcast %c32_i32_5 : i32 to vector<1x1024xi32>
    %23 = arith.cmpi sge, %0, %22 : vector<1x1024xi32>
    %c32_i32_6 = arith.constant 32 : i32
    %24 = vector.broadcast %c32_i32_6 : i32 to vector<1x1024xi32>
    %25 = arith.cmpi sge, %0, %24 : vector<1x1024xi32>
    %c31_i32 = arith.constant 31 : i32
    %26 = vector.broadcast %c31_i32 : i32 to vector<1x1024xi32>
    %27 = arith.cmpi slt, %16, %26 : vector<1x1024xi32>
    %28 = arith.andi %25, %27 : vector<1x1024xi1>
    %c1_i32_7 = arith.constant 1 : i32
    %29 = vector.broadcast %c1_i32_7 : i32 to vector<1x1024xi32>
    %30 = arith.cmpi sge, %16, %29 : vector<1x1024xi32>
    %c31_i32_8 = arith.constant 31 : i32
    %31 = vector.broadcast %c31_i32_8 : i32 to vector<1x1024xi32>
    %32 = arith.cmpi slt, %16, %31 : vector<1x1024xi32>
    %c992_i32 = arith.constant 992 : i32
    %33 = vector.broadcast %c992_i32 : i32 to vector<1x1024xi32>
    %34 = arith.cmpi slt, %0, %33 : vector<1x1024xi32>
    %c1_i32_9 = arith.constant 1 : i32
    %35 = vector.broadcast %c1_i32_9 : i32 to vector<1x1024xi32>
    %36 = arith.cmpi sge, %16, %35 : vector<1x1024xi32>
    %37 = arith.andi %34, %36 : vector<1x1024xi1>
    %c992_i32_10 = arith.constant 992 : i32
    %38 = vector.broadcast %c992_i32_10 : i32 to vector<1x1024xi32>
    %39 = arith.cmpi slt, %0, %38 : vector<1x1024xi32>
    %c992_i32_11 = arith.constant 992 : i32
    %40 = vector.broadcast %c992_i32_11 : i32 to vector<1x1024xi32>
    %41 = arith.cmpi slt, %0, %40 : vector<1x1024xi32>
    %c31_i32_12 = arith.constant 31 : i32
    %42 = vector.broadcast %c31_i32_12 : i32 to vector<1x1024xi32>
    %43 = arith.cmpi slt, %16, %42 : vector<1x1024xi32>
    %44 = arith.andi %41, %43 : vector<1x1024xi1>
    %c0 = arith.constant 0 : index
    %c0_13 = arith.constant 0 : index
    %c0_14 = arith.constant 0 : index
    %45 = vector.load %arg1[%c0, %c0_13, %c0_14] : memref<1x4x256xf32, #tpu.memory_space<vmem>>, vector<1x4x256xf32>
    %46 = vector.shape_cast %45 : vector<1x4x256xf32> to vector<4x256xf32>
    %c0_15 = arith.constant 0 : index
    %c0_16 = arith.constant 0 : index
    %47 = vector.load %arg2[%c0_15, %c0_16] : memref<256x1024xf32, #tpu.memory_space<vmem>>, vector<256x1024xf32>
    %cst = arith.constant dense<0.000000e+00> : vector<4x1024xf32>
    %48 = tpu.matmul %46, %47, %cst {dimension_numbers = #tpu.dot_dimension_numbers<[1], [0], [0], [1], [0, 0, 1, 1], [], []>} : vector<4x256xf32>, vector<256x1024xf32>, vector<4x1024xf32> -> vector<4x1024xf32>
    %c0_17 = arith.constant 0 : index
    %c0_18 = arith.constant 0 : index
    %49 = vector.load %arg3[%c0_17, %c0_18] : memref<8x36xf32, #tpu.memory_space<vmem>>, vector<8x36xf32>
    %c0_19 = arith.constant 0 : index
    %c0_20 = arith.constant 0 : index
    %50 = vector.load %arg4[%c0_19, %c0_20] : memref<8x1xf32, #tpu.memory_space<vmem>>, vector<8x1xf32>
    %c33_i32 = arith.constant 33 : i32
    %51 = tpu.dynamic_rotate %48 by %c33_i32 dim 1 : vector<4x1024xf32>, i32 -> vector<4x1024xf32>
    %cst_21 = arith.constant 0.000000e+00 : f32
    %52 = vector.shape_cast %21 : vector<1x1024xi1> to vector<1x1024xi1>
    %53 = vector.broadcast %52 : vector<1x1024xi1> to vector<4x1024xi1>
    %54 = vector.broadcast %cst_21 : f32 to vector<4x1024xf32>
    %55 = arith.select %53, %51, %54 : vector<4x1024xi1>, vector<4x1024xf32>
    %c0_22 = arith.constant 0 : index
    %c0_23 = arith.constant 0 : index
    %56 = vector.load %arg8[%c0_22, %c0_23] : memref<36x1024xf32, #tpu.memory_space<vmem>>, vector<4x1024xf32>
    tpu.vector_store %arg8[%c0_22, %c0_23], %55 {strides = array<i32>} : memref<36x1024xf32, #tpu.memory_space<vmem>>, vector<4x1024xf32>,
    %c32_i32_24 = arith.constant 32 : i32
    %57 = tpu.dynamic_rotate %48 by %c32_i32_24 dim 1 : vector<4x1024xf32>, i32 -> vector<4x1024xf32>
    %cst_25 = arith.constant 0.000000e+00 : f32
    %58 = vector.shape_cast %23 : vector<1x1024xi1> to vector<1x1024xi1>
    %59 = vector.broadcast %58 : vector<1x1024xi1> to vector<4x1024xi1>
    %60 = vector.broadcast %cst_25 : f32 to vector<4x1024xf32>
    %61 = arith.select %59, %57, %60 : vector<4x1024xi1>, vector<4x1024xf32>
    %c4 = arith.constant 4 : index
    %c0_26 = arith.constant 0 : index
    %62 = vector.load %arg8[%c4, %c0_26] : memref<36x1024xf32, #tpu.memory_space<vmem>>, vector<4x1024xf32>
    tpu.vector_store %arg8[%c4, %c0_26], %61 {strides = array<i32>} : memref<36x1024xf32, #tpu.memory_space<vmem>>, vector<4x1024xf32>,
    %c31_i32_27 = arith.constant 31 : i32
    %63 = tpu.dynamic_rotate %48 by %c31_i32_27 dim 1 : vector<4x1024xf32>, i32 -> vector<4x1024xf32>
    %cst_28 = arith.constant 0.000000e+00 : f32
    %64 = vector.shape_cast %28 : vector<1x1024xi1> to vector<1x1024xi1>
    %65 = vector.broadcast %64 : vector<1x1024xi1> to vector<4x1024xi1>
    %66 = vector.broadcast %cst_28 : f32 to vector<4x1024xf32>
    %67 = arith.select %65, %63, %66 : vector<4x1024xi1>, vector<4x1024xf32>
    %c8 = arith.constant 8 : index
    %c0_29 = arith.constant 0 : index
    %68 = vector.load %arg8[%c8, %c0_29] : memref<36x1024xf32, #tpu.memory_space<vmem>>, vector<4x1024xf32>
    tpu.vector_store %arg8[%c8, %c0_29], %67 {strides = array<i32>} : memref<36x1024xf32, #tpu.memory_space<vmem>>, vector<4x1024xf32>,
    %c1_i32_30 = arith.constant 1 : i32
    %69 = tpu.dynamic_rotate %48 by %c1_i32_30 dim 1 : vector<4x1024xf32>, i32 -> vector<4x1024xf32>
    %cst_31 = arith.constant 0.000000e+00 : f32
    %70 = vector.shape_cast %30 : vector<1x1024xi1> to vector<1x1024xi1>
    %71 = vector.broadcast %70 : vector<1x1024xi1> to vector<4x1024xi1>
    %72 = vector.broadcast %cst_31 : f32 to vector<4x1024xf32>
    %73 = arith.select %71, %69, %72 : vector<4x1024xi1>, vector<4x1024xf32>
    %c12 = arith.constant 12 : index
    %c0_32 = arith.constant 0 : index
    %74 = vector.load %arg8[%c12, %c0_32] : memref<36x1024xf32, #tpu.memory_space<vmem>>, vector<4x1024xf32>
    tpu.vector_store %arg8[%c12, %c0_32], %73 {strides = array<i32>} : memref<36x1024xf32, #tpu.memory_space<vmem>>, vector<4x1024xf32>,
    %c16 = arith.constant 16 : index
    %c0_33 = arith.constant 0 : index
    %75 = vector.load %arg8[%c16, %c0_33] : memref<36x1024xf32, #tpu.memory_space<vmem>>, vector<4x1024xf32>
    tpu.vector_store %arg8[%c16, %c0_33], %48 {strides = array<i32>} : memref<36x1024xf32, #tpu.memory_space<vmem>>, vector<4x1024xf32>,
    %c1023_i32 = arith.constant 1023 : i32
    %76 = tpu.dynamic_rotate %48 by %c1023_i32 dim 1 : vector<4x1024xf32>, i32 -> vector<4x1024xf32>
    %cst_34 = arith.constant 0.000000e+00 : f32
    %77 = vector.shape_cast %32 : vector<1x1024xi1> to vector<1x1024xi1>
    %78 = vector.broadcast %77 : vector<1x1024xi1> to vector<4x1024xi1>
    %79 = vector.broadcast %cst_34 : f32 to vector<4x1024xf32>
    %80 = arith.select %78, %76, %79 : vector<4x1024xi1>, vector<4x1024xf32>
    %c20 = arith.constant 20 : index
    %c0_35 = arith.constant 0 : index
    %81 = vector.load %arg8[%c20, %c0_35] : memref<36x1024xf32, #tpu.memory_space<vmem>>, vector<4x1024xf32>
    tpu.vector_store %arg8[%c20, %c0_35], %80 {strides = array<i32>} : memref<36x1024xf32, #tpu.memory_space<vmem>>, vector<4x1024xf32>,
    %c993_i32 = arith.constant 993 : i32
    %82 = tpu.dynamic_rotate %48 by %c993_i32 dim 1 : vector<4x1024xf32>, i32 -> vector<4x1024xf32>
    %cst_36 = arith.constant 0.000000e+00 : f32
    %83 = vector.shape_cast %37 : vector<1x1024xi1> to vector<1x1024xi1>
    %84 = vector.broadcast %83 : vector<1x1024xi1> to vector<4x1024xi1>
    %85 = vector.broadcast %cst_36 : f32 to vector<4x1024xf32>
    %86 = arith.select %84, %82, %85 : vector<4x1024xi1>, vector<4x1024xf32>
    %c24 = arith.constant 24 : index
    %c0_37 = arith.constant 0 : index
    %87 = vector.load %arg8[%c24, %c0_37] : memref<36x1024xf32, #tpu.memory_space<vmem>>, vector<4x1024xf32>
    tpu.vector_store %arg8[%c24, %c0_37], %86 {strides = array<i32>} : memref<36x1024xf32, #tpu.memory_space<vmem>>, vector<4x1024xf32>,
    %c992_i32_38 = arith.constant 992 : i32
    %88 = tpu.dynamic_rotate %48 by %c992_i32_38 dim 1 : vector<4x1024xf32>, i32 -> vector<4x1024xf32>
    %cst_39 = arith.constant 0.000000e+00 : f32
    %89 = vector.shape_cast %39 : vector<1x1024xi1> to vector<1x1024xi1>
    %90 = vector.broadcast %89 : vector<1x1024xi1> to vector<4x1024xi1>
    %91 = vector.broadcast %cst_39 : f32 to vector<4x1024xf32>
    %92 = arith.select %90, %88, %91 : vector<4x1024xi1>, vector<4x1024xf32>
    %c28 = arith.constant 28 : index
    %c0_40 = arith.constant 0 : index
    %93 = vector.load %arg8[%c28, %c0_40] : memref<36x1024xf32, #tpu.memory_space<vmem>>, vector<4x1024xf32>
    tpu.vector_store %arg8[%c28, %c0_40], %92 {strides = array<i32>} : memref<36x1024xf32, #tpu.memory_space<vmem>>, vector<4x1024xf32>,
    %c991_i32 = arith.constant 991 : i32
    %94 = tpu.dynamic_rotate %48 by %c991_i32 dim 1 : vector<4x1024xf32>, i32 -> vector<4x1024xf32>
    %cst_41 = arith.constant 0.000000e+00 : f32
    %95 = vector.shape_cast %44 : vector<1x1024xi1> to vector<1x1024xi1>
    %96 = vector.broadcast %95 : vector<1x1024xi1> to vector<4x1024xi1>
    %97 = vector.broadcast %cst_41 : f32 to vector<4x1024xf32>
    %98 = arith.select %96, %94, %97 : vector<4x1024xi1>, vector<4x1024xf32>
    %c32 = arith.constant 32 : index
    %c0_42 = arith.constant 0 : index
    %99 = vector.load %arg8[%c32, %c0_42] : memref<36x1024xf32, #tpu.memory_space<vmem>>, vector<4x1024xf32>
    tpu.vector_store %arg8[%c32, %c0_42], %98 {strides = array<i32>} : memref<36x1024xf32, #tpu.memory_space<vmem>>, vector<4x1024xf32>,
    %c0_43 = arith.constant 0 : index
    %c0_44 = arith.constant 0 : index
    %100 = vector.load %arg8[%c0_43, %c0_44] : memref<36x1024xf32, #tpu.memory_space<vmem>>, vector<36x1024xf32>
    %cst_45 = arith.constant dense<0.000000e+00> : vector<8x1024xf32>
    %101 = tpu.matmul %49, %100, %cst_45 {dimension_numbers = #tpu.dot_dimension_numbers<[1], [0], [0], [1], [0, 0, 1, 1], [], []>} : vector<8x36xf32>, vector<36x1024xf32>, vector<8x1024xf32> -> vector<8x1024xf32>
    %102 = vector.broadcast %50 : vector<8x1xf32> to vector<8x1024xf32>
    %103 = arith.addf %101, %102 : vector<8x1024xf32>
    %cst_46 = arith.constant 0.000000e+00 : f32
    %104 = vector.broadcast %cst_46 : f32 to vector<8x1024xf32>
    %105 = arith.maximumf %103, %104 : vector<8x1024xf32>
    %c0_47 = arith.constant 0 : index
    %c0_48 = arith.constant 0 : index
    %106 = vector.load %arg5[%c0_47, %c0_48] : memref<8x72xf32, #tpu.memory_space<vmem>>, vector<8x72xf32>
    %c0_49 = arith.constant 0 : index
    %c0_50 = arith.constant 0 : index
    %107 = vector.load %arg6[%c0_49, %c0_50] : memref<8x1xf32, #tpu.memory_space<vmem>>, vector<8x1xf32>
    %c33_i32_51 = arith.constant 33 : i32
    %108 = tpu.dynamic_rotate %105 by %c33_i32_51 dim 1 : vector<8x1024xf32>, i32 -> vector<8x1024xf32>
    %cst_52 = arith.constant 0.000000e+00 : f32
    %109 = vector.shape_cast %21 : vector<1x1024xi1> to vector<1x1024xi1>
    %110 = vector.broadcast %109 : vector<1x1024xi1> to vector<8x1024xi1>
    %111 = vector.broadcast %cst_52 : f32 to vector<8x1024xf32>
    %112 = arith.select %110, %108, %111 : vector<8x1024xi1>, vector<8x1024xf32>
    %c0_53 = arith.constant 0 : index
    %c0_54 = arith.constant 0 : index
    %113 = vector.load %arg9[%c0_53, %c0_54] : memref<72x1024xf32, #tpu.memory_space<vmem>>, vector<8x1024xf32>
    tpu.vector_store %arg9[%c0_53, %c0_54], %112 {strides = array<i32>} : memref<72x1024xf32, #tpu.memory_space<vmem>>, vector<8x1024xf32>,
    %c32_i32_55 = arith.constant 32 : i32
    %114 = tpu.dynamic_rotate %105 by %c32_i32_55 dim 1 : vector<8x1024xf32>, i32 -> vector<8x1024xf32>
    %cst_56 = arith.constant 0.000000e+00 : f32
    %115 = vector.shape_cast %23 : vector<1x1024xi1> to vector<1x1024xi1>
    %116 = vector.broadcast %115 : vector<1x1024xi1> to vector<8x1024xi1>
    %117 = vector.broadcast %cst_56 : f32 to vector<8x1024xf32>
    %118 = arith.select %116, %114, %117 : vector<8x1024xi1>, vector<8x1024xf32>
    %c8_57 = arith.constant 8 : index
    %c0_58 = arith.constant 0 : index
    %119 = vector.load %arg9[%c8_57, %c0_58] : memref<72x1024xf32, #tpu.memory_space<vmem>>, vector<8x1024xf32>
    tpu.vector_store %arg9[%c8_57, %c0_58], %118 {strides = array<i32>} : memref<72x1024xf32, #tpu.memory_space<vmem>>, vector<8x1024xf32>,
    %c31_i32_59 = arith.constant 31 : i32
    %120 = tpu.dynamic_rotate %105 by %c31_i32_59 dim 1 : vector<8x1024xf32>, i32 -> vector<8x1024xf32>
    %cst_60 = arith.constant 0.000000e+00 : f32
    %121 = vector.shape_cast %28 : vector<1x1024xi1> to vector<1x1024xi1>
    %122 = vector.broadcast %121 : vector<1x1024xi1> to vector<8x1024xi1>
    %123 = vector.broadcast %cst_60 : f32 to vector<8x1024xf32>
    %124 = arith.select %122, %120, %123 : vector<8x1024xi1>, vector<8x1024xf32>
    %c16_61 = arith.constant 16 : index
    %c0_62 = arith.constant 0 : index
    %125 = vector.load %arg9[%c16_61, %c0_62] : memref<72x1024xf32, #tpu.memory_space<vmem>>, vector<8x1024xf32>
    tpu.vector_store %arg9[%c16_61, %c0_62], %124 {strides = array<i32>} : memref<72x1024xf32, #tpu.memory_space<vmem>>, vector<8x1024xf32>,
    %c1_i32_63 = arith.constant 1 : i32
    %126 = tpu.dynamic_rotate %105 by %c1_i32_63 dim 1 : vector<8x1024xf32>, i32 -> vector<8x1024xf32>
    %cst_64 = arith.constant 0.000000e+00 : f32
    %127 = vector.shape_cast %30 : vector<1x1024xi1> to vector<1x1024xi1>
    %128 = vector.broadcast %127 : vector<1x1024xi1> to vector<8x1024xi1>
    %129 = vector.broadcast %cst_64 : f32 to vector<8x1024xf32>
    %130 = arith.select %128, %126, %129 : vector<8x1024xi1>, vector<8x1024xf32>
    %c24_65 = arith.constant 24 : index
    %c0_66 = arith.constant 0 : index
    %131 = vector.load %arg9[%c24_65, %c0_66] : memref<72x1024xf32, #tpu.memory_space<vmem>>, vector<8x1024xf32>
    tpu.vector_store %arg9[%c24_65, %c0_66], %130 {strides = array<i32>} : memref<72x1024xf32, #tpu.memory_space<vmem>>, vector<8x1024xf32>,
    %c32_67 = arith.constant 32 : index
    %c0_68 = arith.constant 0 : index
    %132 = vector.load %arg9[%c32_67, %c0_68] : memref<72x1024xf32, #tpu.memory_space<vmem>>, vector<8x1024xf32>
    tpu.vector_store %arg9[%c32_67, %c0_68], %105 {strides = array<i32>} : memref<72x1024xf32, #tpu.memory_space<vmem>>, vector<8x1024xf32>,
    %c1023_i32_69 = arith.constant 1023 : i32
    %133 = tpu.dynamic_rotate %105 by %c1023_i32_69 dim 1 : vector<8x1024xf32>, i32 -> vector<8x1024xf32>
    %cst_70 = arith.constant 0.000000e+00 : f32
    %134 = vector.shape_cast %32 : vector<1x1024xi1> to vector<1x1024xi1>
    %135 = vector.broadcast %134 : vector<1x1024xi1> to vector<8x1024xi1>
    %136 = vector.broadcast %cst_70 : f32 to vector<8x1024xf32>
    %137 = arith.select %135, %133, %136 : vector<8x1024xi1>, vector<8x1024xf32>
    %c40 = arith.constant 40 : index
    %c0_71 = arith.constant 0 : index
    %138 = vector.load %arg9[%c40, %c0_71] : memref<72x1024xf32, #tpu.memory_space<vmem>>, vector<8x1024xf32>
    tpu.vector_store %arg9[%c40, %c0_71], %137 {strides = array<i32>} : memref<72x1024xf32, #tpu.memory_space<vmem>>, vector<8x1024xf32>,
    %c993_i32_72 = arith.constant 993 : i32
    %139 = tpu.dynamic_rotate %105 by %c993_i32_72 dim 1 : vector<8x1024xf32>, i32 -> vector<8x1024xf32>
    %cst_73 = arith.constant 0.000000e+00 : f32
    %140 = vector.shape_cast %37 : vector<1x1024xi1> to vector<1x1024xi1>
    %141 = vector.broadcast %140 : vector<1x1024xi1> to vector<8x1024xi1>
    %142 = vector.broadcast %cst_73 : f32 to vector<8x1024xf32>
    %143 = arith.select %141, %139, %142 : vector<8x1024xi1>, vector<8x1024xf32>
    %c48 = arith.constant 48 : index
    %c0_74 = arith.constant 0 : index
    %144 = vector.load %arg9[%c48, %c0_74] : memref<72x1024xf32, #tpu.memory_space<vmem>>, vector<8x1024xf32>
    tpu.vector_store %arg9[%c48, %c0_74], %143 {strides = array<i32>} : memref<72x1024xf32, #tpu.memory_space<vmem>>, vector<8x1024xf32>,
    %c992_i32_75 = arith.constant 992 : i32
    %145 = tpu.dynamic_rotate %105 by %c992_i32_75 dim 1 : vector<8x1024xf32>, i32 -> vector<8x1024xf32>
    %cst_76 = arith.constant 0.000000e+00 : f32
    %146 = vector.shape_cast %39 : vector<1x1024xi1> to vector<1x1024xi1>
    %147 = vector.broadcast %146 : vector<1x1024xi1> to vector<8x1024xi1>
    %148 = vector.broadcast %cst_76 : f32 to vector<8x1024xf32>
    %149 = arith.select %147, %145, %148 : vector<8x1024xi1>, vector<8x1024xf32>
    %c56 = arith.constant 56 : index
    %c0_77 = arith.constant 0 : index
    %150 = vector.load %arg9[%c56, %c0_77] : memref<72x1024xf32, #tpu.memory_space<vmem>>, vector<8x1024xf32>
    tpu.vector_store %arg9[%c56, %c0_77], %149 {strides = array<i32>} : memref<72x1024xf32, #tpu.memory_space<vmem>>, vector<8x1024xf32>,
    %c991_i32_78 = arith.constant 991 : i32
    %151 = tpu.dynamic_rotate %105 by %c991_i32_78 dim 1 : vector<8x1024xf32>, i32 -> vector<8x1024xf32>
    %cst_79 = arith.constant 0.000000e+00 : f32
    %152 = vector.shape_cast %44 : vector<1x1024xi1> to vector<1x1024xi1>
    %153 = vector.broadcast %152 : vector<1x1024xi1> to vector<8x1024xi1>
    %154 = vector.broadcast %cst_79 : f32 to vector<8x1024xf32>
    %155 = arith.select %153, %151, %154 : vector<8x1024xi1>, vector<8x1024xf32>
    %c64 = arith.constant 64 : index
    %c0_80 = arith.constant 0 : index
    %156 = vector.load %arg9[%c64, %c0_80] : memref<72x1024xf32, #tpu.memory_space<vmem>>, vector<8x1024xf32>
    tpu.vector_store %arg9[%c64, %c0_80], %155 {strides = array<i32>} : memref<72x1024xf32, #tpu.memory_space<vmem>>, vector<8x1024xf32>,
    %c0_81 = arith.constant 0 : index
    %c0_82 = arith.constant 0 : index
    %157 = vector.load %arg9[%c0_81, %c0_82] : memref<72x1024xf32, #tpu.memory_space<vmem>>, vector<72x1024xf32>
    %cst_83 = arith.constant dense<0.000000e+00> : vector<8x1024xf32>
    %158 = tpu.matmul %106, %157, %cst_83 {dimension_numbers = #tpu.dot_dimension_numbers<[1], [0], [0], [1], [0, 0, 1, 1], [], []>} : vector<8x72xf32>, vector<72x1024xf32>, vector<8x1024xf32> -> vector<8x1024xf32>
    %159 = vector.broadcast %107 : vector<8x1xf32> to vector<8x1024xf32>
    %160 = arith.addf %158, %159 : vector<8x1024xf32>
    %cst_84 = arith.constant 0.000000e+00 : f32
    %161 = vector.broadcast %cst_84 : f32 to vector<8x1024xf32>
    %162 = arith.maximumf %160, %161 : vector<8x1024xf32>
    %c0_85 = arith.constant 0 : index
    %c0_86 = arith.constant 0 : index
    %c0_87 = arith.constant 0 : index
    %163 = vector.load %arg7[%c0_85, %c0_86, %c0_87] : memref<1x8x1024xf32, #tpu.memory_space<vmem>>, vector<1x8x1024xf32>
    %164 = vector.shape_cast %163 : vector<1x8x1024xf32> to vector<8x1024xf32>
    %165 = vector.shape_cast %162 : vector<8x1024xf32> to vector<1x8x1024xf32>
    tpu.vector_store %arg7[%c0_85, %c0_86, %c0_87], %165 {strides = array<i32>} : memref<1x8x1024xf32, #tpu.memory_space<vmem>>, vector<1x8x1024xf32>,
    return
  }
  func.func @transform_0(%arg0: i32) -> (i32, i32, i32) {
    %c0_i32 = arith.constant 0 : i32
    %c0_i32_0 = arith.constant 0 : i32
    %c0_i32_1 = arith.constant 0 : i32
    return %arg0, %c0_i32, %c0_i32_0 : i32, i32, i32
  }
  func.func @transform_1(%arg0: i32) -> (i32, i32) {
    %c0_i32 = arith.constant 0 : i32
    %c0_i32_0 = arith.constant 0 : i32
    %c0_i32_1 = arith.constant 0 : i32
    return %c0_i32, %c0_i32_0 : i32, i32
  }
  func.func @transform_2(%arg0: i32) -> (i32, i32) {
    %c0_i32 = arith.constant 0 : i32
    %c0_i32_0 = arith.constant 0 : i32
    %c0_i32_1 = arith.constant 0 : i32
    return %c0_i32, %c0_i32_0 : i32, i32
  }
  func.func @transform_3(%arg0: i32) -> (i32, i32) {
    %c0_i32 = arith.constant 0 : i32
    %c0_i32_0 = arith.constant 0 : i32
    %c0_i32_1 = arith.constant 0 : i32
    return %c0_i32, %c0_i32_0 : i32, i32
  }
  func.func @transform_4(%arg0: i32) -> (i32, i32) {
    %c0_i32 = arith.constant 0 : i32
    %c0_i32_0 = arith.constant 0 : i32
    %c0_i32_1 = arith.constant 0 : i32
    return %c0_i32, %c0_i32_0 : i32, i32
  }
  func.func @transform_5(%arg0: i32) -> (i32, i32) {
    %c0_i32 = arith.constant 0 : i32
    %c0_i32_0 = arith.constant 0 : i32
    %c0_i32_1 = arith.constant 0 : i32
    return %c0_i32, %c0_i32_0 : i32, i32
  }
  func.func @transform_6(%arg0: i32) -> (i32, i32, i32) {
    %c0_i32 = arith.constant 0 : i32
    %c0_i32_0 = arith.constant 0 : i32
    %c0_i32_1 = arith.constant 0 : i32
    return %arg0, %c0_i32, %c0_i32_0 : i32, i32, i32
  }
}

</mosaic_0001>

<llo_original>
// kernel: decoder_block_forward.1
$region0: #{decoder_block_forward.1}
  #allocation0 [shape = 'u32[]', space=smem, size = 0x4, offset = 0x4, fixed_abs, tag = 'smem constant byte address 0x4 - core index']
  #allocation1 [shape = 'u32[144,128]{1,0:T(1,128)}', space=vmem, size = 0x12000, scoped, tag = 'internal scratch']
  #allocation2 [shape = 'f32[36,1024]{1,0:T(8,128)}', space=vmem, size = 0x28000, scoped, tag = 'scratch operand']
  #allocation3 [shape = 'f32[72,1024]{1,0:T(8,128)}', space=vmem, size = 0x48000, scoped, tag = 'scratch operand']
  %s0 = inlined_call_operand.vmem [shape: f32[2,4,256], index: 0, kind: input, shape index: {}]
  %s1 = inlined_call_operand.hbm [shape: f32[256,1024], index: 1, kind: input, shape index: {}]
  %s2 = inlined_call_operand.vmem [shape: f32[8,36], index: 2, kind: input, shape index: {}]
  %s3 = inlined_call_operand.vmem [shape: f32[8,1], index: 3, kind: input, shape index: {}]
  %s4 = inlined_call_operand.vmem [shape: f32[8,72], index: 4, kind: input, shape index: {}]
  %s5 = inlined_call_operand.vmem [shape: f32[8,1], index: 5, kind: input, shape index: {}]
  %s6 = inlined_call_operand.vmem [shape: f32[2,8,1024], index: 6, kind: output, shape index: {}]
  %s7 = sld [smem:[#allocation0]]
  $region61: #{decoder_block_forward.1} parent=0
    _
  %s9 = ssub.s32 1, %s7
  %s10 = scalar_select 0, %s9, %s7
  $region1: #{decoder_block_forward.1} parent=0
    #allocation4 [shape = 'u8[1048576]{0}', space=vmem, size = 0x100000, scoped, tag = 'input window, operand 1, single buffered']
    #allocation5 [shape = 's32[2]{0}', space=sflag, size = 0x8, scoped, tag = 'scoped memory for decoder_block_forward.1']
    %11 = vsyncpa [#allocation5], 0
    loop: start=0, step=1, limit=4
    $region2: #{decoder_block_forward.1} parent=1 // loop_pre_header
      _
    $region3: #{decoder_block_forward.1} parent=1 // loop_header
      %s13 = sphi 0, %s17
      %p14 = scmp.ge.s32.totalorder %s13, 4
      %s23 = sphi 0, %s25
      %s26 = sphi 0, %s23
      %s27 = sphi 0, %s26
      %s43 = sphi 0, %s27
      %s47 = sphi 0, %s47
      %s49 = sphi 0, %s47
      %s50 = sphi 0, %s49
      %s64 = sphi 0, %s50
      %s68 = sphi 0, %s68
      %s70 = sphi 0, %s68
      %s71 = sphi 0, %s70
      %s85 = sphi 0, %s71
      %s89 = sphi 0, %s89
      %s91 = sphi 0, %s89
      %s92 = sphi 0, %s91
      %s106 = sphi 0, %s92
      %s110 = sphi 0, %s110
      %s112 = sphi 0, %s110
      %s113 = sphi 0, %s112
      %s127 = sphi 0, %s113
      %s131 = sphi 0, %s131
      %s133 = sphi 0, %s131
      %s134 = sphi 0, %s133
      %s148 = sphi 0, %s134
      %s154 = sphi 0, %s156
      %s157 = sphi 0, %s154
      %s158 = sphi 0, %s157
      %s174 = sphi 0, %s158
    $region4: #{decoder_block_forward.1} parent=1 // loop_header_branch
      %16 = sbr.rel (%p14) target = $region8
    $region5: #{decoder_block_forward.1} parent=1 // loop_body
      %s18 = ssub.s32 %s13, 1
      %s19 = ssub.s32 %s13, 2
      %s20 = sadd.s32 %s13, 1
      %s21 = ssub.s32 %s13, %s20
      %p22 = scmp.eq.s32.totalorder %s21, 0
      %s24 = sadd.s32 %s23, 1
      %s25 = scalar_select %p22, %s23, %s24
      %p28 = pneg %p22
      %p29 = scmp.eq.s32.totalorder %s13, 1
      %p30 = por %p28, %p29
      %p31 = scmp.ne.s32.totalorder %s23, %s26
      %p32 = scmp.eq.s32.totalorder %s13, 0
      %p33 = por %p31, %p32
      %p34 = scmp.ne.s32.totalorder %s23, %s26
      %p35 = scmp.eq.s32.totalorder %s18, 1
      %p36 = por %p34, %p35
      %p37 = scmp.ne.s32.totalorder %s26, %s27
      %p38 = scmp.eq.s32.totalorder %s18, 0
      %p39 = por %p37, %p38
      %p40 = scmp.ne.s32.totalorder %s26, %s27
      %p41 = scmp.eq.s32.totalorder %s19, 1
      %p42 = por %p40, %p41
      %p44 = scmp.ne.s32.totalorder %s27, %s43
      %p45 = scmp.eq.s32.totalorder %s19, 0
      %p46 = por %p44, %p45
      %s48 = sadd.s32 %s47, 1
      %p51 = scmp.eq.s32.totalorder %s13, 1
      %p52 = scmp.ne.s32.totalorder %s47, %s49
      %p53 = scmp.eq.s32.totalorder %s13, 0
      %p54 = por %p52, %p53
      %p55 = scmp.ne.s32.totalorder %s47, %s49
      %p56 = scmp.eq.s32.totalorder %s18, 1
      %p57 = por %p55, %p56
      %p58 = scmp.ne.s32.totalorder %s49, %s50
      %p59 = scmp.eq.s32.totalorder %s18, 0
      %p60 = por %p58, %p59
      %p61 = scmp.ne.s32.totalorder %s49, %s50
      %p62 = scmp.eq.s32.totalorder %s19, 1
      %p63 = por %p61, %p62
      %p65 = scmp.ne.s32.totalorder %s50, %s64
      %p66 = scmp.eq.s32.totalorder %s19, 0
      %p67 = por %p65, %p66
      %s69 = sadd.s32 %s68, 1
      %p72 = scmp.eq.s32.totalorder %s13, 1
      %p73 = scmp.ne.s32.totalorder %s68, %s70
      %p74 = scmp.eq.s32.totalorder %s13, 0
      %p75 = por %p73, %p74
      %p76 = scmp.ne.s32.totalorder %s68, %s70
      %p77 = scmp.eq.s32.totalorder %s18, 1
      %p78 = por %p76, %p77
      %p79 = scmp.ne.s32.totalorder %s70, %s71
      %p80 = scmp.eq.s32.totalorder %s18, 0
      %p81 = por %p79, %p80
      %p82 = scmp.ne.s32.totalorder %s70, %s71
      %p83 = scmp.eq.s32.totalorder %s19, 1
      %p84 = por %p82, %p83
      %p86 = scmp.ne.s32.totalorder %s71, %s85
      %p87 = scmp.eq.s32.totalorder %s19, 0
      %p88 = por %p86, %p87
      %s90 = sadd.s32 %s89, 1
      %p93 = scmp.eq.s32.totalorder %s13, 1
      %p94 = scmp.ne.s32.totalorder %s89, %s91
      %p95 = scmp.eq.s32.totalorder %s13, 0
      %p96 = por %p94, %p95
      %p97 = scmp.ne.s32.totalorder %s89, %s91
      %p98 = scmp.eq.s32.totalorder %s18, 1
      %p99 = por %p97, %p98
      %p100 = scmp.ne.s32.totalorder %s91, %s92
      %p101 = scmp.eq.s32.totalorder %s18, 0
      %p102 = por %p100, %p101
      %p103 = scmp.ne.s32.totalorder %s91, %s92
      %p104 = scmp.eq.s32.totalorder %s19, 1
      %p105 = por %p103, %p104
      %p107 = scmp.ne.s32.totalorder %s92, %s106
      %p108 = scmp.eq.s32.totalorder %s19, 0
      %p109 = por %p107, %p108
      %s111 = sadd.s32 %s110, 1
      %p114 = scmp.eq.s32.totalorder %s13, 1
      %p115 = scmp.ne.s32.totalorder %s110, %s112
      %p116 = scmp.eq.s32.totalorder %s13, 0
      %p117 = por %p115, %p116
      %p118 = scmp.ne.s32.totalorder %s110, %s112
      %p119 = scmp.eq.s32.totalorder %s18, 1
      %p120 = por %p118, %p119
      %p121 = scmp.ne.s32.totalorder %s112, %s113
      %p122 = scmp.eq.s32.totalorder %s18, 0
      %p123 = por %p121, %p122
      %p124 = scmp.ne.s32.totalorder %s112, %s113
      %p125 = scmp.eq.s32.totalorder %s19, 1
      %p126 = por %p124, %p125
      %p128 = scmp.ne.s32.totalorder %s113, %s127
      %p129 = scmp.eq.s32.totalorder %s19, 0
      %p130 = por %p128, %p129
      %s132 = sadd.s32 %s131, 1
      %p135 = scmp.eq.s32.totalorder %s13, 1
      %p136 = scmp.ne.s32.totalorder %s131, %s133
      %p137 = scmp.eq.s32.totalorder %s13, 0
      %p138 = por %p136, %p137
      %p139 = scmp.ne.s32.totalorder %s131, %s133
      %p140 = scmp.eq.s32.totalorder %s18, 1
      %p141 = por %p139, %p140
      %p142 = scmp.ne.s32.totalorder %s133, %s134
      %p143 = scmp.eq.s32.totalorder %s18, 0
      %p144 = por %p142, %p143
      %p145 = scmp.ne.s32.totalorder %s133, %s134
      %p146 = scmp.eq.s32.totalorder %s19, 1
      %p147 = por %p145, %p146
      %p149 = scmp.ne.s32.totalorder %s134, %s148
      %p150 = scmp.eq.s32.totalorder %s19, 0
      %p151 = por %p149, %p150
      %s152 = ssub.s32 %s13, %s20
      %p153 = scmp.eq.s32.totalorder %s152, 0
      %s155 = sadd.s32 %s154, 1
      %s156 = scalar_select %p153, %s154, %s155
      %p159 = pneg %p153
      %p160 = scmp.eq.s32.totalorder %s13, 1
      %p161 = por %p159, %p160
      %p162 = scmp.ne.s32.totalorder %s154, %s157
      %p163 = scmp.eq.s32.totalorder %s13, 0
      %p164 = por %p162, %p163
      %p165 = scmp.ne.s32.totalorder %s154, %s157
      %p166 = scmp.eq.s32.totalorder %s18, 1
      %p167 = por %p165, %p166
      %p168 = scmp.ne.s32.totalorder %s157, %s158
      %p169 = scmp.eq.s32.totalorder %s18, 0
      %p170 = por %p168, %p169
      %p171 = scmp.ne.s32.totalorder %s157, %s158
      %p172 = scmp.eq.s32.totalorder %s19, 1
      %p173 = por %p171, %p172
      %p175 = scmp.ne.s32.totalorder %s158, %s174
      %p176 = scmp.eq.s32.totalorder %s19, 0
      %p177 = por %p175, %p176
      %p178 = scmp.le.s32.totalorder 1, %s13
      %p179 = scmp.lt.s32.totalorder %s13, 3
      %p180 = pnand %p178, %p179
      %p181 = pneg %p180
      // Predicated region
      $region9: #{decoder_block_forward.1} parent=5 // pred_check
        _
      $region10: #{decoder_block_forward.1} parent=5 // pred_check_branch
        %183 = sbr.rel (%p180) target = $region12
      $region11: #{decoder_block_forward.1} parent=5 // pred_region
        %s184 = ssub.s32 %s13, 1
        // Predicated region
        $region13: #{decoder_block_forward.1} parent=11 // pred_check
          %p185 = pneg %p60
        $region14: #{decoder_block_forward.1} parent=11 // pred_check_branch
          %187 = sbr.rel (%p185) target = $region16
        $region15: #{decoder_block_forward.1} parent=11 // pred_region
          %s189 = ssub.s32 32768, 32768
          %190 = vsyncadd [#allocation5], %s189
          %s191 = sshll.u32 [#allocation4], 4
          %s192 = int_to_ptr.vmem [resolvable:$true] %s191
          %197 = dma.hbm_to_vmem [thread:$0]  %s1, 32768, %s192, [#allocation5], 1024, 1024, 64
        $region16: #{decoder_block_forward.1} parent=11 // pred_fallthru
          _
        // Predicated region
        $region17: #{decoder_block_forward.1} parent=11 // pred_check
          %p198 = pneg %p81
        $region18: #{decoder_block_forward.1} parent=11 // pred_check_branch
          %200 = sbr.rel (%p198) target = $region20
        $region19: #{decoder_block_forward.1} parent=11 // pred_region
          _
        $region20: #{decoder_block_forward.1} parent=11 // pred_fallthru
          _
        // Predicated region
        $region21: #{decoder_block_forward.1} parent=11 // pred_check
          %p201 = pneg %p102
        $region22: #{decoder_block_forward.1} parent=11 // pred_check_branch
          %203 = sbr.rel (%p201) target = $region24
        $region23: #{decoder_block_forward.1} parent=11 // pred_region
          _
        $region24: #{decoder_block_forward.1} parent=11 // pred_fallthru
          _
        // Predicated region
        $region25: #{decoder_block_forward.1} parent=11 // pred_check
          %p204 = pneg %p123
        $region26: #{decoder_block_forward.1} parent=11 // pred_check_branch
          %206 = sbr.rel (%p204) target = $region28
        $region27: #{decoder_block_forward.1} parent=11 // pred_region
          _
        $region28: #{decoder_block_forward.1} parent=11 // pred_fallthru
          _
        // Predicated region
        $region29: #{decoder_block_forward.1} parent=11 // pred_check
          %p207 = pneg %p144
        $region30: #{decoder_block_forward.1} parent=11 // pred_check_branch
          %209 = sbr.rel (%p207) target = $region32
        $region31: #{decoder_block_forward.1} parent=11 // pred_region
          _
        $region32: #{decoder_block_forward.1} parent=11 // pred_fallthru
          _
      $region12: #{decoder_block_forward.1} parent=5 // pred_fallthru
        _
      %p210 = scmp.lt.s32.totalorder %s13, 2
      // Predicated region
      $region33: #{decoder_block_forward.1} parent=5 // pred_check
        %p211 = pneg %p210
      $region34: #{decoder_block_forward.1} parent=5 // pred_check_branch
        %213 = sbr.rel (%p211) target = $region36
      $region35: #{decoder_block_forward.1} parent=5 // pred_region
        // Predicated region
        $region37: #{decoder_block_forward.1} parent=35 // pred_check
          %p214 = pneg %p33
        $region38: #{decoder_block_forward.1} parent=35 // pred_check_branch
          %216 = sbr.rel (%p214) target = $region40
        $region39: #{decoder_block_forward.1} parent=35 // pred_region
          %p217 = scmp.lt.s32.totalorder %s13, 1
          %s218 = scalar_select %p217, %s13, 1
          %s219 = smul.addr %s218, 2
          %s220 = smul.addr %s219, 4
          %s221 = scalar_lea.vmem %s0, %s220
        $region40: #{decoder_block_forward.1} parent=35 // pred_fallthru
          _
      $region36: #{decoder_block_forward.1} parent=5 // pred_fallthru
        _
      %p222 = scmp.le.s32.totalorder 1, %s13
      %p223 = scmp.lt.s32.totalorder %s13, 3
      %p224 = pnand %p222, %p223
      %p225 = pneg %p224
      // Predicated region
      $region41: #{decoder_block_forward.1} parent=5 // pred_check
        _
      $region42: #{decoder_block_forward.1} parent=5 // pred_check_branch
        %227 = sbr.rel (%p224) target = $region44
      $region43: #{decoder_block_forward.1} parent=5 // pred_region
        %s228 = ssub.s32 %s13, 1
        // Predicated region
        $region45: #{decoder_block_forward.1} parent=43 // pred_check
          %p229 = pneg %p60
        $region46: #{decoder_block_forward.1} parent=43 // pred_check_branch
          %231 = sbr.rel (%p229) target = $region48
        $region47: #{decoder_block_forward.1} parent=43 // pred_region
          %232 = dma.done [#allocation5], 32768
        $region48: #{decoder_block_forward.1} parent=43 // pred_fallthru
          _
        %p233 = scmp.lt.s32.totalorder %s18, 1
        %s234 = scalar_select %p233, %s18, 1
        %s235 = smul.addr %s234, 2
        %s236 = smul.addr %s235, 4
        %s237 = scalar_lea.vmem %s0, %s236
        %p238 = pneg %p39
        %p239 = pneg %p36
        %p240 = pneg %p60
        %p241 = pneg %p57
        %p242 = pneg %p81
        %p243 = pneg %p78
        %p244 = pneg %p102
        %p245 = pneg %p99
        %p246 = pneg %p123
        %p247 = pneg %p120
        %p248 = pneg %p144
        %p249 = pneg %p141
        %p250 = pneg %p170
        %p251 = pneg %p167
        %p252 = scmp.lt.s32.totalorder %s18, 1
        %s253 = scalar_select %p252, %s18, 1
        %s254 = smul.addr %s253, 8
        %s255 = smul.addr %s254, 8
        %s256 = scalar_lea.vmem %s6, %s255
        %p257 = scmp.lt.s32.totalorder %s18, 1
        %s258 = scalar_select %p257, %s18, 1
        %s259 = smul.addr %s258, 2
        %s260 = smul.addr %s259, 4
        %s261 = scalar_lea.vmem %s0, %s260
        %p262 = scmp.lt.s32.totalorder %s18, 1
        %s263 = scalar_select %p262, %s18, 1
        %s264 = smul.addr %s263, 8
        %s265 = smul.addr %s264, 8
        %s266 = scalar_lea.vmem %s6, %s265
        %v267 = vlaneseq
        %v268 = vand.u32 %v267, 127
        %v269 = vadd.s32 %v268, 128
        %v270 = vadd.s32 %v268, 256
        %v271 = vadd.s32 %v268, 384
        %v272 = vadd.s32 %v268, 512
        %v273 = vadd.s32 %v268, 640
        %v274 = vadd.s32 %v268, 768
        %v275 = vadd.s32 %v268, 896
        %vm276 = vcmp.lt.s32.totalorder %v268, 0
        %v277 = vsub.s32 0, %v268
        %v278 = vsel %vm276, %v277, %v268
        %v279 = vshrl.u32 %v278, 5
        %v280 = vand.u32 %v278, 31
        %v281 = vsub.s32 0, %v280
        %v282 = vsel %vm276, %v281, %v280
        %vm283 = vcmp.lt.s32.totalorder %v269, 0
        %v284 = vsub.s32 0, %v269
        %v285 = vsel %vm283, %v284, %v269
        %v286 = vshrl.u32 %v285, 5
        %v287 = vand.u32 %v285, 31
        %v288 = vsub.s32 0, %v287
        %v289 = vsel %vm283, %v288, %v287
        %vm290 = vcmp.lt.s32.totalorder %v270, 0
        %v291 = vsub.s32 0, %v270
        %v292 = vsel %vm290, %v291, %v270
        %v293 = vshrl.u32 %v292, 5
        %v294 = vand.u32 %v292, 31
        %v295 = vsub.s32 0, %v294
        %v296 = vsel %vm290, %v295, %v294
        %vm297 = vcmp.lt.s32.totalorder %v271, 0
        %v298 = vsub.s32 0, %v271
        %v299 = vsel %vm297, %v298, %v271
        %v300 = vshrl.u32 %v299, 5
        %v301 = vand.u32 %v299, 31
        %v302 = vsub.s32 0, %v301
        %v303 = vsel %vm297, %v302, %v301
        %vm304 = vcmp.lt.s32.totalorder %v272, 0
        %v305 = vsub.s32 0, %v272
        %v306 = vsel %vm304, %v305, %v272
        %v307 = vshrl.u32 %v306, 5
        %v308 = vand.u32 %v306, 31
        %v309 = vsub.s32 0, %v308
        %v310 = vsel %vm304, %v309, %v308
        %vm311 = vcmp.lt.s32.totalorder %v273, 0
        %v312 = vsub.s32 0, %v273
        %v313 = vsel %vm311, %v312, %v273
        %v314 = vshrl.u32 %v313, 5
        %v315 = vand.u32 %v313, 31
        %v316 = vsub.s32 0, %v315
        %v317 = vsel %vm311, %v316, %v315
        %vm318 = vcmp.lt.s32.totalorder %v274, 0
        %v319 = vsub.s32 0, %v274
        %v320 = vsel %vm318, %v319, %v274
        %v321 = vshrl.u32 %v320, 5
        %v322 = vand.u32 %v320, 31
        %v323 = vsub.s32 0, %v322
        %v324 = vsel %vm318, %v323, %v322
        %vm325 = vcmp.lt.s32.totalorder %v275, 0
        %v326 = vsub.s32 0, %v275
        %v327 = vsel %vm325, %v326, %v275
        %v328 = vshrl.u32 %v327, 5
        %v329 = vand.u32 %v327, 31
        %v330 = vsub.s32 0, %v329
        %v331 = vsel %vm325, %v330, %v329
        %vm332 = vcmp.ne.s32.totalorder %v282, 0
        %vm333 = vcmp.ne.s32.totalorder %v289, 0
        %vm334 = vcmp.ne.s32.totalorder %v296, 0
        %vm335 = vcmp.ne.s32.totalorder %v303, 0
        %vm336 = vcmp.ne.s32.totalorder %v310, 0
        %vm337 = vcmp.ne.s32.totalorder %v317, 0
        %vm338 = vcmp.ne.s32.totalorder %v324, 0
        %vm339 = vcmp.ne.s32.totalorder %v331, 0
        %vm340 = vcmp.lt.s32.totalorder %v282, 0
        %vm341 = vcmp.lt.s32.totalorder %v289, 0
        %vm342 = vcmp.lt.s32.totalorder %v296, 0
        %vm343 = vcmp.lt.s32.totalorder %v303, 0
        %vm344 = vcmp.lt.s32.totalorder %v310, 0
        %vm345 = vcmp.lt.s32.totalorder %v317, 0
        %vm346 = vcmp.lt.s32.totalorder %v324, 0
        %vm347 = vcmp.lt.s32.totalorder %v331, 0
        %vm348 = vmand %vm340, %vm332
        %vm349 = vmand %vm341, %vm333
        %vm350 = vmand %vm342, %vm334
        %vm351 = vmand %vm343, %vm335
        %vm352 = vmand %vm344, %vm336
        %vm353 = vmand %vm345, %vm337
        %vm354 = vmand %vm346, %vm338
        %vm355 = vmand %vm347, %vm339
        %v356 = vadd.s32 %v282, 32
        %v357 = vadd.s32 %v289, 32
        %v358 = vadd.s32 %v296, 32
        %v359 = vadd.s32 %v303, 32
        %v360 = vadd.s32 %v310, 32
        %v361 = vadd.s32 %v317, 32
        %v362 = vadd.s32 %v324, 32
        %v363 = vadd.s32 %v331, 32
        %v364 = vsel %vm348, %v356, %v282
        %v365 = vsel %vm349, %v357, %v289
        %v366 = vsel %vm350, %v358, %v296
        %v367 = vsel %vm351, %v359, %v303
        %v368 = vsel %vm352, %v360, %v310
        %v369 = vsel %vm353, %v361, %v317
        %v370 = vsel %vm354, %v362, %v324
        %v371 = vsel %vm355, %v363, %v331
        %vm372 = vcmp.ge.s32.totalorder %v268, 32
        %vm373 = vcmp.ge.s32.totalorder %v269, 32
        %vm374 = vcmp.ge.s32.totalorder %v270, 32
        %vm375 = vcmp.ge.s32.totalorder %v271, 32
        %vm376 = vcmp.ge.s32.totalorder %v272, 32
        %vm377 = vcmp.ge.s32.totalorder %v273, 32
        %vm378 = vcmp.ge.s32.totalorder %v274, 32
        %vm379 = vcmp.ge.s32.totalorder %v275, 32
        %vm380 = vcmp.ge.s32.totalorder %v364, 1
        %vm381 = vcmp.ge.s32.totalorder %v365, 1
        %vm382 = vcmp.ge.s32.totalorder %v366, 1
        %vm383 = vcmp.ge.s32.totalorder %v367, 1
        %vm384 = vcmp.ge.s32.totalorder %v368, 1
        %vm385 = vcmp.ge.s32.totalorder %v369, 1
        %vm386 = vcmp.ge.s32.totalorder %v370, 1
        %vm387 = vcmp.ge.s32.totalorder %v371, 1
        %vm388 = vmand %vm372, %vm380
        %vm389 = vmand %vm373, %vm381
        %vm390 = vmand %vm374, %vm382
        %vm391 = vmand %vm375, %vm383
        %vm392 = vmand %vm376, %vm384
        %vm393 = vmand %vm377, %vm385
        %vm394 = vmand %vm378, %vm386
        %vm395 = vmand %vm379, %vm387
        %vm396 = vcmp.lt.s32.totalorder %v364, 31
        %vm397 = vcmp.lt.s32.totalorder %v365, 31
        %vm398 = vcmp.lt.s32.totalorder %v366, 31
        %vm399 = vcmp.lt.s32.totalorder %v367, 31
        %vm400 = vcmp.lt.s32.totalorder %v368, 31
        %vm401 = vcmp.lt.s32.totalorder %v369, 31
        %vm402 = vcmp.lt.s32.totalorder %v370, 31
        %vm403 = vcmp.lt.s32.totalorder %v371, 31
        %vm404 = vmand %vm372, %vm396
        %vm405 = vmand %vm373, %vm397
        %vm406 = vmand %vm374, %vm398
        %vm407 = vmand %vm375, %vm399
        %vm408 = vmand %vm376, %vm400
        %vm409 = vmand %vm377, %vm401
        %vm410 = vmand %vm378, %vm402
        %vm411 = vmand %vm379, %vm403
        %vm412 = vcmp.lt.s32.totalorder %v268, 992
        %vm413 = vcmp.lt.s32.totalorder %v269, 992
        %vm414 = vcmp.lt.s32.totalorder %v270, 992
        %vm415 = vcmp.lt.s32.totalorder %v271, 992
        %vm416 = vcmp.lt.s32.totalorder %v272, 992
        %vm417 = vcmp.lt.s32.totalorder %v273, 992
        %vm418 = vcmp.lt.s32.totalorder %v274, 992
        %vm419 = vcmp.lt.s32.totalorder %v275, 992
        %vm420 = vmand %vm412, %vm380
        %vm421 = vmand %vm413, %vm381
        %vm422 = vmand %vm414, %vm382
        %vm423 = vmand %vm415, %vm383
        %vm424 = vmand %vm416, %vm384
        %vm425 = vmand %vm417, %vm385
        %vm426 = vmand %vm418, %vm386
        %vm427 = vmand %vm419, %vm387
        %vm428 = vmand %vm412, %vm396
        %vm429 = vmand %vm413, %vm397
        %vm430 = vmand %vm414, %vm398
        %vm431 = vmand %vm415, %vm399
        %vm432 = vmand %vm416, %vm400
        %vm433 = vmand %vm417, %vm401
        %vm434 = vmand %vm418, %vm402
        %vm435 = vmand %vm419, %vm403
        %v436 = vld [vmem:[%s261] sm:$0xff]
        %v437 = vld [vmem:[#allocation4] sm:$0xff]
        %v438 = vld [vmem:[#allocation4 + $0x8] sm:$0xff]
        %v439 = vld [vmem:[#allocation4 + $0x10] sm:$0xff]
        %v440 = vld [vmem:[#allocation4 + $0x18] sm:$0xff]
        %v441 = vld [vmem:[#allocation4 + $0x20] sm:$0xff]
        %v442 = vld [vmem:[#allocation4 + $0x28] sm:$0xff]
        %v443 = vld [vmem:[#allocation4 + $0x30] sm:$0xff]
        %v444 = vld [vmem:[#allocation4 + $0x38] sm:$0xff]
        %v445 = vld [vmem:[#allocation4 + $0x40] sm:$0xff]
        %v446 = vld [vmem:[#allocation4 + $0x48] sm:$0xff]
        %v447 = vld [vmem:[#allocation4 + $0x50] sm:$0xff]
        %v448 = vld [vmem:[#allocation4 + $0x58] sm:$0xff]
        %v449 = vld [vmem:[#allocation4 + $0x60] sm:$0xff]
        %v450 = vld [vmem:[#allocation4 + $0x68] sm:$0xff]
        %v451 = vld [vmem:[#allocation4 + $0x70] sm:$0xff]
        %v452 = vld [vmem:[#allocation4 + $0x78] sm:$0xff]
        %v453 = vld [vmem:[#allocation4 + $0x80] sm:$0xff]
        %v454 = vld [vmem:[#allocation4 + $0x88] sm:$0xff]
        %v455 = vld [vmem:[#allocation4 + $0x90] sm:$0xff]
        %v456 = vld [vmem:[#allocation4 + $0x98] sm:$0xff]
        %v457 = vld [vmem:[#allocation4 + $0xa0] sm:$0xff]
        %v458 = vld [vmem:[#allocation4 + $0xa8] sm:$0xff]
        %v459 = vld [vmem:[#allocation4 + $0xb0] sm:$0xff]
        %v460 = vld [vmem:[#allocation4 + $0xb8] sm:$0xff]
        %v461 = vld [vmem:[#allocation4 + $0xc0] sm:$0xff]
        %v462 = vld [vmem:[#allocation4 + $0xc8] sm:$0xff]
        %v463 = vld [vmem:[#allocation4 + $0xd0] sm:$0xff]
        %v464 = vld [vmem:[#allocation4 + $0xd8] sm:$0xff]
        %v465 = vld [vmem:[#allocation4 + $0xe0] sm:$0xff]
        %v466 = vld [vmem:[#allocation4 + $0xe8] sm:$0xff]
        %v467 = vld [vmem:[#allocation4 + $0xf0] sm:$0xff]
        %v468 = vld [vmem:[#allocation4 + $0xf8] sm:$0xff]
        %v469 = vld [vmem:[#allocation4 + $0x100] sm:$0xff]
        %v470 = vld [vmem:[#allocation4 + $0x108] sm:$0xff]
        %v471 = vld [vmem:[#allocation4 + $0x110] sm:$0xff]
        %v472 = vld [vmem:[#allocation4 + $0x118] sm:$0xff]
        %v473 = vld [vmem:[#allocation4 + $0x120] sm:$0xff]
        %v474 = vld [vmem:[#allocation4 + $0x128] sm:$0xff]
        %v475 = vld [vmem:[#allocation4 + $0x130] sm:$0xff]
        %v476 = vld [vmem:[#allocation4 + $0x138] sm:$0xff]
        %v477 = vld [vmem:[#allocation4 + $0x140] sm:$0xff]
        %v478 = vld [vmem:[#allocation4 + $0x148] sm:$0xff]
        %v479 = vld [vmem:[#allocation4 + $0x150] sm:$0xff]
        %v480 = vld [vmem:[#allocation4 + $0x158] sm:$0xff]
        %v481 = vld [vmem:[#allocation4 + $0x160] sm:$0xff]
        %v482 = vld [vmem:[#allocation4 + $0x168] sm:$0xff]
        %v483 = vld [vmem:[#allocation4 + $0x170] sm:$0xff]
        %v484 = vld [vmem:[#allocation4 + $0x178] sm:$0xff]
        %v485 = vld [vmem:[#allocation4 + $0x180] sm:$0xff]
        %v486 = vld [vmem:[#allocation4 + $0x188] sm:$0xff]
        %v487 = vld [vmem:[#allocation4 + $0x190] sm:$0xff]
        %v488 = vld [vmem:[#allocation4 + $0x198] sm:$0xff]
        %v489 = vld [vmem:[#allocation4 + $0x1a0] sm:$0xff]
        %v490 = vld [vmem:[#allocation4 + $0x1a8] sm:$0xff]
        %v491 = vld [vmem:[#allocation4 + $0x1b0] sm:$0xff]
        %v492 = vld [vmem:[#allocation4 + $0x1b8] sm:$0xff]
        %v493 = vld [vmem:[#allocation4 + $0x1c0] sm:$0xff]
        %v494 = vld [vmem:[#allocation4 + $0x1c8] sm:$0xff]
        %v495 = vld [vmem:[#allocation4 + $0x1d0] sm:$0xff]
        %v496 = vld [vmem:[#allocation4 + $0x1d8] sm:$0xff]
        %v497 = vld [vmem:[#allocation4 + $0x1e0] sm:$0xff]
        %v498 = vld [vmem:[#allocation4 + $0x1e8] sm:$0xff]
        %v499 = vld [vmem:[#allocation4 + $0x1f0] sm:$0xff]
        %v500 = vld [vmem:[#allocation4 + $0x1f8] sm:$0xff]
        %v501 = vld [vmem:[#allocation4 + $0x200] sm:$0xff]
        %v502 = vld [vmem:[#allocation4 + $0x208] sm:$0xff]
        %v503 = vld [vmem:[#allocation4 + $0x210] sm:$0xff]
        %v504 = vld [vmem:[#allocation4 + $0x218] sm:$0xff]
        %v505 = vld [vmem:[#allocation4 + $0x220] sm:$0xff]
        %v506 = vld [vmem:[#allocation4 + $0x228] sm:$0xff]
        %v507 = vld [vmem:[#allocation4 + $0x230] sm:$0xff]
        %v508 = vld [vmem:[#allocation4 + $0x238] sm:$0xff]
        %v509 = vld [vmem:[#allocation4 + $0x240] sm:$0xff]
        %v510 = vld [vmem:[#allocation4 + $0x248] sm:$0xff]
        %v511 = vld [vmem:[#allocation4 + $0x250] sm:$0xff]
        %v512 = vld [vmem:[#allocation4 + $0x258] sm:$0xff]
        %v513 = vld [vmem:[#allocation4 + $0x260] sm:$0xff]
        %v514 = vld [vmem:[#allocation4 + $0x268] sm:$0xff]
        %v515 = vld [vmem:[#allocation4 + $0x270] sm:$0xff]
        %v516 = vld [vmem:[#allocation4 + $0x278] sm:$0xff]
        %v517 = vld [vmem:[#allocation4 + $0x280] sm:$0xff]
        %v518 = vld [vmem:[#allocation4 + $0x288] sm:$0xff]
        %v519 = vld [vmem:[#allocation4 + $0x290] sm:$0xff]
        %v520 = vld [vmem:[#allocation4 + $0x298] sm:$0xff]
        %v521 = vld [vmem:[#allocation4 + $0x2a0] sm:$0xff]
        %v522 = vld [vmem:[#allocation4 + $0x2a8] sm:$0xff]
        %v523 = vld [vmem:[#allocation4 + $0x2b0] sm:$0xff]
        %v524 = vld [vmem:[#allocation4 + $0x2b8] sm:$0xff]
        %v525 = vld [vmem:[#allocation4 + $0x2c0] sm:$0xff]
        %v526 = vld [vmem:[#allocation4 + $0x2c8] sm:$0xff]
        %v527 = vld [vmem:[#allocation4 + $0x2d0] sm:$0xff]
        %v528 = vld [vmem:[#allocation4 + $0x2d8] sm:$0xff]
        %v529 = vld [vmem:[#allocation4 + $0x2e0] sm:$0xff]
        %v530 = vld [vmem:[#allocation4 + $0x2e8] sm:$0xff]
        %v531 = vld [vmem:[#allocation4 + $0x2f0] sm:$0xff]
        %v532 = vld [vmem:[#allocation4 + $0x2f8] sm:$0xff]
        %v533 = vld [vmem:[#allocation4 + $0x300] sm:$0xff]
        %v534 = vld [vmem:[#allocation4 + $0x308] sm:$0xff]
        %v535 = vld [vmem:[#allocation4 + $0x310] sm:$0xff]
        %v536 = vld [vmem:[#allocation4 + $0x318] sm:$0xff]
        %v537 = vld [vmem:[#allocation4 + $0x320] sm:$0xff]
        %v538 = vld [vmem:[#allocation4 + $0x328] sm:$0xff]
        %v539 = vld [vmem:[#allocation4 + $0x330] sm:$0xff]
        %v540 = vld [vmem:[#allocation4 + $0x338] sm:$0xff]
        %v541 = vld [vmem:[#allocation4 + $0x340] sm:$0xff]
        %v542 = vld [vmem:[#allocation4 + $0x348] sm:$0xff]
        %v543 = vld [vmem:[#allocation4 + $0x350] sm:$0xff]
        %v544 = vld [vmem:[#allocation4 + $0x358] sm:$0xff]
        %v545 = vld [vmem:[#allocation4 + $0x360] sm:$0xff]
        %v546 = vld [vmem:[#allocation4 + $0x368] sm:$0xff]
        %v547 = vld [vmem:[#allocation4 + $0x370] sm:$0xff]
        %v548 = vld [vmem:[#allocation4 + $0x378] sm:$0xff]
        %v549 = vld [vmem:[#allocation4 + $0x380] sm:$0xff]
        %v550 = vld [vmem:[#allocation4 + $0x388] sm:$0xff]
        %v551 = vld [vmem:[#allocation4 + $0x390] sm:$0xff]
        %v552 = vld [vmem:[#allocation4 + $0x398] sm:$0xff]
        %v553 = vld [vmem:[#allocation4 + $0x3a0] sm:$0xff]
        %v554 = vld [vmem:[#allocation4 + $0x3a8] sm:$0xff]
        %v555 = vld [vmem:[#allocation4 + $0x3b0] sm:$0xff]
        %v556 = vld [vmem:[#allocation4 + $0x3b8] sm:$0xff]
        %v557 = vld [vmem:[#allocation4 + $0x3c0] sm:$0xff]
        %v558 = vld [vmem:[#allocation4 + $0x3c8] sm:$0xff]
        %v559 = vld [vmem:[#allocation4 + $0x3d0] sm:$0xff]
        %v560 = vld [vmem:[#allocation4 + $0x3d8] sm:$0xff]
        %v561 = vld [vmem:[#allocation4 + $0x3e0] sm:$0xff]
        %v562 = vld [vmem:[#allocation4 + $0x3e8] sm:$0xff]
        %v563 = vld [vmem:[#allocation4 + $0x3f0] sm:$0xff]
        %v564 = vld [vmem:[#allocation4 + $0x3f8] sm:$0xff]
        %v565 = vld [vmem:[#allocation4 + $0x400] sm:$0xff]
        %v566 = vld [vmem:[#allocation4 + $0x408] sm:$0xff]
        %v567 = vld [vmem:[#allocation4 + $0x410] sm:$0xff]
        %v568 = vld [vmem:[#allocation4 + $0x418] sm:$0xff]
        %v569 = vld [vmem:[#allocation4 + $0x420] sm:$0xff]
        %v570 = vld [vmem:[#allocation4 + $0x428] sm:$0xff]
        %v571 = vld [vmem:[#allocation4 + $0x430] sm:$0xff]
        %v572 = vld [vmem:[#allocation4 + $0x438] sm:$0xff]
        %v573 = vld [vmem:[#allocation4 + $0x440] sm:$0xff]
        %v574 = vld [vmem:[#allocation4 + $0x448] sm:$0xff]
        %v575 = vld [vmem:[#allocation4 + $0x450] sm:$0xff]
        %v576 = vld [vmem:[#allocation4 + $0x458] sm:$0xff]
        %v577 = vld [vmem:[#allocation4 + $0x460] sm:$0xff]
        %v578 = vld [vmem:[#allocation4 + $0x468] sm:$0xff]
        %v579 = vld [vmem:[#allocation4 + $0x470] sm:$0xff]
        %v580 = vld [vmem:[#allocation4 + $0x478] sm:$0xff]
        %v581 = vld [vmem:[#allocation4 + $0x480] sm:$0xff]
        %v582 = vld [vmem:[#allocation4 + $0x488] sm:$0xff]
        %v583 = vld [vmem:[#allocation4 + $0x490] sm:$0xff]
        %v584 = vld [vmem:[#allocation4 + $0x498] sm:$0xff]
        %v585 = vld [vmem:[#allocation4 + $0x4a0] sm:$0xff]
        %v586 = vld [vmem:[#allocation4 + $0x4a8] sm:$0xff]
        %v587 = vld [vmem:[#allocation4 + $0x4b0] sm:$0xff]
        %v588 = vld [vmem:[#allocation4 + $0x4b8] sm:$0xff]
        %v589 = vld [vmem:[#allocation4 + $0x4c0] sm:$0xff]
        %v590 = vld [vmem:[#allocation4 + $0x4c8] sm:$0xff]
        %v591 = vld [vmem:[#allocation4 + $0x4d0] sm:$0xff]
        %v592 = vld [vmem:[#allocation4 + $0x4d8] sm:$0xff]
        %v593 = vld [vmem:[#allocation4 + $0x4e0] sm:$0xff]
        %v594 = vld [vmem:[#allocation4 + $0x4e8] sm:$0xff]
        %v595 = vld [vmem:[#allocation4 + $0x4f0] sm:$0xff]
        %v596 = vld [vmem:[#allocation4 + $0x4f8] sm:$0xff]
        %v597 = vld [vmem:[#allocation4 + $0x500] sm:$0xff]
        %v598 = vld [vmem:[#allocation4 + $0x508] sm:$0xff]
        %v599 = vld [vmem:[#allocation4 + $0x510] sm:$0xff]
        %v600 = vld [vmem:[#allocation4 + $0x518] sm:$0xff]
        %v601 = vld [vmem:[#allocation4 + $0x520] sm:$0xff]
        %v602 = vld [vmem:[#allocation4 + $0x528] sm:$0xff]
        %v603 = vld [vmem:[#allocation4 + $0x530] sm:$0xff]
        %v604 = vld [vmem:[#allocation4 + $0x538] sm:$0xff]
        %v605 = vld [vmem:[#allocation4 + $0x540] sm:$0xff]
        %v606 = vld [vmem:[#allocation4 + $0x548] sm:$0xff]
        %v607 = vld [vmem:[#allocation4 + $0x550] sm:$0xff]
        %v608 = vld [vmem:[#allocation4 + $0x558] sm:$0xff]
        %v609 = vld [vmem:[#allocation4 + $0x560] sm:$0xff]
        %v610 = vld [vmem:[#allocation4 + $0x568] sm:$0xff]
        %v611 = vld [vmem:[#allocation4 + $0x570] sm:$0xff]
        %v612 = vld [vmem:[#allocation4 + $0x578] sm:$0xff]
        %v613 = vld [vmem:[#allocation4 + $0x580] sm:$0xff]
        %v614 = vld [vmem:[#allocation4 + $0x588] sm:$0xff]
        %v615 = vld [vmem:[#allocation4 + $0x590] sm:$0xff]
        %v616 = vld [vmem:[#allocation4 + $0x598] sm:$0xff]
        %v617 = vld [vmem:[#allocation4 + $0x5a0] sm:$0xff]
        %v618 = vld [vmem:[#allocation4 + $0x5a8] sm:$0xff]
        %v619 = vld [vmem:[#allocation4 + $0x5b0] sm:$0xff]
        %v620 = vld [vmem:[#allocation4 + $0x5b8] sm:$0xff]
        %v621 = vld [vmem:[#allocation4 + $0x5c0] sm:$0xff]
        %v622 = vld [vmem:[#allocation4 + $0x5c8] sm:$0xff]
        %v623 = vld [vmem:[#allocation4 + $0x5d0] sm:$0xff]
        %v624 = vld [vmem:[#allocation4 + $0x5d8] sm:$0xff]
        %v625 = vld [vmem:[#allocation4 + $0x5e0] sm:$0xff]
        %v626 = vld [vmem:[#allocation4 + $0x5e8] sm:$0xff]
        %v627 = vld [vmem:[#allocation4 + $0x5f0] sm:$0xff]
        %v628 = vld [vmem:[#allocation4 + $0x5f8] sm:$0xff]
        %v629 = vld [vmem:[#allocation4 + $0x600] sm:$0xff]
        %v630 = vld [vmem:[#allocation4 + $0x608] sm:$0xff]
        %v631 = vld [vmem:[#allocation4 + $0x610] sm:$0xff]
        %v632 = vld [vmem:[#allocation4 + $0x618] sm:$0xff]
        %v633 = vld [vmem:[#allocation4 + $0x620] sm:$0xff]
        %v634 = vld [vmem:[#allocation4 + $0x628] sm:$0xff]
        %v635 = vld [vmem:[#allocation4 + $0x630] sm:$0xff]
        %v636 = vld [vmem:[#allocation4 + $0x638] sm:$0xff]
        %v637 = vld [vmem:[#allocation4 + $0x640] sm:$0xff]
        %v638 = vld [vmem:[#allocation4 + $0x648] sm:$0xff]
        %v639 = vld [vmem:[#allocation4 + $0x650] sm:$0xff]
        %v640 = vld [vmem:[#allocation4 + $0x658] sm:$0xff]
        %v641 = vld [vmem:[#allocation4 + $0x660] sm:$0xff]
        %v642 = vld [vmem:[#allocation4 + $0x668] sm:$0xff]
        %v643 = vld [vmem:[#allocation4 + $0x670] sm:$0xff]
        %v644 = vld [vmem:[#allocation4 + $0x678] sm:$0xff]
        %v645 = vld [vmem:[#allocation4 + $0x680] sm:$0xff]
        %v646 = vld [vmem:[#allocation4 + $0x688] sm:$0xff]
        %v647 = vld [vmem:[#allocation4 + $0x690] sm:$0xff]
        %v648 = vld [vmem:[#allocation4 + $0x698] sm:$0xff]
        %v649 = vld [vmem:[#allocation4 + $0x6a0] sm:$0xff]
        %v650 = vld [vmem:[#allocation4 + $0x6a8] sm:$0xff]
        %v651 = vld [vmem:[#allocation4 + $0x6b0] sm:$0xff]
        %v652 = vld [vmem:[#allocation4 + $0x6b8] sm:$0xff]
        %v653 = vld [vmem:[#allocation4 + $0x6c0] sm:$0xff]
        %v654 = vld [vmem:[#allocation4 + $0x6c8] sm:$0xff]
        %v655 = vld [vmem:[#allocation4 + $0x6d0] sm:$0xff]
        %v656 = vld [vmem:[#allocation4 + $0x6d8] sm:$0xff]
        %v657 = vld [vmem:[#allocation4 + $0x6e0] sm:$0xff]
        %v658 = vld [vmem:[#allocation4 + $0x6e8] sm:$0xff]
        %v659 = vld [vmem:[#allocation4 + $0x6f0] sm:$0xff]
        %v660 = vld [vmem:[#allocation4 + $0x6f8] sm:$0xff]
        %v661 = vld [vmem:[#allocation4 + $0x700] sm:$0xff]
        %v662 = vld [vmem:[#allocation4 + $0x708] sm:$0xff]
        %v663 = vld [vmem:[#allocation4 + $0x710] sm:$0xff]
        %v664 = vld [vmem:[#allocation4 + $0x718] sm:$0xff]
        %v665 = vld [vmem:[#allocation4 + $0x720] sm:$0xff]
        %v666 = vld [vmem:[#allocation4 + $0x728] sm:$0xff]
        %v667 = vld [vmem:[#allocation4 + $0x730] sm:$0xff]
        %v668 = vld [vmem:[#allocation4 + $0x738] sm:$0xff]
        %v669 = vld [vmem:[#allocation4 + $0x740] sm:$0xff]
        %v670 = vld [vmem:[#allocation4 + $0x748] sm:$0xff]
        %v671 = vld [vmem:[#allocation4 + $0x750] sm:$0xff]
        %v672 = vld [vmem:[#allocation4 + $0x758] sm:$0xff]
        %v673 = vld [vmem:[#allocation4 + $0x760] sm:$0xff]
        %v674 = vld [vmem:[#allocation4 + $0x768] sm:$0xff]
        %v675 = vld [vmem:[#allocation4 + $0x770] sm:$0xff]
        %v676 = vld [vmem:[#allocation4 + $0x778] sm:$0xff]
        %v677 = vld [vmem:[#allocation4 + $0x780] sm:$0xff]
        %v678 = vld [vmem:[#allocation4 + $0x788] sm:$0xff]
        %v679 = vld [vmem:[#allocation4 + $0x790] sm:$0xff]
        %v680 = vld [vmem:[#allocation4 + $0x798] sm:$0xff]
        %v681 = vld [vmem:[#allocation4 + $0x7a0] sm:$0xff]
        %v682 = vld [vmem:[#allocation4 + $0x7a8] sm:$0xff]
        %v683 = vld [vmem:[#allocation4 + $0x7b0] sm:$0xff]
        %v684 = vld [vmem:[#allocation4 + $0x7b8] sm:$0xff]
        %v685 = vld [vmem:[#allocation4 + $0x7c0] sm:$0xff]
        %v686 = vld [vmem:[#allocation4 + $0x7c8] sm:$0xff]
        %v687 = vld [vmem:[#allocation4 + $0x7d0] sm:$0xff]
        %v688 = vld [vmem:[#allocation4 + $0x7d8] sm:$0xff]
        %v689 = vld [vmem:[#allocation4 + $0x7e0] sm:$0xff]
        %v690 = vld [vmem:[#allocation4 + $0x7e8] sm:$0xff]
        %v691 = vld [vmem:[#allocation4 + $0x7f0] sm:$0xff]
        %v692 = vld [vmem:[#allocation4 + $0x7f8] sm:$0xff]
        %v694 = vcombine.high %v436, %v436
        %696 = vmatprep.subr.mxu0 %v438
        %697 = vmatpush1.msra.mxu0 %v437
        %698 = vmatprep.subr.mxu0 %v446
        %699 = vmatpush1.msra.mxu0 %v445
        %700 = vmatprep.subr.mxu0 %v454
        %701 = vmatpush1.msra.mxu0 %v453
        %702 = vmatprep.subr.mxu0 %v462
        %703 = vmatpush1.msra.mxu0 %v461
        %704 = vmatprep.subr.mxu0 %v470
        %705 = vmatpush1.msra.mxu0 %v469
        %706 = vmatprep.subr.mxu0 %v478
        %707 = vmatpush1.msra.mxu0 %v477
        %708 = vmatprep.subr.mxu0 %v486
        %709 = vmatpush1.msra.mxu0 %v485
        %710 = vmatprep.subr.mxu0 %v494
        %711 = vmatpush1.msra.mxu0 %v493
        %712 = vmatprep.subr.mxu0 %v502
        %713 = vmatpush1.msra.mxu0 %v501
        %714 = vmatprep.subr.mxu0 %v510
        %715 = vmatpush1.msra.mxu0 %v509
        %716 = vmatprep.subr.mxu0 %v518
        %717 = vmatpush1.msra.mxu0 %v517
        %718 = vmatprep.subr.mxu0 %v526
        %719 = vmatpush1.msra.mxu0 %v525
        %720 = vmatprep.subr.mxu0 %v534
        %721 = vmatpush1.msra.mxu0 %v533
        %722 = vmatprep.subr.mxu0 %v542
        %723 = vmatpush1.msra.mxu0 %v541
        %724 = vmatprep.subr.mxu0 %v550
        %725 = vmatpush1.msra.mxu0 %v549
        %726 = vmatprep.subr.mxu0 %v558
        %727 = vmatpush1.msra.mxu0 %v557
        %728 = vmatprep.subr.mxu0 %v566
        %729 = vmatpush1.msra.mxu0 %v565
        %730 = vmatprep.subr.mxu0 %v574
        %731 = vmatpush1.msra.mxu0 %v573
        %732 = vmatprep.subr.mxu0 %v582
        %733 = vmatpush1.msra.mxu0 %v581
        %734 = vmatprep.subr.mxu0 %v590
        %735 = vmatpush1.msra.mxu0 %v589
        %736 = vmatprep.subr.mxu0 %v598
        %737 = vmatpush1.msra.mxu0 %v597
        %738 = vmatprep.subr.mxu0 %v606
        %739 = vmatpush1.msra.mxu0 %v605
        %740 = vmatprep.subr.mxu0 %v614
        %741 = vmatpush1.msra.mxu0 %v613
        %742 = vmatprep.subr.mxu0 %v622
        %743 = vmatpush1.msra.mxu0 %v621
        %744 = vmatprep.subr.mxu0 %v630
        %745 = vmatpush1.msra.mxu0 %v629
        %746 = vmatprep.subr.mxu0 %v638
        %747 = vmatpush1.msra.mxu0 %v637
        %748 = vmatprep.subr.mxu0 %v646
        %749 = vmatpush1.msra.mxu0 %v645
        %750 = vmatprep.subr.mxu0 %v654
        %751 = vmatpush1.msra.mxu0 %v653
        %752 = vmatprep.subr.mxu0 %v662
        %753 = vmatpush1.msra.mxu0 %v661
        %754 = vmatprep.subr.mxu0 %v670
        %755 = vmatpush1.msra.mxu0 %v669
        %756 = vmatprep.subr.mxu0 %v678
        %757 = vmatpush1.msra.mxu0 %v677
        %758 = vmatprep.subr.mxu0 %v686
        %759 = vmatpush1.msra.mxu0 %v685
        %760 = vmatprep.mubr.f32.mxu0 %v694
        %761 = vmatmul.mubr.f32.gmra.mrb[0].mxu0 %v436
        %v762 = vpop.f32.mrb[0].mxu0
        %v763 = vadd.f32 0.0, %v762
        %v764 = vpop.f32.mrb[0].mxu0
        %v765 = vadd.f32 0.0, %v764
        %766 = vdwg.mxu0
        %767 = vmatprep.subr.mxu0 %v440
        %768 = vmatpush1.msra.mxu0 %v439
        %769 = vmatprep.subr.mxu0 %v448
        %770 = vmatpush1.msra.mxu0 %v447
        %771 = vmatprep.subr.mxu0 %v456
        %772 = vmatpush1.msra.mxu0 %v455
        %773 = vmatprep.subr.mxu0 %v464
        %774 = vmatpush1.msra.mxu0 %v463
        %775 = vmatprep.subr.mxu0 %v472
        %776 = vmatpush1.msra.mxu0 %v471
        %777 = vmatprep.subr.mxu0 %v480
        %778 = vmatpush1.msra.mxu0 %v479
        %779 = vmatprep.subr.mxu0 %v488
        %780 = vmatpush1.msra.mxu0 %v487
        %781 = vmatprep.subr.mxu0 %v496
        %782 = vmatpush1.msra.mxu0 %v495
        %783 = vmatprep.subr.mxu0 %v504
        %784 = vmatpush1.msra.mxu0 %v503
        %785 = vmatprep.subr.mxu0 %v512
        %786 = vmatpush1.msra.mxu0 %v511
        %787 = vmatprep.subr.mxu0 %v520
        %788 = vmatpush1.msra.mxu0 %v519
        %789 = vmatprep.subr.mxu0 %v528
        %790 = vmatpush1.msra.mxu0 %v527
        %791 = vmatprep.subr.mxu0 %v536
        %792 = vmatpush1.msra.mxu0 %v535
        %793 = vmatprep.subr.mxu0 %v544
        %794 = vmatpush1.msra.mxu0 %v543
        %795 = vmatprep.subr.mxu0 %v552
        %796 = vmatpush1.msra.mxu0 %v551
        %797 = vmatprep.subr.mxu0 %v560
        %798 = vmatpush1.msra.mxu0 %v559
        %799 = vmatprep.subr.mxu0 %v568
        %800 = vmatpush1.msra.mxu0 %v567
        %801 = vmatprep.subr.mxu0 %v576
        %802 = vmatpush1.msra.mxu0 %v575
        %803 = vmatprep.subr.mxu0 %v584
        %804 = vmatpush1.msra.mxu0 %v583
        %805 = vmatprep.subr.mxu0 %v592
        %806 = vmatpush1.msra.mxu0 %v591
        %807 = vmatprep.subr.mxu0 %v600
        %808 = vmatpush1.msra.mxu0 %v599
        %809 = vmatprep.subr.mxu0 %v608
        %810 = vmatpush1.msra.mxu0 %v607
        %811 = vmatprep.subr.mxu0 %v616
        %812 = vmatpush1.msra.mxu0 %v615
        %813 = vmatprep.subr.mxu0 %v624
        %814 = vmatpush1.msra.mxu0 %v623
        %815 = vmatprep.subr.mxu0 %v632
        %816 = vmatpush1.msra.mxu0 %v631
        %817 = vmatprep.subr.mxu0 %v640
        %818 = vmatpush1.msra.mxu0 %v639
        %819 = vmatprep.subr.mxu0 %v648
        %820 = vmatpush1.msra.mxu0 %v647
        %821 = vmatprep.subr.mxu0 %v656
        %822 = vmatpush1.msra.mxu0 %v655
        %823 = vmatprep.subr.mxu0 %v664
        %824 = vmatpush1.msra.mxu0 %v663
        %825 = vmatprep.subr.mxu0 %v672
        %826 = vmatpush1.msra.mxu0 %v671
        %827 = vmatprep.subr.mxu0 %v680
        %828 = vmatpush1.msra.mxu0 %v679
        %829 = vmatprep.subr.mxu0 %v688
        %830 = vmatpush1.msra.mxu0 %v687
        %831 = vmatprep.mubr.f32.mxu0 %v694
        %832 = vmatmul.mubr.f32.gmra.mrb[0].mxu0 %v436
        %v833 = vpop.f32.mrb[0].mxu0
        %v834 = vadd.f32 0.0, %v833
        %v835 = vpop.f32.mrb[0].mxu0
        %v836 = vadd.f32 0.0, %v835
        %837 = vdwg.mxu0
        %838 = vmatprep.subr.mxu0 %v442
        %839 = vmatpush1.msra.mxu0 %v441
        %840 = vmatprep.subr.mxu0 %v450
        %841 = vmatpush1.msra.mxu0 %v449
        %842 = vmatprep.subr.mxu0 %v458
        %843 = vmatpush1.msra.mxu0 %v457
        %844 = vmatprep.subr.mxu0 %v466
        %845 = vmatpush1.msra.mxu0 %v465
        %846 = vmatprep.subr.mxu0 %v474
        %847 = vmatpush1.msra.mxu0 %v473
        %848 = vmatprep.subr.mxu0 %v482
        %849 = vmatpush1.msra.mxu0 %v481
        %850 = vmatprep.subr.mxu0 %v490
        %851 = vmatpush1.msra.mxu0 %v489
        %852 = vmatprep.subr.mxu0 %v498
        %853 = vmatpush1.msra.mxu0 %v497
        %854 = vmatprep.subr.mxu0 %v506
        %855 = vmatpush1.msra.mxu0 %v505
        %856 = vmatprep.subr.mxu0 %v514
        %857 = vmatpush1.msra.mxu0 %v513
        %858 = vmatprep.subr.mxu0 %v522
        %859 = vmatpush1.msra.mxu0 %v521
        %860 = vmatprep.subr.mxu0 %v530
        %861 = vmatpush1.msra.mxu0 %v529
        %862 = vmatprep.subr.mxu0 %v538
        %863 = vmatpush1.msra.mxu0 %v537
        %864 = vmatprep.subr.mxu0 %v546
        %865 = vmatpush1.msra.mxu0 %v545
        %866 = vmatprep.subr.mxu0 %v554
        %867 = vmatpush1.msra.mxu0 %v553
        %868 = vmatprep.subr.mxu0 %v562
        %869 = vmatpush1.msra.mxu0 %v561
        %870 = vmatprep.subr.mxu0 %v570
        %871 = vmatpush1.msra.mxu0 %v569
        %872 = vmatprep.subr.mxu0 %v578
        %873 = vmatpush1.msra.mxu0 %v577
        %874 = vmatprep.subr.mxu0 %v586
        %875 = vmatpush1.msra.mxu0 %v585
        %876 = vmatprep.subr.mxu0 %v594
        %877 = vmatpush1.msra.mxu0 %v593
        %878 = vmatprep.subr.mxu0 %v602
        %879 = vmatpush1.msra.mxu0 %v601
        %880 = vmatprep.subr.mxu0 %v610
        %881 = vmatpush1.msra.mxu0 %v609
        %882 = vmatprep.subr.mxu0 %v618
        %883 = vmatpush1.msra.mxu0 %v617
        %884 = vmatprep.subr.mxu0 %v626
        %885 = vmatpush1.msra.mxu0 %v625
        %886 = vmatprep.subr.mxu0 %v634
        %887 = vmatpush1.msra.mxu0 %v633
        %888 = vmatprep.subr.mxu0 %v642
        %889 = vmatpush1.msra.mxu0 %v641
        %890 = vmatprep.subr.mxu0 %v650
        %891 = vmatpush1.msra.mxu0 %v649
        %892 = vmatprep.subr.mxu0 %v658
        %893 = vmatpush1.msra.mxu0 %v657
        %894 = vmatprep.subr.mxu0 %v666
        %895 = vmatpush1.msra.mxu0 %v665
        %896 = vmatprep.subr.mxu0 %v674
        %897 = vmatpush1.msra.mxu0 %v673
        %898 = vmatprep.subr.mxu0 %v682
        %899 = vmatpush1.msra.mxu0 %v681
        %900 = vmatprep.subr.mxu0 %v690
        %901 = vmatpush1.msra.mxu0 %v689
        %902 = vmatprep.mubr.f32.mxu0 %v694
        %903 = vmatmul.mubr.f32.gmra.mrb[0].mxu0 %v436
        %v904 = vpop.f32.mrb[0].mxu0
        %v905 = vadd.f32 0.0, %v904
        %v906 = vpop.f32.mrb[0].mxu0
        %v907 = vadd.f32 0.0, %v906
        %908 = vdwg.mxu0
        %909 = vmatprep.subr.mxu0 %v444
        %910 = vmatpush1.msra.mxu0 %v443
        %911 = vmatprep.subr.mxu0 %v452
        %912 = vmatpush1.msra.mxu0 %v451
        %913 = vmatprep.subr.mxu0 %v460
        %914 = vmatpush1.msra.mxu0 %v459
        %915 = vmatprep.subr.mxu0 %v468
        %916 = vmatpush1.msra.mxu0 %v467
        %917 = vmatprep.subr.mxu0 %v476
        %918 = vmatpush1.msra.mxu0 %v475
        %919 = vmatprep.subr.mxu0 %v484
        %920 = vmatpush1.msra.mxu0 %v483
        %921 = vmatprep.subr.mxu0 %v492
        %922 = vmatpush1.msra.mxu0 %v491
        %923 = vmatprep.subr.mxu0 %v500
        %924 = vmatpush1.msra.mxu0 %v499
        %925 = vmatprep.subr.mxu0 %v508
        %926 = vmatpush1.msra.mxu0 %v507
        %927 = vmatprep.subr.mxu0 %v516
        %928 = vmatpush1.msra.mxu0 %v515
        %929 = vmatprep.subr.mxu0 %v524
        %930 = vmatpush1.msra.mxu0 %v523
        %931 = vmatprep.subr.mxu0 %v532
        %932 = vmatpush1.msra.mxu0 %v531
        %933 = vmatprep.subr.mxu0 %v540
        %934 = vmatpush1.msra.mxu0 %v539
        %935 = vmatprep.subr.mxu0 %v548
        %936 = vmatpush1.msra.mxu0 %v547
        %937 = vmatprep.subr.mxu0 %v556
        %938 = vmatpush1.msra.mxu0 %v555
        %939 = vmatprep.subr.mxu0 %v564
        %940 = vmatpush1.msra.mxu0 %v563
        %941 = vmatprep.subr.mxu0 %v572
        %942 = vmatpush1.msra.mxu0 %v571
        %943 = vmatprep.subr.mxu0 %v580
        %944 = vmatpush1.msra.mxu0 %v579
        %945 = vmatprep.subr.mxu0 %v588
        %946 = vmatpush1.msra.mxu0 %v587
        %947 = vmatprep.subr.mxu0 %v596
        %948 = vmatpush1.msra.mxu0 %v595
        %949 = vmatprep.subr.mxu0 %v604
        %950 = vmatpush1.msra.mxu0 %v603
        %951 = vmatprep.subr.mxu0 %v612
        %952 = vmatpush1.msra.mxu0 %v611
        %953 = vmatprep.subr.mxu0 %v620
        %954 = vmatpush1.msra.mxu0 %v619
        %955 = vmatprep.subr.mxu0 %v628
        %956 = vmatpush1.msra.mxu0 %v627
        %957 = vmatprep.subr.mxu0 %v636
        %958 = vmatpush1.msra.mxu0 %v635
        %959 = vmatprep.subr.mxu0 %v644
        %960 = vmatpush1.msra.mxu0 %v643
        %961 = vmatprep.subr.mxu0 %v652
        %962 = vmatpush1.msra.mxu0 %v651
        %963 = vmatprep.subr.mxu0 %v660
        %964 = vmatpush1.msra.mxu0 %v659
        %965 = vmatprep.subr.mxu0 %v668
        %966 = vmatpush1.msra.mxu0 %v667
        %967 = vmatprep.subr.mxu0 %v676
        %968 = vmatpush1.msra.mxu0 %v675
        %969 = vmatprep.subr.mxu0 %v684
        %970 = vmatpush1.msra.mxu0 %v683
        %971 = vmatprep.subr.mxu0 %v692
        %972 = vmatpush1.msra.mxu0 %v691
        %973 = vmatprep.mubr.f32.mxu0 %v694
        %974 = vmatmul.mubr.f32.gmra.mrb[0].mxu0 %v436
        %v975 = vpop.f32.mrb[0].mxu0
        %v976 = vadd.f32 0.0, %v975
        %v977 = vpop.f32.mrb[0].mxu0
        %v978 = vadd.f32 0.0, %v977
        %979 = vdwg.mxu0
        %v980 = vld [vmem:[%s2] sm:$0xff]
        %v981 = vld [vmem:[%s3] sm:$0xff]
        %982 = vrot.lane.b32.xlu0 %v763, 33
        %v983 = vpop.permute.xlu0 %982
        %984 = vrot.lane.b32.xlu0 %v765, 33
        %v985 = vpop.permute.xlu0 %984
        %986 = vrot.lane.b32.xlu0 %v834, 33
        %v987 = vpop.permute.xlu0 %986
        %988 = vrot.lane.b32.xlu0 %v836, 33
        %v989 = vpop.permute.xlu0 %988
        %990 = vrot.lane.b32.xlu0 %v905, 33
        %v991 = vpop.permute.xlu0 %990
        %992 = vrot.lane.b32.xlu0 %v907, 33
        %v993 = vpop.permute.xlu0 %992
        %994 = vrot.lane.b32.xlu0 %v976, 33
        %v995 = vpop.permute.xlu0 %994
        %996 = vrot.lane.b32.xlu0 %v978, 33
        %v997 = vpop.permute.xlu0 %996
        %vm998 = vcmp.lt.s32.totalorder %v268, 33
        %v999 = vsel %vm998, %v995, %v997
        %v1000 = vsel %vm998, %v993, %v995
        %v1001 = vsel %vm998, %v991, %v993
        %v1002 = vsel %vm998, %v989, %v991
        %v1003 = vsel %vm998, %v987, %v989
        %v1004 = vsel %vm998, %v985, %v987
        %v1005 = vsel %vm998, %v983, %v985
        %v1006 = vsel %vm998, %v997, %v983
        %v1007 = vsel %vm388, 1, 0
        %v1008 = vsel %vm389, 1, 0
        %v1009 = vsel %vm390, 1, 0
        %v1010 = vsel %vm391, 1, 0
        %v1011 = vsel %vm392, 1, 0
        %v1012 = vsel %vm393, 1, 0
        %v1013 = vsel %vm394, 1, 0
        %v1014 = vsel %vm395, 1, 0
        %vm1015 = vcmp.eq.s32.totalorder %v1007, 1
        %vm1016 = vcmp.eq.s32.totalorder %v1008, 1
        %vm1017 = vcmp.eq.s32.totalorder %v1009, 1
        %vm1018 = vcmp.eq.s32.totalorder %v1010, 1
        %vm1019 = vcmp.eq.s32.totalorder %v1011, 1
        %vm1020 = vcmp.eq.s32.totalorder %v1012, 1
        %vm1021 = vcmp.eq.s32.totalorder %v1013, 1
        %vm1022 = vcmp.eq.s32.totalorder %v1014, 1
        %v1023 = vsel %vm1015, %v1006, 0.0
        %v1024 = vsel %vm1016, %v1005, 0.0
        %v1025 = vsel %vm1017, %v1004, 0.0
        %v1026 = vsel %vm1018, %v1003, 0.0
        %v1027 = vsel %vm1019, %v1002, 0.0
        %v1028 = vsel %vm1020, %v1001, 0.0
        %v1029 = vsel %vm1021, %v1000, 0.0
        %v1030 = vsel %vm1022, %v999, 0.0
        %1031 = vst [vmem:[#allocation2] sm:$0xf] %v1023
        %1032 = vst [vmem:[#allocation2 + $0x8] sm:$0xf] %v1024
        %1033 = vst [vmem:[#allocation2 + $0x10] sm:$0xf] %v1025
        %1034 = vst [vmem:[#allocation2 + $0x18] sm:$0xf] %v1026
        %1035 = vst [vmem:[#allocation2 + $0x20] sm:$0xf] %v1027
        %1036 = vst [vmem:[#allocation2 + $0x28] sm:$0xf] %v1028
        %1037 = vst [vmem:[#allocation2 + $0x30] sm:$0xf] %v1029
        %1038 = vst [vmem:[#allocation2 + $0x38] sm:$0xf] %v1030
        %1039 = vrot.lane.b32.xlu0 %v763, 32
        %v1040 = vpop.permute.xlu0 %1039
        %1041 = vrot.lane.b32.xlu0 %v765, 32
        %v1042 = vpop.permute.xlu0 %1041
        %1043 = vrot.lane.b32.xlu0 %v834, 32
        %v1044 = vpop.permute.xlu0 %1043
        %1045 = vrot.lane.b32.xlu0 %v836, 32
        %v1046 = vpop.permute.xlu0 %1045
        %1047 = vrot.lane.b32.xlu0 %v905, 32
        %v1048 = vpop.permute.xlu0 %1047
        %1049 = vrot.lane.b32.xlu0 %v907, 32
        %v1050 = vpop.permute.xlu0 %1049
        %1051 = vrot.lane.b32.xlu0 %v976, 32
        %v1052 = vpop.permute.xlu0 %1051
        %1053 = vrot.lane.b32.xlu0 %v978, 32
        %v1054 = vpop.permute.xlu0 %1053
        %vm1055 = vcmp.lt.s32.totalorder %v268, 32
        %v1056 = vsel %vm1055, %v1052, %v1054
        %v1057 = vsel %vm1055, %v1050, %v1052
        %v1058 = vsel %vm1055, %v1048, %v1050
        %v1059 = vsel %vm1055, %v1046, %v1048
        %v1060 = vsel %vm1055, %v1044, %v1046
        %v1061 = vsel %vm1055, %v1042, %v1044
        %v1062 = vsel %vm1055, %v1040, %v1042
        %v1063 = vsel %vm1055, %v1054, %v1040
        %v1064 = vsel %vm372, 1, 0
        %v1065 = vsel %vm373, 1, 0
        %v1066 = vsel %vm374, 1, 0
        %v1067 = vsel %vm375, 1, 0
        %v1068 = vsel %vm376, 1, 0
        %v1069 = vsel %vm377, 1, 0
        %v1070 = vsel %vm378, 1, 0
        %v1071 = vsel %vm379, 1, 0
        %vm1072 = vcmp.eq.s32.totalorder %v1064, 1
        %vm1073 = vcmp.eq.s32.totalorder %v1065, 1
        %vm1074 = vcmp.eq.s32.totalorder %v1066, 1
        %vm1075 = vcmp.eq.s32.totalorder %v1067, 1
        %vm1076 = vcmp.eq.s32.totalorder %v1068, 1
        %vm1077 = vcmp.eq.s32.totalorder %v1069, 1
        %vm1078 = vcmp.eq.s32.totalorder %v1070, 1
        %vm1079 = vcmp.eq.s32.totalorder %v1071, 1
        %v1080 = vsel %vm1072, %v1063, 0.0
        %v1081 = vsel %vm1073, %v1062, 0.0
        %v1082 = vsel %vm1074, %v1061, 0.0
        %v1083 = vsel %vm1075, %v1060, 0.0
        %v1084 = vsel %vm1076, %v1059, 0.0
        %v1085 = vsel %vm1077, %v1058, 0.0
        %v1086 = vsel %vm1078, %v1057, 0.0
        %v1087 = vsel %vm1079, %v1056, 0.0
        %v1096 = vrot.slane %v1080, 4
        %v1097 = vrot.slane %v1081, 4
        %v1098 = vrot.slane %v1082, 4
        %v1099 = vrot.slane %v1083, 4
        %v1100 = vrot.slane %v1084, 4
        %v1101 = vrot.slane %v1085, 4
        %v1102 = vrot.slane %v1086, 4
        %v1103 = vrot.slane %v1087, 4
        %1112 = vst [vmem:[#allocation2] sm:$0xf0] %v1096
        %1113 = vst [vmem:[#allocation2 + $0x8] sm:$0xf0] %v1097
        %1114 = vst [vmem:[#allocation2 + $0x10] sm:$0xf0] %v1098
        %1115 = vst [vmem:[#allocation2 + $0x18] sm:$0xf0] %v1099
        %1116 = vst [vmem:[#allocation2 + $0x20] sm:$0xf0] %v1100
        %1117 = vst [vmem:[#allocation2 + $0x28] sm:$0xf0] %v1101
        %1118 = vst [vmem:[#allocation2 + $0x30] sm:$0xf0] %v1102
        %1119 = vst [vmem:[#allocation2 + $0x38] sm:$0xf0] %v1103
        %1120 = vrot.lane.b32.xlu0 %v763, 31
        %v1121 = vpop.permute.xlu0 %1120
        %1122 = vrot.lane.b32.xlu0 %v765, 31
        %v1123 = vpop.permute.xlu0 %1122
        %1124 = vrot.lane.b32.xlu0 %v834, 31
        %v1125 = vpop.permute.xlu0 %1124
        %1126 = vrot.lane.b32.xlu0 %v836, 31
        %v1127 = vpop.permute.xlu0 %1126
        %1128 = vrot.lane.b32.xlu0 %v905, 31
        %v1129 = vpop.permute.xlu0 %1128
        %1130 = vrot.lane.b32.xlu0 %v907, 31
        %v1131 = vpop.permute.xlu0 %1130
        %1132 = vrot.lane.b32.xlu0 %v976, 31
        %v1133 = vpop.permute.xlu0 %1132
        %1134 = vrot.lane.b32.xlu0 %v978, 31
        %v1135 = vpop.permute.xlu0 %1134
        %vm1136 = vcmp.lt.s32.totalorder %v268, 31
        %v1137 = vsel %vm1136, %v1133, %v1135
        %v1138 = vsel %vm1136, %v1131, %v1133
        %v1139 = vsel %vm1136, %v1129, %v1131
        %v1140 = vsel %vm1136, %v1127, %v1129
        %v1141 = vsel %vm1136, %v1125, %v1127
        %v1142 = vsel %vm1136, %v1123, %v1125
        %v1143 = vsel %vm1136, %v1121, %v1123
        %v1144 = vsel %vm1136, %v1135, %v1121
        %v1145 = vsel %vm404, 1, 0
        %v1146 = vsel %vm405, 1, 0
        %v1147 = vsel %vm406, 1, 0
        %v1148 = vsel %vm407, 1, 0
        %v1149 = vsel %vm408, 1, 0
        %v1150 = vsel %vm409, 1, 0
        %v1151 = vsel %vm410, 1, 0
        %v1152 = vsel %vm411, 1, 0
        %vm1153 = vcmp.eq.s32.totalorder %v1145, 1
        %vm1154 = vcmp.eq.s32.totalorder %v1146, 1
        %vm1155 = vcmp.eq.s32.totalorder %v1147, 1
        %vm1156 = vcmp.eq.s32.totalorder %v1148, 1
        %vm1157 = vcmp.eq.s32.totalorder %v1149, 1
        %vm1158 = vcmp.eq.s32.totalorder %v1150, 1
        %vm1159 = vcmp.eq.s32.totalorder %v1151, 1
        %vm1160 = vcmp.eq.s32.totalorder %v1152, 1
        %v1161 = vsel %vm1153, %v1144, 0.0
        %v1162 = vsel %vm1154, %v1143, 0.0
        %v1163 = vsel %vm1155, %v1142, 0.0
        %v1164 = vsel %vm1156, %v1141, 0.0
        %v1165 = vsel %vm1157, %v1140, 0.0
        %v1166 = vsel %vm1158, %v1139, 0.0
        %v1167 = vsel %vm1159, %v1138, 0.0
        %v1168 = vsel %vm1160, %v1137, 0.0
        %1169 = vst [vmem:[#allocation2 + $0x40] sm:$0xf] %v1161
        %1170 = vst [vmem:[#allocation2 + $0x48] sm:$0xf] %v1162
        %1171 = vst [vmem:[#allocation2 + $0x50] sm:$0xf] %v1163
        %1172 = vst [vmem:[#allocation2 + $0x58] sm:$0xf] %v1164
        %1173 = vst [vmem:[#allocation2 + $0x60] sm:$0xf] %v1165
        %1174 = vst [vmem:[#allocation2 + $0x68] sm:$0xf] %v1166
        %1175 = vst [vmem:[#allocation2 + $0x70] sm:$0xf] %v1167
        %1176 = vst [vmem:[#allocation2 + $0x78] sm:$0xf] %v1168
        %1177 = vrot.lane.b32.xlu0 %v763, 1
        %v1178 = vpop.permute.xlu0 %1177
        %1179 = vrot.lane.b32.xlu0 %v765, 1
        %v1180 = vpop.permute.xlu0 %1179
        %1181 = vrot.lane.b32.xlu0 %v834, 1
        %v1182 = vpop.permute.xlu0 %1181
        %1183 = vrot.lane.b32.xlu0 %v836, 1
        %v1184 = vpop.permute.xlu0 %1183
        %1185 = vrot.lane.b32.xlu0 %v905, 1
        %v1186 = vpop.permute.xlu0 %1185
        %1187 = vrot.lane.b32.xlu0 %v907, 1
        %v1188 = vpop.permute.xlu0 %1187
        %1189 = vrot.lane.b32.xlu0 %v976, 1
        %v1190 = vpop.permute.xlu0 %1189
        %1191 = vrot.lane.b32.xlu0 %v978, 1
        %v1192 = vpop.permute.xlu0 %1191
        %vm1193 = vcmp.lt.s32.totalorder %v268, 1
        %v1194 = vsel %vm1193, %v1190, %v1192
        %v1195 = vsel %vm1193, %v1188, %v1190
        %v1196 = vsel %vm1193, %v1186, %v1188
        %v1197 = vsel %vm1193, %v1184, %v1186
        %v1198 = vsel %vm1193, %v1182, %v1184
        %v1199 = vsel %vm1193, %v1180, %v1182
        %v1200 = vsel %vm1193, %v1178, %v1180
        %v1201 = vsel %vm1193, %v1192, %v1178
        %v1202 = vsel %vm380, 1, 0
        %v1203 = vsel %vm381, 1, 0
        %v1204 = vsel %vm382, 1, 0
        %v1205 = vsel %vm383, 1, 0
        %v1206 = vsel %vm384, 1, 0
        %v1207 = vsel %vm385, 1, 0
        %v1208 = vsel %vm386, 1, 0
        %v1209 = vsel %vm387, 1, 0
        %vm1210 = vcmp.eq.s32.totalorder %v1202, 1
        %vm1211 = vcmp.eq.s32.totalorder %v1203, 1
        %vm1212 = vcmp.eq.s32.totalorder %v1204, 1
        %vm1213 = vcmp.eq.s32.totalorder %v1205, 1
        %vm1214 = vcmp.eq.s32.totalorder %v1206, 1
        %vm1215 = vcmp.eq.s32.totalorder %v1207, 1
        %vm1216 = vcmp.eq.s32.totalorder %v1208, 1
        %vm1217 = vcmp.eq.s32.totalorder %v1209, 1
        %v1218 = vsel %vm1210, %v1201, 0.0
        %v1219 = vsel %vm1211, %v1200, 0.0
        %v1220 = vsel %vm1212, %v1199, 0.0
        %v1221 = vsel %vm1213, %v1198, 0.0
        %v1222 = vsel %vm1214, %v1197, 0.0
        %v1223 = vsel %vm1215, %v1196, 0.0
        %v1224 = vsel %vm1216, %v1195, 0.0
        %v1225 = vsel %vm1217, %v1194, 0.0
        %v1234 = vrot.slane %v1218, 4
        %v1235 = vrot.slane %v1219, 4
        %v1236 = vrot.slane %v1220, 4
        %v1237 = vrot.slane %v1221, 4
        %v1238 = vrot.slane %v1222, 4
        %v1239 = vrot.slane %v1223, 4
        %v1240 = vrot.slane %v1224, 4
        %v1241 = vrot.slane %v1225, 4
        %1250 = vst [vmem:[#allocation2 + $0x40] sm:$0xf0] %v1234
        %1251 = vst [vmem:[#allocation2 + $0x48] sm:$0xf0] %v1235
        %1252 = vst [vmem:[#allocation2 + $0x50] sm:$0xf0] %v1236
        %1253 = vst [vmem:[#allocation2 + $0x58] sm:$0xf0] %v1237
        %1254 = vst [vmem:[#allocation2 + $0x60] sm:$0xf0] %v1238
        %1255 = vst [vmem:[#allocation2 + $0x68] sm:$0xf0] %v1239
        %1256 = vst [vmem:[#allocation2 + $0x70] sm:$0xf0] %v1240
        %1257 = vst [vmem:[#allocation2 + $0x78] sm:$0xf0] %v1241
        %1258 = vst [vmem:[#allocation2 + $0x80] sm:$0xf] %v763
        %1259 = vst [vmem:[#allocation2 + $0x88] sm:$0xf] %v765
        %1260 = vst [vmem:[#allocation2 + $0x90] sm:$0xf] %v834
        %1261 = vst [vmem:[#allocation2 + $0x98] sm:$0xf] %v836
        %1262 = vst [vmem:[#allocation2 + $0xa0] sm:$0xf] %v905
        %1263 = vst [vmem:[#allocation2 + $0xa8] sm:$0xf] %v907
        %1264 = vst [vmem:[#allocation2 + $0xb0] sm:$0xf] %v976
        %1265 = vst [vmem:[#allocation2 + $0xb8] sm:$0xf] %v978
        %1266 = vrot.lane.b32.xlu0 %v763, 127
        %v1267 = vpop.permute.xlu0 %1266
        %1268 = vrot.lane.b32.xlu0 %v765, 127
        %v1269 = vpop.permute.xlu0 %1268
        %1270 = vrot.lane.b32.xlu0 %v834, 127
        %v1271 = vpop.permute.xlu0 %1270
        %1272 = vrot.lane.b32.xlu0 %v836, 127
        %v1273 = vpop.permute.xlu0 %1272
        %1274 = vrot.lane.b32.xlu0 %v905, 127
        %v1275 = vpop.permute.xlu0 %1274
        %1276 = vrot.lane.b32.xlu0 %v907, 127
        %v1277 = vpop.permute.xlu0 %1276
        %1278 = vrot.lane.b32.xlu0 %v976, 127
        %v1279 = vpop.permute.xlu0 %1278
        %1280 = vrot.lane.b32.xlu0 %v978, 127
        %v1281 = vpop.permute.xlu0 %1280
        %vm1282 = vcmp.lt.s32.totalorder %v268, 127
        %v1283 = vsel %vm1282, %v1279, %v1281
        %v1284 = vsel %vm1282, %v1277, %v1279
        %v1285 = vsel %vm1282, %v1275, %v1277
        %v1286 = vsel %vm1282, %v1273, %v1275
        %v1287 = vsel %vm1282, %v1271, %v1273
        %v1288 = vsel %vm1282, %v1269, %v1271
        %v1289 = vsel %vm1282, %v1267, %v1269
        %v1290 = vsel %vm1282, %v1281, %v1267
        %v1291 = vsel %vm396, 1, 0
        %v1292 = vsel %vm397, 1, 0
        %v1293 = vsel %vm398, 1, 0
        %v1294 = vsel %vm399, 1, 0
        %v1295 = vsel %vm400, 1, 0
        %v1296 = vsel %vm401, 1, 0
        %v1297 = vsel %vm402, 1, 0
        %v1298 = vsel %vm403, 1, 0
        %vm1299 = vcmp.eq.s32.totalorder %v1291, 1
        %vm1300 = vcmp.eq.s32.totalorder %v1292, 1
        %vm1301 = vcmp.eq.s32.totalorder %v1293, 1
        %vm1302 = vcmp.eq.s32.totalorder %v1294, 1
        %vm1303 = vcmp.eq.s32.totalorder %v1295, 1
        %vm1304 = vcmp.eq.s32.totalorder %v1296, 1
        %vm1305 = vcmp.eq.s32.totalorder %v1297, 1
        %vm1306 = vcmp.eq.s32.totalorder %v1298, 1
        %v1307 = vsel %vm1299, %v1289, 0.0
        %v1308 = vsel %vm1300, %v1288, 0.0
        %v1309 = vsel %vm1301, %v1287, 0.0
        %v1310 = vsel %vm1302, %v1286, 0.0
        %v1311 = vsel %vm1303, %v1285, 0.0
        %v1312 = vsel %vm1304, %v1284, 0.0
        %v1313 = vsel %vm1305, %v1283, 0.0
        %v1314 = vsel %vm1306, %v1290, 0.0
        %v1323 = vrot.slane %v1307, 4
        %v1324 = vrot.slane %v1308, 4
        %v1325 = vrot.slane %v1309, 4
        %v1326 = vrot.slane %v1310, 4
        %v1327 = vrot.slane %v1311, 4
        %v1328 = vrot.slane %v1312, 4
        %v1329 = vrot.slane %v1313, 4
        %v1330 = vrot.slane %v1314, 4
        %1339 = vst [vmem:[#allocation2 + $0x80] sm:$0xf0] %v1323
        %1340 = vst [vmem:[#allocation2 + $0x88] sm:$0xf0] %v1324
        %1341 = vst [vmem:[#allocation2 + $0x90] sm:$0xf0] %v1325
        %1342 = vst [vmem:[#allocation2 + $0x98] sm:$0xf0] %v1326
        %1343 = vst [vmem:[#allocation2 + $0xa0] sm:$0xf0] %v1327
        %1344 = vst [vmem:[#allocation2 + $0xa8] sm:$0xf0] %v1328
        %1345 = vst [vmem:[#allocation2 + $0xb0] sm:$0xf0] %v1329
        %1346 = vst [vmem:[#allocation2 + $0xb8] sm:$0xf0] %v1330
        %1347 = vrot.lane.b32.xlu0 %v763, 97
        %v1348 = vpop.permute.xlu0 %1347
        %1349 = vrot.lane.b32.xlu0 %v765, 97
        %v1350 = vpop.permute.xlu0 %1349
        %1351 = vrot.lane.b32.xlu0 %v834, 97
        %v1352 = vpop.permute.xlu0 %1351
        %1353 = vrot.lane.b32.xlu0 %v836, 97
        %v1354 = vpop.permute.xlu0 %1353
        %1355 = vrot.lane.b32.xlu0 %v905, 97
        %v1356 = vpop.permute.xlu0 %1355
        %1357 = vrot.lane.b32.xlu0 %v907, 97
        %v1358 = vpop.permute.xlu0 %1357
        %1359 = vrot.lane.b32.xlu0 %v976, 97
        %v1360 = vpop.permute.xlu0 %1359
        %1361 = vrot.lane.b32.xlu0 %v978, 97
        %v1362 = vpop.permute.xlu0 %1361
        %vm1363 = vcmp.lt.s32.totalorder %v268, 97
        %v1364 = vsel %vm1363, %v1360, %v1362
        %v1365 = vsel %vm1363, %v1358, %v1360
        %v1366 = vsel %vm1363, %v1356, %v1358
        %v1367 = vsel %vm1363, %v1354, %v1356
        %v1368 = vsel %vm1363, %v1352, %v1354
        %v1369 = vsel %vm1363, %v1350, %v1352
        %v1370 = vsel %vm1363, %v1348, %v1350
        %v1371 = vsel %vm1363, %v1362, %v1348
        %v1372 = vsel %vm420, 1, 0
        %v1373 = vsel %vm421, 1, 0
        %v1374 = vsel %vm422, 1, 0
        %v1375 = vsel %vm423, 1, 0
        %v1376 = vsel %vm424, 1, 0
        %v1377 = vsel %vm425, 1, 0
        %v1378 = vsel %vm426, 1, 0
        %v1379 = vsel %vm427, 1, 0
        %vm1380 = vcmp.eq.s32.totalorder %v1372, 1
        %vm1381 = vcmp.eq.s32.totalorder %v1373, 1
        %vm1382 = vcmp.eq.s32.totalorder %v1374, 1
        %vm1383 = vcmp.eq.s32.totalorder %v1375, 1
        %vm1384 = vcmp.eq.s32.totalorder %v1376, 1
        %vm1385 = vcmp.eq.s32.totalorder %v1377, 1
        %vm1386 = vcmp.eq.s32.totalorder %v1378, 1
        %vm1387 = vcmp.eq.s32.totalorder %v1379, 1
        %v1388 = vsel %vm1380, %v1370, 0.0
        %v1389 = vsel %vm1381, %v1369, 0.0
        %v1390 = vsel %vm1382, %v1368, 0.0
        %v1391 = vsel %vm1383, %v1367, 0.0
        %v1392 = vsel %vm1384, %v1366, 0.0
        %v1393 = vsel %vm1385, %v1365, 0.0
        %v1394 = vsel %vm1386, %v1364, 0.0
        %v1395 = vsel %vm1387, %v1371, 0.0
        %1396 = vst [vmem:[#allocation2 + $0xc0] sm:$0xf] %v1388
        %1397 = vst [vmem:[#allocation2 + $0xc8] sm:$0xf] %v1389
        %1398 = vst [vmem:[#allocation2 + $0xd0] sm:$0xf] %v1390
        %1399 = vst [vmem:[#allocation2 + $0xd8] sm:$0xf] %v1391
        %1400 = vst [vmem:[#allocation2 + $0xe0] sm:$0xf] %v1392
        %1401 = vst [vmem:[#allocation2 + $0xe8] sm:$0xf] %v1393
        %1402 = vst [vmem:[#allocation2 + $0xf0] sm:$0xf] %v1394
        %1403 = vst [vmem:[#allocation2 + $0xf8] sm:$0xf] %v1395
        %1404 = vrot.lane.b32.xlu0 %v763, 96
        %v1405 = vpop.permute.xlu0 %1404
        %1406 = vrot.lane.b32.xlu0 %v765, 96
        %v1407 = vpop.permute.xlu0 %1406
        %1408 = vrot.lane.b32.xlu0 %v834, 96
        %v1409 = vpop.permute.xlu0 %1408
        %1410 = vrot.lane.b32.xlu0 %v836, 96
        %v1411 = vpop.permute.xlu0 %1410
        %1412 = vrot.lane.b32.xlu0 %v905, 96
        %v1413 = vpop.permute.xlu0 %1412
        %1414 = vrot.lane.b32.xlu0 %v907, 96
        %v1415 = vpop.permute.xlu0 %1414
        %1416 = vrot.lane.b32.xlu0 %v976, 96
        %v1417 = vpop.permute.xlu0 %1416
        %1418 = vrot.lane.b32.xlu0 %v978, 96
        %v1419 = vpop.permute.xlu0 %1418
        %vm1420 = vcmp.lt.s32.totalorder %v268, 96
        %v1421 = vsel %vm1420, %v1417, %v1419
        %v1422 = vsel %vm1420, %v1415, %v1417
        %v1423 = vsel %vm1420, %v1413, %v1415
        %v1424 = vsel %vm1420, %v1411, %v1413
        %v1425 = vsel %vm1420, %v1409, %v1411
        %v1426 = vsel %vm1420, %v1407, %v1409
        %v1427 = vsel %vm1420, %v1405, %v1407
        %v1428 = vsel %vm1420, %v1419, %v1405
        %v1429 = vsel %vm412, 1, 0
        %v1430 = vsel %vm413, 1, 0
        %v1431 = vsel %vm414, 1, 0
        %v1432 = vsel %vm415, 1, 0
        %v1433 = vsel %vm416, 1, 0
        %v1434 = vsel %vm417, 1, 0
        %v1435 = vsel %vm418, 1, 0
        %v1436 = vsel %vm419, 1, 0
        %vm1437 = vcmp.eq.s32.totalorder %v1429, 1
        %vm1438 = vcmp.eq.s32.totalorder %v1430, 1
        %vm1439 = vcmp.eq.s32.totalorder %v1431, 1
        %vm1440 = vcmp.eq.s32.totalorder %v1432, 1
        %vm1441 = vcmp.eq.s32.totalorder %v1433, 1
        %vm1442 = vcmp.eq.s32.totalorder %v1434, 1
        %vm1443 = vcmp.eq.s32.totalorder %v1435, 1
        %vm1444 = vcmp.eq.s32.totalorder %v1436, 1
        %v1445 = vsel %vm1437, %v1427, 0.0
        %v1446 = vsel %vm1438, %v1426, 0.0
        %v1447 = vsel %vm1439, %v1425, 0.0
        %v1448 = vsel %vm1440, %v1424, 0.0
        %v1449 = vsel %vm1441, %v1423, 0.0
        %v1450 = vsel %vm1442, %v1422, 0.0
        %v1451 = vsel %vm1443, %v1421, 0.0
        %v1452 = vsel %vm1444, %v1428, 0.0
        %v1461 = vrot.slane %v1445, 4
        %v1462 = vrot.slane %v1446, 4
        %v1463 = vrot.slane %v1447, 4
        %v1464 = vrot.slane %v1448, 4
        %v1465 = vrot.slane %v1449, 4
        %v1466 = vrot.slane %v1450, 4
        %v1467 = vrot.slane %v1451, 4
        %v1468 = vrot.slane %v1452, 4
        %1477 = vst [vmem:[#allocation2 + $0xc0] sm:$0xf0] %v1461
        %1478 = vst [vmem:[#allocation2 + $0xc8] sm:$0xf0] %v1462
        %1479 = vst [vmem:[#allocation2 + $0xd0] sm:$0xf0] %v1463
        %1480 = vst [vmem:[#allocation2 + $0xd8] sm:$0xf0] %v1464
        %1481 = vst [vmem:[#allocation2 + $0xe0] sm:$0xf0] %v1465
        %1482 = vst [vmem:[#allocation2 + $0xe8] sm:$0xf0] %v1466
        %1483 = vst [vmem:[#allocation2 + $0xf0] sm:$0xf0] %v1467
        %1484 = vst [vmem:[#allocation2 + $0xf8] sm:$0xf0] %v1468
        %1485 = vrot.lane.b32.xlu0 %v763, 95
        %v1486 = vpop.permute.xlu0 %1485
        %1487 = vrot.lane.b32.xlu0 %v765, 95
        %v1488 = vpop.permute.xlu0 %1487
        %1489 = vrot.lane.b32.xlu0 %v834, 95
        %v1490 = vpop.permute.xlu0 %1489
        %1491 = vrot.lane.b32.xlu0 %v836, 95
        %v1492 = vpop.permute.xlu0 %1491
        %1493 = vrot.lane.b32.xlu0 %v905, 95
        %v1494 = vpop.permute.xlu0 %1493
        %1495 = vrot.lane.b32.xlu0 %v907, 95
        %v1496 = vpop.permute.xlu0 %1495
        %1497 = vrot.lane.b32.xlu0 %v976, 95
        %v1498 = vpop.permute.xlu0 %1497
        %1499 = vrot.lane.b32.xlu0 %v978, 95
        %v1500 = vpop.permute.xlu0 %1499
        %vm1501 = vcmp.lt.s32.totalorder %v268, 95
        %v1502 = vsel %vm1501, %v1498, %v1500
        %v1503 = vsel %vm1501, %v1496, %v1498
        %v1504 = vsel %vm1501, %v1494, %v1496
        %v1505 = vsel %vm1501, %v1492, %v1494
        %v1506 = vsel %vm1501, %v1490, %v1492
        %v1507 = vsel %vm1501, %v1488, %v1490
        %v1508 = vsel %vm1501, %v1486, %v1488
        %v1509 = vsel %vm1501, %v1500, %v1486
        %v1510 = vsel %vm428, 1, 0
        %v1511 = vsel %vm429, 1, 0
        %v1512 = vsel %vm430, 1, 0
        %v1513 = vsel %vm431, 1, 0
        %v1514 = vsel %vm432, 1, 0
        %v1515 = vsel %vm433, 1, 0
        %v1516 = vsel %vm434, 1, 0
        %v1517 = vsel %vm435, 1, 0
        %vm1518 = vcmp.eq.s32.totalorder %v1510, 1
        %vm1519 = vcmp.eq.s32.totalorder %v1511, 1
        %vm1520 = vcmp.eq.s32.totalorder %v1512, 1
        %vm1521 = vcmp.eq.s32.totalorder %v1513, 1
        %vm1522 = vcmp.eq.s32.totalorder %v1514, 1
        %vm1523 = vcmp.eq.s32.totalorder %v1515, 1
        %vm1524 = vcmp.eq.s32.totalorder %v1516, 1
        %vm1525 = vcmp.eq.s32.totalorder %v1517, 1
        %v1526 = vsel %vm1518, %v1508, 0.0
        %v1527 = vsel %vm1519, %v1507, 0.0
        %v1528 = vsel %vm1520, %v1506, 0.0
        %v1529 = vsel %vm1521, %v1505, 0.0
        %v1530 = vsel %vm1522, %v1504, 0.0
        %v1531 = vsel %vm1523, %v1503, 0.0
        %v1532 = vsel %vm1524, %v1502, 0.0
        %v1533 = vsel %vm1525, %v1509, 0.0
        %1534 = vst [vmem:[#allocation2 + $0x100] sm:$0xf] %v1526
        %1535 = vst [vmem:[#allocation2 + $0x108] sm:$0xf] %v1527
        %1536 = vst [vmem:[#allocation2 + $0x110] sm:$0xf] %v1528
        %1537 = vst [vmem:[#allocation2 + $0x118] sm:$0xf] %v1529
        %1538 = vst [vmem:[#allocation2 + $0x120] sm:$0xf] %v1530
        %1539 = vst [vmem:[#allocation2 + $0x128] sm:$0xf] %v1531
        %1540 = vst [vmem:[#allocation2 + $0x130] sm:$0xf] %v1532
        %1541 = vst [vmem:[#allocation2 + $0x138] sm:$0xf] %v1533
        %v1542 = vld [vmem:[#allocation2] sm:$0xff]
        %v1543 = vld [vmem:[#allocation2 + $0x8] sm:$0xff]
        %v1544 = vld [vmem:[#allocation2 + $0x10] sm:$0xff]
        %v1545 = vld [vmem:[#allocation2 + $0x18] sm:$0xff]
        %v1546 = vld [vmem:[#allocation2 + $0x20] sm:$0xff]
        %v1547 = vld [vmem:[#allocation2 + $0x28] sm:$0xff]
        %v1548 = vld [vmem:[#allocation2 + $0x30] sm:$0xff]
        %v1549 = vld [vmem:[#allocation2 + $0x38] sm:$0xff]
        %v1550 = vld [vmem:[#allocation2 + $0x40] sm:$0xff]
        %v1551 = vld [vmem:[#allocation2 + $0x48] sm:$0xff]
        %v1552 = vld [vmem:[#allocation2 + $0x50] sm:$0xff]
        %v1553 = vld [vmem:[#allocation2 + $0x58] sm:$0xff]
        %v1554 = vld [vmem:[#allocation2 + $0x60] sm:$0xff]
        %v1555 = vld [vmem:[#allocation2 + $0x68] sm:$0xff]
        %v1556 = vld [vmem:[#allocation2 + $0x70] sm:$0xff]
        %v1557 = vld [vmem:[#allocation2 + $0x78] sm:$0xff]
        %v1558 = vld [vmem:[#allocation2 + $0x80] sm:$0xff]
        %v1559 = vld [vmem:[#allocation2 + $0x88] sm:$0xff]
        %v1560 = vld [vmem:[#allocation2 + $0x90] sm:$0xff]
        %v1561 = vld [vmem:[#allocation2 + $0x98] sm:$0xff]
        %v1562 = vld [vmem:[#allocation2 + $0xa0] sm:$0xff]
        %v1563 = vld [vmem:[#allocation2 + $0xa8] sm:$0xff]
        %v1564 = vld [vmem:[#allocation2 + $0xb0] sm:$0xff]
        %v1565 = vld [vmem:[#allocation2 + $0xb8] sm:$0xff]
        %v1566 = vld [vmem:[#allocation2 + $0xc0] sm:$0xff]
        %v1567 = vld [vmem:[#allocation2 + $0xc8] sm:$0xff]
        %v1568 = vld [vmem:[#allocation2 + $0xd0] sm:$0xff]
        %v1569 = vld [vmem:[#allocation2 + $0xd8] sm:$0xff]
        %v1570 = vld [vmem:[#allocation2 + $0xe0] sm:$0xff]
        %v1571 = vld [vmem:[#allocation2 + $0xe8] sm:$0xff]
        %v1572 = vld [vmem:[#allocation2 + $0xf0] sm:$0xff]
        %v1573 = vld [vmem:[#allocation2 + $0xf8] sm:$0xff]
        %v1574 = vld [vmem:[#allocation2 + $0x100] sm:$0xf]
        %v1575 = vld [vmem:[#allocation2 + $0x108] sm:$0xf]
        %v1576 = vld [vmem:[#allocation2 + $0x110] sm:$0xf]
        %v1577 = vld [vmem:[#allocation2 + $0x118] sm:$0xf]
        %v1578 = vld [vmem:[#allocation2 + $0x120] sm:$0xf]
        %v1579 = vld [vmem:[#allocation2 + $0x128] sm:$0xf]
        %v1580 = vld [vmem:[#allocation2 + $0x130] sm:$0xf]
        %v1581 = vld [vmem:[#allocation2 + $0x138] sm:$0xf]
        %1583 = vset.pattern.permute.xlu0 0
        %1584 = vperm.xlu0 %1583, %v981
        %v1585 = vpop.permute.xlu0 %1584
        %vm1587 = vcmask 293888
        %v1589 = vsel %vm1587, %v980, 0
        %vm1591 = vcmask 1043456
        %v1593 = vsel %vm1591, %v1574, 0
        %v1596 = vsel %vm1591, %v1575, 0
        %v1599 = vsel %vm1591, %v1576, 0
        %v1602 = vsel %vm1591, %v1577, 0
        %v1605 = vsel %vm1591, %v1578, 0
        %v1608 = vsel %vm1591, %v1579, 0
        %v1611 = vsel %vm1591, %v1580, 0
        %v1614 = vsel %vm1591, %v1581, 0
        %1616 = vmatprep.subr.mxu0 %v1543
        %1617 = vmatpush1.msra.mxu0 %v1542
        %1618 = vmatprep.subr.mxu0 %v1551
        %1619 = vmatpush1.msra.mxu0 %v1550
        %1620 = vmatprep.subr.mxu0 %v1559
        %1621 = vmatpush1.msra.mxu0 %v1558
        %1622 = vmatprep.subr.mxu0 %v1567
        %1623 = vmatpush1.msra.mxu0 %v1566
        %1624 = vmatprep.subr.mxu0 %v1596
        %1625 = vmatpush1.msra.mxu0 %v1593
        %1626 = vmatprep.subr.mxu0 0.0
        %1627 = vmatpush1.msra.mxu0 0.0
        %1628 = vmatprep.subr.mxu0 0.0
        %1629 = vmatpush1.msra.mxu0 0.0
        %1630 = vmatprep.subr.mxu0 0.0
        %1631 = vmatpush1.msra.mxu0 0.0
        %1632 = vmatprep.subr.mxu0 0.0
        %1633 = vmatpush1.msra.mxu0 0.0
        %1634 = vmatprep.subr.mxu0 0.0
        %1635 = vmatpush1.msra.mxu0 0.0
        %1636 = vmatprep.subr.mxu0 0.0
        %1637 = vmatpush1.msra.mxu0 0.0
        %1638 = vmatprep.subr.mxu0 0.0
        %1639 = vmatpush1.msra.mxu0 0.0
        %1640 = vmatprep.subr.mxu0 0.0
        %1641 = vmatpush1.msra.mxu0 0.0
        %1642 = vmatprep.subr.mxu0 0.0
        %1643 = vmatpush1.msra.mxu0 0.0
        %1644 = vmatprep.subr.mxu0 0.0
        %1645 = vmatpush1.msra.mxu0 0.0
        %1646 = vmatprep.subr.mxu0 0.0
        %1647 = vmatpush1.msra.mxu0 0.0
        %1648 = vmatprep.subr.mxu0 0.0
        %1649 = vmatpush1.msra.mxu0 0.0
        %1650 = vmatprep.subr.mxu0 0.0
        %1651 = vmatpush1.msra.mxu0 0.0
        %1652 = vmatprep.subr.mxu0 0.0
        %1653 = vmatpush1.msra.mxu0 0.0
        %1654 = vmatprep.subr.mxu0 0.0
        %1655 = vmatpush1.msra.mxu0 0.0
        %1656 = vmatprep.subr.mxu0 0.0
        %1657 = vmatpush1.msra.mxu0 0.0
        %1658 = vmatprep.subr.mxu0 0.0
        %1659 = vmatpush1.msra.mxu0 0.0
        %1660 = vmatprep.subr.mxu0 0.0
        %1661 = vmatpush1.msra.mxu0 0.0
        %1662 = vmatprep.subr.mxu0 0.0
        %1663 = vmatpush1.msra.mxu0 0.0
        %1664 = vmatprep.subr.mxu0 0.0
        %1665 = vmatpush1.msra.mxu0 0.0
        %1666 = vmatprep.subr.mxu0 0.0
        %1667 = vmatpush1.msra.mxu0 0.0
        %1668 = vmatprep.subr.mxu0 0.0
        %1669 = vmatpush1.msra.mxu0 0.0
        %1670 = vmatprep.subr.mxu0 0.0
        %1671 = vmatpush1.msra.mxu0 0.0
        %1672 = vmatprep.subr.mxu0 0.0
        %1673 = vmatpush1.msra.mxu0 0.0
        %1674 = vmatprep.subr.mxu0 0.0
        %1675 = vmatpush1.msra.mxu0 0.0
        %1676 = vmatprep.subr.mxu0 0.0
        %1677 = vmatpush1.msra.mxu0 0.0
        %1678 = vmatprep.subr.mxu0 0.0
        %1679 = vmatpush1.msra.mxu0 0.0
        %1680 = vmatprep.mubr.f32.mxu0 0.0
        %1681 = vmatmul.mubr.f32.gmra.mrb[0].mxu0 %v1589
        %v1682 = vpop.f32.mrb[0].mxu0
        %v1683 = vadd.f32 %v1585, %v1682
        %v1684 = vpop.f32.mrb[0].mxu0
        %v1685 = vadd.f32 %v1585, %v1684
        %1686 = vdwg.mxu0
        %1687 = vmatprep.subr.mxu0 %v1545
        %1688 = vmatpush1.msra.mxu0 %v1544
        %1689 = vmatprep.subr.mxu0 %v1553
        %1690 = vmatpush1.msra.mxu0 %v1552
        %1691 = vmatprep.subr.mxu0 %v1561
        %1692 = vmatpush1.msra.mxu0 %v1560
        %1693 = vmatprep.subr.mxu0 %v1569
        %1694 = vmatpush1.msra.mxu0 %v1568
        %1695 = vmatprep.subr.mxu0 %v1602
        %1696 = vmatpush1.msra.mxu0 %v1599
        %1697 = vmatprep.subr.mxu0 0.0
        %1698 = vmatpush1.msra.mxu0 0.0
        %1699 = vmatprep.subr.mxu0 0.0
        %1700 = vmatpush1.msra.mxu0 0.0
        %1701 = vmatprep.subr.mxu0 0.0
        %1702 = vmatpush1.msra.mxu0 0.0
        %1703 = vmatprep.subr.mxu0 0.0
        %1704 = vmatpush1.msra.mxu0 0.0
        %1705 = vmatprep.subr.mxu0 0.0
        %1706 = vmatpush1.msra.mxu0 0.0
        %1707 = vmatprep.subr.mxu0 0.0
        %1708 = vmatpush1.msra.mxu0 0.0
        %1709 = vmatprep.subr.mxu0 0.0
        %1710 = vmatpush1.msra.mxu0 0.0
        %1711 = vmatprep.subr.mxu0 0.0
        %1712 = vmatpush1.msra.mxu0 0.0
        %1713 = vmatprep.subr.mxu0 0.0
        %1714 = vmatpush1.msra.mxu0 0.0
        %1715 = vmatprep.subr.mxu0 0.0
        %1716 = vmatpush1.msra.mxu0 0.0
        %1717 = vmatprep.subr.mxu0 0.0
        %1718 = vmatpush1.msra.mxu0 0.0
        %1719 = vmatprep.subr.mxu0 0.0
        %1720 = vmatpush1.msra.mxu0 0.0
        %1721 = vmatprep.subr.mxu0 0.0
        %1722 = vmatpush1.msra.mxu0 0.0
        %1723 = vmatprep.subr.mxu0 0.0
        %1724 = vmatpush1.msra.mxu0 0.0
        %1725 = vmatprep.subr.mxu0 0.0
        %1726 = vmatpush1.msra.mxu0 0.0
        %1727 = vmatprep.subr.mxu0 0.0
        %1728 = vmatpush1.msra.mxu0 0.0
        %1729 = vmatprep.subr.mxu0 0.0
        %1730 = vmatpush1.msra.mxu0 0.0
        %1731 = vmatprep.subr.mxu0 0.0
        %1732 = vmatpush1.msra.mxu0 0.0
        %1733 = vmatprep.subr.mxu0 0.0
        %1734 = vmatpush1.msra.mxu0 0.0
        %1735 = vmatprep.subr.mxu0 0.0
        %1736 = vmatpush1.msra.mxu0 0.0
        %1737 = vmatprep.subr.mxu0 0.0
        %1738 = vmatpush1.msra.mxu0 0.0
        %1739 = vmatprep.subr.mxu0 0.0
        %1740 = vmatpush1.msra.mxu0 0.0
        %1741 = vmatprep.subr.mxu0 0.0
        %1742 = vmatpush1.msra.mxu0 0.0
        %1743 = vmatprep.subr.mxu0 0.0
        %1744 = vmatpush1.msra.mxu0 0.0
        %1745 = vmatprep.subr.mxu0 0.0
        %1746 = vmatpush1.msra.mxu0 0.0
        %1747 = vmatprep.subr.mxu0 0.0
        %1748 = vmatpush1.msra.mxu0 0.0
        %1749 = vmatprep.subr.mxu0 0.0
        %1750 = vmatpush1.msra.mxu0 0.0
        %1751 = vmatprep.mubr.f32.mxu0 0.0
        %1752 = vmatmul.mubr.f32.gmra.mrb[0].mxu0 %v1589
        %v1753 = vpop.f32.mrb[0].mxu0
        %v1754 = vadd.f32 %v1585, %v1753
        %v1755 = vpop.f32.mrb[0].mxu0
        %v1756 = vadd.f32 %v1585, %v1755
        %1757 = vdwg.mxu0
        %1758 = vmatprep.subr.mxu0 %v1547
        %1759 = vmatpush1.msra.mxu0 %v1546
        %1760 = vmatprep.subr.mxu0 %v1555
        %1761 = vmatpush1.msra.mxu0 %v1554
        %1762 = vmatprep.subr.mxu0 %v1563
        %1763 = vmatpush1.msra.mxu0 %v1562
        %1764 = vmatprep.subr.mxu0 %v1571
        %1765 = vmatpush1.msra.mxu0 %v1570
        %1766 = vmatprep.subr.mxu0 %v1608
        %1767 = vmatpush1.msra.mxu0 %v1605
        %1768 = vmatprep.subr.mxu0 0.0
        %1769 = vmatpush1.msra.mxu0 0.0
        %1770 = vmatprep.subr.mxu0 0.0
        %1771 = vmatpush1.msra.mxu0 0.0
        %1772 = vmatprep.subr.mxu0 0.0
        %1773 = vmatpush1.msra.mxu0 0.0
        %1774 = vmatprep.subr.mxu0 0.0
        %1775 = vmatpush1.msra.mxu0 0.0
        %1776 = vmatprep.subr.mxu0 0.0
        %1777 = vmatpush1.msra.mxu0 0.0
        %1778 = vmatprep.subr.mxu0 0.0
        %1779 = vmatpush1.msra.mxu0 0.0
        %1780 = vmatprep.subr.mxu0 0.0
        %1781 = vmatpush1.msra.mxu0 0.0
        %1782 = vmatprep.subr.mxu0 0.0
        %1783 = vmatpush1.msra.mxu0 0.0
        %1784 = vmatprep.subr.mxu0 0.0
        %1785 = vmatpush1.msra.mxu0 0.0
        %1786 = vmatprep.subr.mxu0 0.0
        %1787 = vmatpush1.msra.mxu0 0.0
        %1788 = vmatprep.subr.mxu0 0.0
        %1789 = vmatpush1.msra.mxu0 0.0
        %1790 = vmatprep.subr.mxu0 0.0
        %1791 = vmatpush1.msra.mxu0 0.0
        %1792 = vmatprep.subr.mxu0 0.0
        %1793 = vmatpush1.msra.mxu0 0.0
        %1794 = vmatprep.subr.mxu0 0.0
        %1795 = vmatpush1.msra.mxu0 0.0
        %1796 = vmatprep.subr.mxu0 0.0
        %1797 = vmatpush1.msra.mxu0 0.0
        %1798 = vmatprep.subr.mxu0 0.0
        %1799 = vmatpush1.msra.mxu0 0.0
        %1800 = vmatprep.subr.mxu0 0.0
        %1801 = vmatpush1.msra.mxu0 0.0
        %1802 = vmatprep.subr.mxu0 0.0
        %1803 = vmatpush1.msra.mxu0 0.0
        %1804 = vmatprep.subr.mxu0 0.0
        %1805 = vmatpush1.msra.mxu0 0.0
        %1806 = vmatprep.subr.mxu0 0.0
        %1807 = vmatpush1.msra.mxu0 0.0
        %1808 = vmatprep.subr.mxu0 0.0
        %1809 = vmatpush1.msra.mxu0 0.0
        %1810 = vmatprep.subr.mxu0 0.0
        %1811 = vmatpush1.msra.mxu0 0.0
        %1812 = vmatprep.subr.mxu0 0.0
        %1813 = vmatpush1.msra.mxu0 0.0
        %1814 = vmatprep.subr.mxu0 0.0
        %1815 = vmatpush1.msra.mxu0 0.0
        %1816 = vmatprep.subr.mxu0 0.0
        %1817 = vmatpush1.msra.mxu0 0.0
        %1818 = vmatprep.subr.mxu0 0.0
        %1819 = vmatpush1.msra.mxu0 0.0
        %1820 = vmatprep.subr.mxu0 0.0
        %1821 = vmatpush1.msra.mxu0 0.0
        %1822 = vmatprep.mubr.f32.mxu0 0.0
        %1823 = vmatmul.mubr.f32.gmra.mrb[0].mxu0 %v1589
        %v1824 = vpop.f32.mrb[0].mxu0
        %v1825 = vadd.f32 %v1585, %v1824
        %v1826 = vpop.f32.mrb[0].mxu0
        %v1827 = vadd.f32 %v1585, %v1826
        %1828 = vdwg.mxu0
        %1829 = vmatprep.subr.mxu0 %v1549
        %1830 = vmatpush1.msra.mxu0 %v1548
        %1831 = vmatprep.subr.mxu0 %v1557
        %1832 = vmatpush1.msra.mxu0 %v1556
        %1833 = vmatprep.subr.mxu0 %v1565
        %1834 = vmatpush1.msra.mxu0 %v1564
        %1835 = vmatprep.subr.mxu0 %v1573
        %1836 = vmatpush1.msra.mxu0 %v1572
        %1837 = vmatprep.subr.mxu0 %v1614
        %1838 = vmatpush1.msra.mxu0 %v1611
        %1839 = vmatprep.subr.mxu0 0.0
        %1840 = vmatpush1.msra.mxu0 0.0
        %1841 = vmatprep.subr.mxu0 0.0
        %1842 = vmatpush1.msra.mxu0 0.0
        %1843 = vmatprep.subr.mxu0 0.0
        %1844 = vmatpush1.msra.mxu0 0.0
        %1845 = vmatprep.subr.mxu0 0.0
        %1846 = vmatpush1.msra.mxu0 0.0
        %1847 = vmatprep.subr.mxu0 0.0
        %1848 = vmatpush1.msra.mxu0 0.0
        %1849 = vmatprep.subr.mxu0 0.0
        %1850 = vmatpush1.msra.mxu0 0.0
        %1851 = vmatprep.subr.mxu0 0.0
        %1852 = vmatpush1.msra.mxu0 0.0
        %1853 = vmatprep.subr.mxu0 0.0
        %1854 = vmatpush1.msra.mxu0 0.0
        %1855 = vmatprep.subr.mxu0 0.0
        %1856 = vmatpush1.msra.mxu0 0.0
        %1857 = vmatprep.subr.mxu0 0.0
        %1858 = vmatpush1.msra.mxu0 0.0
        %1859 = vmatprep.subr.mxu0 0.0
        %1860 = vmatpush1.msra.mxu0 0.0
        %1861 = vmatprep.subr.mxu0 0.0
        %1862 = vmatpush1.msra.mxu0 0.0
        %1863 = vmatprep.subr.mxu0 0.0
        %1864 = vmatpush1.msra.mxu0 0.0
        %1865 = vmatprep.subr.mxu0 0.0
        %1866 = vmatpush1.msra.mxu0 0.0
        %1867 = vmatprep.subr.mxu0 0.0
        %1868 = vmatpush1.msra.mxu0 0.0
        %1869 = vmatprep.subr.mxu0 0.0
        %1870 = vmatpush1.msra.mxu0 0.0
        %1871 = vmatprep.subr.mxu0 0.0
        %1872 = vmatpush1.msra.mxu0 0.0
        %1873 = vmatprep.subr.mxu0 0.0
        %1874 = vmatpush1.msra.mxu0 0.0
        %1875 = vmatprep.subr.mxu0 0.0
        %1876 = vmatpush1.msra.mxu0 0.0
        %1877 = vmatprep.subr.mxu0 0.0
        %1878 = vmatpush1.msra.mxu0 0.0
        %1879 = vmatprep.subr.mxu0 0.0
        %1880 = vmatpush1.msra.mxu0 0.0
        %1881 = vmatprep.subr.mxu0 0.0
        %1882 = vmatpush1.msra.mxu0 0.0
        %1883 = vmatprep.subr.mxu0 0.0
        %1884 = vmatpush1.msra.mxu0 0.0
        %1885 = vmatprep.subr.mxu0 0.0
        %1886 = vmatpush1.msra.mxu0 0.0
        %1887 = vmatprep.subr.mxu0 0.0
        %1888 = vmatpush1.msra.mxu0 0.0
        %1889 = vmatprep.subr.mxu0 0.0
        %1890 = vmatpush1.msra.mxu0 0.0
        %1891 = vmatprep.subr.mxu0 0.0
        %1892 = vmatpush1.msra.mxu0 0.0
        %1893 = vmatprep.mubr.f32.mxu0 0.0
        %1894 = vmatmul.mubr.f32.gmra.mrb[0].mxu0 %v1589
        %v1895 = vpop.f32.mrb[0].mxu0
        %v1896 = vadd.f32 %v1585, %v1895
        %v1897 = vpop.f32.mrb[0].mxu0
        %v1898 = vadd.f32 %v1585, %v1897
        %1899 = vdwg.mxu0
        %v1900 = vmax.f32 %v1683, 0.0
        %v1901 = vmax.f32 %v1685, 0.0
        %v1902 = vmax.f32 %v1754, 0.0
        %v1903 = vmax.f32 %v1756, 0.0
        %v1904 = vmax.f32 %v1825, 0.0
        %v1905 = vmax.f32 %v1827, 0.0
        %v1906 = vmax.f32 %v1896, 0.0
        %v1907 = vmax.f32 %v1898, 0.0
        %v1908 = vld [vmem:[%s4] sm:$0xff]
        %v1909 = vld [vmem:[%s5] sm:$0xff]
        %1910 = vrot.lane.b32.xlu0 %v1900, 33
        %v1911 = vpop.permute.xlu0 %1910
        %1912 = vrot.lane.b32.xlu0 %v1901, 33
        %v1913 = vpop.permute.xlu0 %1912
        %1914 = vrot.lane.b32.xlu0 %v1902, 33
        %v1915 = vpop.permute.xlu0 %1914
        %1916 = vrot.lane.b32.xlu0 %v1903, 33
        %v1917 = vpop.permute.xlu0 %1916
        %1918 = vrot.lane.b32.xlu0 %v1904, 33
        %v1919 = vpop.permute.xlu0 %1918
        %1920 = vrot.lane.b32.xlu0 %v1905, 33
        %v1921 = vpop.permute.xlu0 %1920
        %1922 = vrot.lane.b32.xlu0 %v1906, 33
        %v1923 = vpop.permute.xlu0 %1922
        %1924 = vrot.lane.b32.xlu0 %v1907, 33
        %v1925 = vpop.permute.xlu0 %1924
        %v1926 = vsel %vm998, %v1923, %v1925
        %v1927 = vsel %vm998, %v1921, %v1923
        %v1928 = vsel %vm998, %v1919, %v1921
        %v1929 = vsel %vm998, %v1917, %v1919
        %v1930 = vsel %vm998, %v1915, %v1917
        %v1931 = vsel %vm998, %v1913, %v1915
        %v1932 = vsel %vm998, %v1911, %v1913
        %v1933 = vsel %vm998, %v1925, %v1911
        %v1934 = vsel %vm1015, %v1933, 0.0
        %v1935 = vsel %vm1016, %v1932, 0.0
        %v1936 = vsel %vm1017, %v1931, 0.0
        %v1937 = vsel %vm1018, %v1930, 0.0
        %v1938 = vsel %vm1019, %v1929, 0.0
        %v1939 = vsel %vm1020, %v1928, 0.0
        %v1940 = vsel %vm1021, %v1927, 0.0
        %v1941 = vsel %vm1022, %v1926, 0.0
        %1942 = vst [vmem:[#allocation3] sm:$0xff] %v1934
        %1943 = vst [vmem:[#allocation3 + $0x8] sm:$0xff] %v1935
        %1944 = vst [vmem:[#allocation3 + $0x10] sm:$0xff] %v1936
        %1945 = vst [vmem:[#allocation3 + $0x18] sm:$0xff] %v1937
        %1946 = vst [vmem:[#allocation3 + $0x20] sm:$0xff] %v1938
        %1947 = vst [vmem:[#allocation3 + $0x28] sm:$0xff] %v1939
        %1948 = vst [vmem:[#allocation3 + $0x30] sm:$0xff] %v1940
        %1949 = vst [vmem:[#allocation3 + $0x38] sm:$0xff] %v1941
        %1950 = vrot.lane.b32.xlu0 %v1900, 32
        %v1951 = vpop.permute.xlu0 %1950
        %1952 = vrot.lane.b32.xlu0 %v1901, 32
        %v1953 = vpop.permute.xlu0 %1952
        %1954 = vrot.lane.b32.xlu0 %v1902, 32
        %v1955 = vpop.permute.xlu0 %1954
        %1956 = vrot.lane.b32.xlu0 %v1903, 32
        %v1957 = vpop.permute.xlu0 %1956
        %1958 = vrot.lane.b32.xlu0 %v1904, 32
        %v1959 = vpop.permute.xlu0 %1958
        %1960 = vrot.lane.b32.xlu0 %v1905, 32
        %v1961 = vpop.permute.xlu0 %1960
        %1962 = vrot.lane.b32.xlu0 %v1906, 32
        %v1963 = vpop.permute.xlu0 %1962
        %1964 = vrot.lane.b32.xlu0 %v1907, 32
        %v1965 = vpop.permute.xlu0 %1964
        %v1966 = vsel %vm1055, %v1963, %v1965
        %v1967 = vsel %vm1055, %v1961, %v1963
        %v1968 = vsel %vm1055, %v1959, %v1961
        %v1969 = vsel %vm1055, %v1957, %v1959
        %v1970 = vsel %vm1055, %v1955, %v1957
        %v1971 = vsel %vm1055, %v1953, %v1955
        %v1972 = vsel %vm1055, %v1951, %v1953
        %v1973 = vsel %vm1055, %v1965, %v1951
        %v1974 = vsel %vm1072, %v1973, 0.0
        %v1975 = vsel %vm1073, %v1972, 0.0
        %v1976 = vsel %vm1074, %v1971, 0.0
        %v1977 = vsel %vm1075, %v1970, 0.0
        %v1978 = vsel %vm1076, %v1969, 0.0
        %v1979 = vsel %vm1077, %v1968, 0.0
        %v1980 = vsel %vm1078, %v1967, 0.0
        %v1981 = vsel %vm1079, %v1966, 0.0
        %1982 = vst [vmem:[#allocation3 + $0x40] sm:$0xff] %v1974
        %1983 = vst [vmem:[#allocation3 + $0x48] sm:$0xff] %v1975
        %1984 = vst [vmem:[#allocation3 + $0x50] sm:$0xff] %v1976
        %1985 = vst [vmem:[#allocation3 + $0x58] sm:$0xff] %v1977
        %1986 = vst [vmem:[#allocation3 + $0x60] sm:$0xff] %v1978
        %1987 = vst [vmem:[#allocation3 + $0x68] sm:$0xff] %v1979
        %1988 = vst [vmem:[#allocation3 + $0x70] sm:$0xff] %v1980
        %1989 = vst [vmem:[#allocation3 + $0x78] sm:$0xff] %v1981
        %1990 = vrot.lane.b32.xlu0 %v1900, 31
        %v1991 = vpop.permute.xlu0 %1990
        %1992 = vrot.lane.b32.xlu0 %v1901, 31
        %v1993 = vpop.permute.xlu0 %1992
        %1994 = vrot.lane.b32.xlu0 %v1902, 31
        %v1995 = vpop.permute.xlu0 %1994
        %1996 = vrot.lane.b32.xlu0 %v1903, 31
        %v1997 = vpop.permute.xlu0 %1996
        %1998 = vrot.lane.b32.xlu0 %v1904, 31
        %v1999 = vpop.permute.xlu0 %1998
        %2000 = vrot.lane.b32.xlu0 %v1905, 31
        %v2001 = vpop.permute.xlu0 %2000
        %2002 = vrot.lane.b32.xlu0 %v1906, 31
        %v2003 = vpop.permute.xlu0 %2002
        %2004 = vrot.lane.b32.xlu0 %v1907, 31
        %v2005 = vpop.permute.xlu0 %2004
        %v2006 = vsel %vm1136, %v2003, %v2005
        %v2007 = vsel %vm1136, %v2001, %v2003
        %v2008 = vsel %vm1136, %v1999, %v2001
        %v2009 = vsel %vm1136, %v1997, %v1999
        %v2010 = vsel %vm1136, %v1995, %v1997
        %v2011 = vsel %vm1136, %v1993, %v1995
        %v2012 = vsel %vm1136, %v1991, %v1993
        %v2013 = vsel %vm1136, %v2005, %v1991
        %v2014 = vsel %vm1153, %v2013, 0.0
        %v2015 = vsel %vm1154, %v2012, 0.0
        %v2016 = vsel %vm1155, %v2011, 0.0
        %v2017 = vsel %vm1156, %v2010, 0.0
        %v2018 = vsel %vm1157, %v2009, 0.0
        %v2019 = vsel %vm1158, %v2008, 0.0
        %v2020 = vsel %vm1159, %v2007, 0.0
        %v2021 = vsel %vm1160, %v2006, 0.0
        %2022 = vst [vmem:[#allocation3 + $0x80] sm:$0xff] %v2014
        %2023 = vst [vmem:[#allocation3 + $0x88] sm:$0xff] %v2015
        %2024 = vst [vmem:[#allocation3 + $0x90] sm:$0xff] %v2016
        %2025 = vst [vmem:[#allocation3 + $0x98] sm:$0xff] %v2017
        %2026 = vst [vmem:[#allocation3 + $0xa0] sm:$0xff] %v2018
        %2027 = vst [vmem:[#allocation3 + $0xa8] sm:$0xff] %v2019
        %2028 = vst [vmem:[#allocation3 + $0xb0] sm:$0xff] %v2020
        %2029 = vst [vmem:[#allocation3 + $0xb8] sm:$0xff] %v2021
        %2030 = vrot.lane.b32.xlu0 %v1900, 1
        %v2031 = vpop.permute.xlu0 %2030
        %2032 = vrot.lane.b32.xlu0 %v1901, 1
        %v2033 = vpop.permute.xlu0 %2032
        %2034 = vrot.lane.b32.xlu0 %v1902, 1
        %v2035 = vpop.permute.xlu0 %2034
        %2036 = vrot.lane.b32.xlu0 %v1903, 1
        %v2037 = vpop.permute.xlu0 %2036
        %2038 = vrot.lane.b32.xlu0 %v1904, 1
        %v2039 = vpop.permute.xlu0 %2038
        %2040 = vrot.lane.b32.xlu0 %v1905, 1
        %v2041 = vpop.permute.xlu0 %2040
        %2042 = vrot.lane.b32.xlu0 %v1906, 1
        %v2043 = vpop.permute.xlu0 %2042
        %2044 = vrot.lane.b32.xlu0 %v1907, 1
        %v2045 = vpop.permute.xlu0 %2044
        %v2046 = vsel %vm1193, %v2043, %v2045
        %v2047 = vsel %vm1193, %v2041, %v2043
        %v2048 = vsel %vm1193, %v2039, %v2041
        %v2049 = vsel %vm1193, %v2037, %v2039
        %v2050 = vsel %vm1193, %v2035, %v2037
        %v2051 = vsel %vm1193, %v2033, %v2035
        %v2052 = vsel %vm1193, %v2031, %v2033
        %v2053 = vsel %vm1193, %v2045, %v2031
        %v2054 = vsel %vm1210, %v2053, 0.0
        %v2055 = vsel %vm1211, %v2052, 0.0
        %v2056 = vsel %vm1212, %v2051, 0.0
        %v2057 = vsel %vm1213, %v2050, 0.0
        %v2058 = vsel %vm1214, %v2049, 0.0
        %v2059 = vsel %vm1215, %v2048, 0.0
        %v2060 = vsel %vm1216, %v2047, 0.0
        %v2061 = vsel %vm1217, %v2046, 0.0
        %2062 = vst [vmem:[#allocation3 + $0xc0] sm:$0xff] %v2054
        %2063 = vst [vmem:[#allocation3 + $0xc8] sm:$0xff] %v2055
        %2064 = vst [vmem:[#allocation3 + $0xd0] sm:$0xff] %v2056
        %2065 = vst [vmem:[#allocation3 + $0xd8] sm:$0xff] %v2057
        %2066 = vst [vmem:[#allocation3 + $0xe0] sm:$0xff] %v2058
        %2067 = vst [vmem:[#allocation3 + $0xe8] sm:$0xff] %v2059
        %2068 = vst [vmem:[#allocation3 + $0xf0] sm:$0xff] %v2060
        %2069 = vst [vmem:[#allocation3 + $0xf8] sm:$0xff] %v2061
        %2070 = vst [vmem:[#allocation3 + $0x100] sm:$0xff] %v1900
        %2071 = vst [vmem:[#allocation3 + $0x108] sm:$0xff] %v1901
        %2072 = vst [vmem:[#allocation3 + $0x110] sm:$0xff] %v1902
        %2073 = vst [vmem:[#allocation3 + $0x118] sm:$0xff] %v1903
        %2074 = vst [vmem:[#allocation3 + $0x120] sm:$0xff] %v1904
        %2075 = vst [vmem:[#allocation3 + $0x128] sm:$0xff] %v1905
        %2076 = vst [vmem:[#allocation3 + $0x130] sm:$0xff] %v1906
        %2077 = vst [vmem:[#allocation3 + $0x138] sm:$0xff] %v1907
        %2078 = vrot.lane.b32.xlu0 %v1900, 127
        %v2079 = vpop.permute.xlu0 %2078
        %2080 = vrot.lane.b32.xlu0 %v1901, 127
        %v2081 = vpop.permute.xlu0 %2080
        %2082 = vrot.lane.b32.xlu0 %v1902, 127
        %v2083 = vpop.permute.xlu0 %2082
        %2084 = vrot.lane.b32.xlu0 %v1903, 127
        %v2085 = vpop.permute.xlu0 %2084
        %2086 = vrot.lane.b32.xlu0 %v1904, 127
        %v2087 = vpop.permute.xlu0 %2086
        %2088 = vrot.lane.b32.xlu0 %v1905, 127
        %v2089 = vpop.permute.xlu0 %2088
        %2090 = vrot.lane.b32.xlu0 %v1906, 127
        %v2091 = vpop.permute.xlu0 %2090
        %2092 = vrot.lane.b32.xlu0 %v1907, 127
        %v2093 = vpop.permute.xlu0 %2092
        %v2094 = vsel %vm1282, %v2091, %v2093
        %v2095 = vsel %vm1282, %v2089, %v2091
        %v2096 = vsel %vm1282, %v2087, %v2089
        %v2097 = vsel %vm1282, %v2085, %v2087
        %v2098 = vsel %vm1282, %v2083, %v2085
        %v2099 = vsel %vm1282, %v2081, %v2083
        %v2100 = vsel %vm1282, %v2079, %v2081
        %v2101 = vsel %vm1282, %v2093, %v2079
        %v2102 = vsel %vm1299, %v2100, 0.0
        %v2103 = vsel %vm1300, %v2099, 0.0
        %v2104 = vsel %vm1301, %v2098, 0.0
        %v2105 = vsel %vm1302, %v2097, 0.0
        %v2106 = vsel %vm1303, %v2096, 0.0
        %v2107 = vsel %vm1304, %v2095, 0.0
        %v2108 = vsel %vm1305, %v2094, 0.0
        %v2109 = vsel %vm1306, %v2101, 0.0
        %2110 = vst [vmem:[#allocation3 + $0x140] sm:$0xff] %v2102
        %2111 = vst [vmem:[#allocation3 + $0x148] sm:$0xff] %v2103
        %2112 = vst [vmem:[#allocation3 + $0x150] sm:$0xff] %v2104
        %2113 = vst [vmem:[#allocation3 + $0x158] sm:$0xff] %v2105
        %2114 = vst [vmem:[#allocation3 + $0x160] sm:$0xff] %v2106
        %2115 = vst [vmem:[#allocation3 + $0x168] sm:$0xff] %v2107
        %2116 = vst [vmem:[#allocation3 + $0x170] sm:$0xff] %v2108
        %2117 = vst [vmem:[#allocation3 + $0x178] sm:$0xff] %v2109
        %2118 = vrot.lane.b32.xlu0 %v1900, 97
        %v2119 = vpop.permute.xlu0 %2118
        %2120 = vrot.lane.b32.xlu0 %v1901, 97
        %v2121 = vpop.permute.xlu0 %2120
        %2122 = vrot.lane.b32.xlu0 %v1902, 97
        %v2123 = vpop.permute.xlu0 %2122
        %2124 = vrot.lane.b32.xlu0 %v1903, 97
        %v2125 = vpop.permute.xlu0 %2124
        %2126 = vrot.lane.b32.xlu0 %v1904, 97
        %v2127 = vpop.permute.xlu0 %2126
        %2128 = vrot.lane.b32.xlu0 %v1905, 97
        %v2129 = vpop.permute.xlu0 %2128
        %2130 = vrot.lane.b32.xlu0 %v1906, 97
        %v2131 = vpop.permute.xlu0 %2130
        %2132 = vrot.lane.b32.xlu0 %v1907, 97
        %v2133 = vpop.permute.xlu0 %2132
        %v2134 = vsel %vm1363, %v2131, %v2133
        %v2135 = vsel %vm1363, %v2129, %v2131
        %v2136 = vsel %vm1363, %v2127, %v2129
        %v2137 = vsel %vm1363, %v2125, %v2127
        %v2138 = vsel %vm1363, %v2123, %v2125
        %v2139 = vsel %vm1363, %v2121, %v2123
        %v2140 = vsel %vm1363, %v2119, %v2121
        %v2141 = vsel %vm1363, %v2133, %v2119
        %v2142 = vsel %vm1380, %v2140, 0.0
        %v2143 = vsel %vm1381, %v2139, 0.0
        %v2144 = vsel %vm1382, %v2138, 0.0
        %v2145 = vsel %vm1383, %v2137, 0.0
        %v2146 = vsel %vm1384, %v2136, 0.0
        %v2147 = vsel %vm1385, %v2135, 0.0
        %v2148 = vsel %vm1386, %v2134, 0.0
        %v2149 = vsel %vm1387, %v2141, 0.0
        %2150 = vst [vmem:[#allocation3 + $0x180] sm:$0xff] %v2142
        %2151 = vst [vmem:[#allocation3 + $0x188] sm:$0xff] %v2143
        %2152 = vst [vmem:[#allocation3 + $0x190] sm:$0xff] %v2144
        %2153 = vst [vmem:[#allocation3 + $0x198] sm:$0xff] %v2145
        %2154 = vst [vmem:[#allocation3 + $0x1a0] sm:$0xff] %v2146
        %2155 = vst [vmem:[#allocation3 + $0x1a8] sm:$0xff] %v2147
        %2156 = vst [vmem:[#allocation3 + $0x1b0] sm:$0xff] %v2148
        %2157 = vst [vmem:[#allocation3 + $0x1b8] sm:$0xff] %v2149
        %2158 = vrot.lane.b32.xlu0 %v1900, 96
        %v2159 = vpop.permute.xlu0 %2158
        %2160 = vrot.lane.b32.xlu0 %v1901, 96
        %v2161 = vpop.permute.xlu0 %2160
        %2162 = vrot.lane.b32.xlu0 %v1902, 96
        %v2163 = vpop.permute.xlu0 %2162
        %2164 = vrot.lane.b32.xlu0 %v1903, 96
        %v2165 = vpop.permute.xlu0 %2164
        %2166 = vrot.lane.b32.xlu0 %v1904, 96
        %v2167 = vpop.permute.xlu0 %2166
        %2168 = vrot.lane.b32.xlu0 %v1905, 96
        %v2169 = vpop.permute.xlu0 %2168
        %2170 = vrot.lane.b32.xlu0 %v1906, 96
        %v2171 = vpop.permute.xlu0 %2170
        %2172 = vrot.lane.b32.xlu0 %v1907, 96
        %v2173 = vpop.permute.xlu0 %2172
        %v2174 = vsel %vm1420, %v2171, %v2173
        %v2175 = vsel %vm1420, %v2169, %v2171
        %v2176 = vsel %vm1420, %v2167, %v2169
        %v2177 = vsel %vm1420, %v2165, %v2167
        %v2178 = vsel %vm1420, %v2163, %v2165
        %v2179 = vsel %vm1420, %v2161, %v2163
        %v2180 = vsel %vm1420, %v2159, %v2161
        %v2181 = vsel %vm1420, %v2173, %v2159
        %v2182 = vsel %vm1437, %v2180, 0.0
        %v2183 = vsel %vm1438, %v2179, 0.0
        %v2184 = vsel %vm1439, %v2178, 0.0
        %v2185 = vsel %vm1440, %v2177, 0.0
        %v2186 = vsel %vm1441, %v2176, 0.0
        %v2187 = vsel %vm1442, %v2175, 0.0
        %v2188 = vsel %vm1443, %v2174, 0.0
        %v2189 = vsel %vm1444, %v2181, 0.0
        %2190 = vst [vmem:[#allocation3 + $0x1c0] sm:$0xff] %v2182
        %2191 = vst [vmem:[#allocation3 + $0x1c8] sm:$0xff] %v2183
        %2192 = vst [vmem:[#allocation3 + $0x1d0] sm:$0xff] %v2184
        %2193 = vst [vmem:[#allocation3 + $0x1d8] sm:$0xff] %v2185
        %2194 = vst [vmem:[#allocation3 + $0x1e0] sm:$0xff] %v2186
        %2195 = vst [vmem:[#allocation3 + $0x1e8] sm:$0xff] %v2187
        %2196 = vst [vmem:[#allocation3 + $0x1f0] sm:$0xff] %v2188
        %2197 = vst [vmem:[#allocation3 + $0x1f8] sm:$0xff] %v2189
        %2198 = vrot.lane.b32.xlu0 %v1900, 95
        %v2199 = vpop.permute.xlu0 %2198
        %2200 = vrot.lane.b32.xlu0 %v1901, 95
        %v2201 = vpop.permute.xlu0 %2200
        %2202 = vrot.lane.b32.xlu0 %v1902, 95
        %v2203 = vpop.permute.xlu0 %2202
        %2204 = vrot.lane.b32.xlu0 %v1903, 95
        %v2205 = vpop.permute.xlu0 %2204
        %2206 = vrot.lane.b32.xlu0 %v1904, 95
        %v2207 = vpop.permute.xlu0 %2206
        %2208 = vrot.lane.b32.xlu0 %v1905, 95
        %v2209 = vpop.permute.xlu0 %2208
        %2210 = vrot.lane.b32.xlu0 %v1906, 95
        %v2211 = vpop.permute.xlu0 %2210
        %2212 = vrot.lane.b32.xlu0 %v1907, 95
        %v2213 = vpop.permute.xlu0 %2212
        %v2214 = vsel %vm1501, %v2211, %v2213
        %v2215 = vsel %vm1501, %v2209, %v2211
        %v2216 = vsel %vm1501, %v2207, %v2209
        %v2217 = vsel %vm1501, %v2205, %v2207
        %v2218 = vsel %vm1501, %v2203, %v2205
        %v2219 = vsel %vm1501, %v2201, %v2203
        %v2220 = vsel %vm1501, %v2199, %v2201
        %v2221 = vsel %vm1501, %v2213, %v2199
        %v2222 = vsel %vm1518, %v2220, 0.0
        %v2223 = vsel %vm1519, %v2219, 0.0
        %v2224 = vsel %vm1520, %v2218, 0.0
        %v2225 = vsel %vm1521, %v2217, 0.0
        %v2226 = vsel %vm1522, %v2216, 0.0
        %v2227 = vsel %vm1523, %v2215, 0.0
        %v2228 = vsel %vm1524, %v2214, 0.0
        %v2229 = vsel %vm1525, %v2221, 0.0
        %2230 = vst [vmem:[#allocation3 + $0x200] sm:$0xff] %v2222
        %2231 = vst [vmem:[#allocation3 + $0x208] sm:$0xff] %v2223
        %2232 = vst [vmem:[#allocation3 + $0x210] sm:$0xff] %v2224
        %2233 = vst [vmem:[#allocation3 + $0x218] sm:$0xff] %v2225
        %2234 = vst [vmem:[#allocation3 + $0x220] sm:$0xff] %v2226
        %2235 = vst [vmem:[#allocation3 + $0x228] sm:$0xff] %v2227
        %2236 = vst [vmem:[#allocation3 + $0x230] sm:$0xff] %v2228
        %2237 = vst [vmem:[#allocation3 + $0x238] sm:$0xff] %v2229
        %v2238 = vld [vmem:[#allocation3] sm:$0xff]
        %v2239 = vld [vmem:[#allocation3 + $0x8] sm:$0xff]
        %v2240 = vld [vmem:[#allocation3 + $0x10] sm:$0xff]
        %v2241 = vld [vmem:[#allocation3 + $0x18] sm:$0xff]
        %v2242 = vld [vmem:[#allocation3 + $0x20] sm:$0xff]
        %v2243 = vld [vmem:[#allocation3 + $0x28] sm:$0xff]
        %v2244 = vld [vmem:[#allocation3 + $0x30] sm:$0xff]
        %v2245 = vld [vmem:[#allocation3 + $0x38] sm:$0xff]
        %v2246 = vld [vmem:[#allocation3 + $0x40] sm:$0xff]
        %v2247 = vld [vmem:[#allocation3 + $0x48] sm:$0xff]
        %v2248 = vld [vmem:[#allocation3 + $0x50] sm:$0xff]
        %v2249 = vld [vmem:[#allocation3 + $0x58] sm:$0xff]
        %v2250 = vld [vmem:[#allocation3 + $0x60] sm:$0xff]
        %v2251 = vld [vmem:[#allocation3 + $0x68] sm:$0xff]
        %v2252 = vld [vmem:[#allocation3 + $0x70] sm:$0xff]
        %v2253 = vld [vmem:[#allocation3 + $0x78] sm:$0xff]
        %v2254 = vld [vmem:[#allocation3 + $0x80] sm:$0xff]
        %v2255 = vld [vmem:[#allocation3 + $0x88] sm:$0xff]
        %v2256 = vld [vmem:[#allocation3 + $0x90] sm:$0xff]
        %v2257 = vld [vmem:[#allocation3 + $0x98] sm:$0xff]
        %v2258 = vld [vmem:[#allocation3 + $0xa0] sm:$0xff]
        %v2259 = vld [vmem:[#allocation3 + $0xa8] sm:$0xff]
        %v2260 = vld [vmem:[#allocation3 + $0xb0] sm:$0xff]
        %v2261 = vld [vmem:[#allocation3 + $0xb8] sm:$0xff]
        %v2262 = vld [vmem:[#allocation3 + $0xc0] sm:$0xff]
        %v2263 = vld [vmem:[#allocation3 + $0xc8] sm:$0xff]
        %v2264 = vld [vmem:[#allocation3 + $0xd0] sm:$0xff]
        %v2265 = vld [vmem:[#allocation3 + $0xd8] sm:$0xff]
        %v2266 = vld [vmem:[#allocation3 + $0xe0] sm:$0xff]
        %v2267 = vld [vmem:[#allocation3 + $0xe8] sm:$0xff]
        %v2268 = vld [vmem:[#allocation3 + $0xf0] sm:$0xff]
        %v2269 = vld [vmem:[#allocation3 + $0xf8] sm:$0xff]
        %v2270 = vld [vmem:[#allocation3 + $0x100] sm:$0xff]
        %v2271 = vld [vmem:[#allocation3 + $0x108] sm:$0xff]
        %v2272 = vld [vmem:[#allocation3 + $0x110] sm:$0xff]
        %v2273 = vld [vmem:[#allocation3 + $0x118] sm:$0xff]
        %v2274 = vld [vmem:[#allocation3 + $0x120] sm:$0xff]
        %v2275 = vld [vmem:[#allocation3 + $0x128] sm:$0xff]
        %v2276 = vld [vmem:[#allocation3 + $0x130] sm:$0xff]
        %v2277 = vld [vmem:[#allocation3 + $0x138] sm:$0xff]
        %v2278 = vld [vmem:[#allocation3 + $0x140] sm:$0xff]
        %v2279 = vld [vmem:[#allocation3 + $0x148] sm:$0xff]
        %v2280 = vld [vmem:[#allocation3 + $0x150] sm:$0xff]
        %v2281 = vld [vmem:[#allocation3 + $0x158] sm:$0xff]
        %v2282 = vld [vmem:[#allocation3 + $0x160] sm:$0xff]
        %v2283 = vld [vmem:[#allocation3 + $0x168] sm:$0xff]
        %v2284 = vld [vmem:[#allocation3 + $0x170] sm:$0xff]
        %v2285 = vld [vmem:[#allocation3 + $0x178] sm:$0xff]
        %v2286 = vld [vmem:[#allocation3 + $0x180] sm:$0xff]
        %v2287 = vld [vmem:[#allocation3 + $0x188] sm:$0xff]
        %v2288 = vld [vmem:[#allocation3 + $0x190] sm:$0xff]
        %v2289 = vld [vmem:[#allocation3 + $0x198] sm:$0xff]
        %v2290 = vld [vmem:[#allocation3 + $0x1a0] sm:$0xff]
        %v2291 = vld [vmem:[#allocation3 + $0x1a8] sm:$0xff]
        %v2292 = vld [vmem:[#allocation3 + $0x1b0] sm:$0xff]
        %v2293 = vld [vmem:[#allocation3 + $0x1b8] sm:$0xff]
        %v2294 = vld [vmem:[#allocation3 + $0x1c0] sm:$0xff]
        %v2295 = vld [vmem:[#allocation3 + $0x1c8] sm:$0xff]
        %v2296 = vld [vmem:[#allocation3 + $0x1d0] sm:$0xff]
        %v2297 = vld [vmem:[#allocation3 + $0x1d8] sm:$0xff]
        %v2298 = vld [vmem:[#allocation3 + $0x1e0] sm:$0xff]
        %v2299 = vld [vmem:[#allocation3 + $0x1e8] sm:$0xff]
        %v2300 = vld [vmem:[#allocation3 + $0x1f0] sm:$0xff]
        %v2301 = vld [vmem:[#allocation3 + $0x1f8] sm:$0xff]
        %v2302 = vld [vmem:[#allocation3 + $0x200] sm:$0xff]
        %v2303 = vld [vmem:[#allocation3 + $0x208] sm:$0xff]
        %v2304 = vld [vmem:[#allocation3 + $0x210] sm:$0xff]
        %v2305 = vld [vmem:[#allocation3 + $0x218] sm:$0xff]
        %v2306 = vld [vmem:[#allocation3 + $0x220] sm:$0xff]
        %v2307 = vld [vmem:[#allocation3 + $0x228] sm:$0xff]
        %v2308 = vld [vmem:[#allocation3 + $0x230] sm:$0xff]
        %v2309 = vld [vmem:[#allocation3 + $0x238] sm:$0xff]
        %2311 = vset.pattern.permute.xlu0 0
        %2312 = vperm.xlu0 %2311, %v1909
        %v2313 = vpop.permute.xlu0 %2312
        %vm2315 = vcmask 588800
        %v2317 = vsel %vm2315, %v1908, 0
        %2319 = vmatprep.subr.mxu0 %v2239
        %2320 = vmatpush1.msra.mxu0 %v2238
        %2321 = vmatprep.subr.mxu0 %v2247
        %2322 = vmatpush1.msra.mxu0 %v2246
        %2323 = vmatprep.subr.mxu0 %v2255
        %2324 = vmatpush1.msra.mxu0 %v2254
        %2325 = vmatprep.subr.mxu0 %v2263
        %2326 = vmatpush1.msra.mxu0 %v2262
        %2327 = vmatprep.subr.mxu0 %v2271
        %2328 = vmatpush1.msra.mxu0 %v2270
        %2329 = vmatprep.subr.mxu0 %v2279
        %2330 = vmatpush1.msra.mxu0 %v2278
        %2331 = vmatprep.subr.mxu0 %v2287
        %2332 = vmatpush1.msra.mxu0 %v2286
        %2333 = vmatprep.subr.mxu0 %v2295
        %2334 = vmatpush1.msra.mxu0 %v2294
        %2335 = vmatprep.subr.mxu0 %v2303
        %2336 = vmatpush1.msra.mxu0 %v2302
        %2337 = vmatprep.subr.mxu0 0.0
        %2338 = vmatpush1.msra.mxu0 0.0
        %2339 = vmatprep.subr.mxu0 0.0
        %2340 = vmatpush1.msra.mxu0 0.0
        %2341 = vmatprep.subr.mxu0 0.0
        %2342 = vmatpush1.msra.mxu0 0.0
        %2343 = vmatprep.subr.mxu0 0.0
        %2344 = vmatpush1.msra.mxu0 0.0
        %2345 = vmatprep.subr.mxu0 0.0
        %2346 = vmatpush1.msra.mxu0 0.0
        %2347 = vmatprep.subr.mxu0 0.0
        %2348 = vmatpush1.msra.mxu0 0.0
        %2349 = vmatprep.subr.mxu0 0.0
        %2350 = vmatpush1.msra.mxu0 0.0
        %2351 = vmatprep.subr.mxu0 0.0
        %2352 = vmatpush1.msra.mxu0 0.0
        %2353 = vmatprep.subr.mxu0 0.0
        %2354 = vmatpush1.msra.mxu0 0.0
        %2355 = vmatprep.subr.mxu0 0.0
        %2356 = vmatpush1.msra.mxu0 0.0
        %2357 = vmatprep.subr.mxu0 0.0
        %2358 = vmatpush1.msra.mxu0 0.0
        %2359 = vmatprep.subr.mxu0 0.0
        %2360 = vmatpush1.msra.mxu0 0.0
        %2361 = vmatprep.subr.mxu0 0.0
        %2362 = vmatpush1.msra.mxu0 0.0
        %2363 = vmatprep.subr.mxu0 0.0
        %2364 = vmatpush1.msra.mxu0 0.0
        %2365 = vmatprep.subr.mxu0 0.0
        %2366 = vmatpush1.msra.mxu0 0.0
        %2367 = vmatprep.subr.mxu0 0.0
        %2368 = vmatpush1.msra.mxu0 0.0
        %2369 = vmatprep.subr.mxu0 0.0
        %2370 = vmatpush1.msra.mxu0 0.0
        %2371 = vmatprep.subr.mxu0 0.0
        %2372 = vmatpush1.msra.mxu0 0.0
        %2373 = vmatprep.subr.mxu0 0.0
        %2374 = vmatpush1.msra.mxu0 0.0
        %2375 = vmatprep.subr.mxu0 0.0
        %2376 = vmatpush1.msra.mxu0 0.0
        %2377 = vmatprep.subr.mxu0 0.0
        %2378 = vmatpush1.msra.mxu0 0.0
        %2379 = vmatprep.subr.mxu0 0.0
        %2380 = vmatpush1.msra.mxu0 0.0
        %2381 = vmatprep.subr.mxu0 0.0
        %2382 = vmatpush1.msra.mxu0 0.0
        %2383 = vmatprep.mubr.f32.mxu0 0.0
        %2384 = vmatmul.mubr.f32.gmra.mrb[0].mxu0 %v2317
        %v2385 = vpop.f32.mrb[0].mxu0
        %v2386 = vadd.f32 %v2313, %v2385
        %v2387 = vpop.f32.mrb[0].mxu0
        %v2388 = vadd.f32 %v2313, %v2387
        %2389 = vdwg.mxu0
        %2390 = vmatprep.subr.mxu0 %v2241
        %2391 = vmatpush1.msra.mxu0 %v2240
        %2392 = vmatprep.subr.mxu0 %v2249
        %2393 = vmatpush1.msra.mxu0 %v2248
        %2394 = vmatprep.subr.mxu0 %v2257
        %2395 = vmatpush1.msra.mxu0 %v2256
        %2396 = vmatprep.subr.mxu0 %v2265
        %2397 = vmatpush1.msra.mxu0 %v2264
        %2398 = vmatprep.subr.mxu0 %v2273
        %2399 = vmatpush1.msra.mxu0 %v2272
        %2400 = vmatprep.subr.mxu0 %v2281
        %2401 = vmatpush1.msra.mxu0 %v2280
        %2402 = vmatprep.subr.mxu0 %v2289
        %2403 = vmatpush1.msra.mxu0 %v2288
        %2404 = vmatprep.subr.mxu0 %v2297
        %2405 = vmatpush1.msra.mxu0 %v2296
        %2406 = vmatprep.subr.mxu0 %v2305
        %2407 = vmatpush1.msra.mxu0 %v2304
        %2408 = vmatprep.subr.mxu0 0.0
        %2409 = vmatpush1.msra.mxu0 0.0
        %2410 = vmatprep.subr.mxu0 0.0
        %2411 = vmatpush1.msra.mxu0 0.0
        %2412 = vmatprep.subr.mxu0 0.0
        %2413 = vmatpush1.msra.mxu0 0.0
        %2414 = vmatprep.subr.mxu0 0.0
        %2415 = vmatpush1.msra.mxu0 0.0
        %2416 = vmatprep.subr.mxu0 0.0
        %2417 = vmatpush1.msra.mxu0 0.0
        %2418 = vmatprep.subr.mxu0 0.0
        %2419 = vmatpush1.msra.mxu0 0.0
        %2420 = vmatprep.subr.mxu0 0.0
        %2421 = vmatpush1.msra.mxu0 0.0
        %2422 = vmatprep.subr.mxu0 0.0
        %2423 = vmatpush1.msra.mxu0 0.0
        %2424 = vmatprep.subr.mxu0 0.0
        %2425 = vmatpush1.msra.mxu0 0.0
        %2426 = vmatprep.subr.mxu0 0.0
        %2427 = vmatpush1.msra.mxu0 0.0
        %2428 = vmatprep.subr.mxu0 0.0
        %2429 = vmatpush1.msra.mxu0 0.0
        %2430 = vmatprep.subr.mxu0 0.0
        %2431 = vmatpush1.msra.mxu0 0.0
        %2432 = vmatprep.subr.mxu0 0.0
        %2433 = vmatpush1.msra.mxu0 0.0
        %2434 = vmatprep.subr.mxu0 0.0
        %2435 = vmatpush1.msra.mxu0 0.0
        %2436 = vmatprep.subr.mxu0 0.0
        %2437 = vmatpush1.msra.mxu0 0.0
        %2438 = vmatprep.subr.mxu0 0.0
        %2439 = vmatpush1.msra.mxu0 0.0
        %2440 = vmatprep.subr.mxu0 0.0
        %2441 = vmatpush1.msra.mxu0 0.0
        %2442 = vmatprep.subr.mxu0 0.0
        %2443 = vmatpush1.msra.mxu0 0.0
        %2444 = vmatprep.subr.mxu0 0.0
        %2445 = vmatpush1.msra.mxu0 0.0
        %2446 = vmatprep.subr.mxu0 0.0
        %2447 = vmatpush1.msra.mxu0 0.0
        %2448 = vmatprep.subr.mxu0 0.0
        %2449 = vmatpush1.msra.mxu0 0.0
        %2450 = vmatprep.subr.mxu0 0.0
        %2451 = vmatpush1.msra.mxu0 0.0
        %2452 = vmatprep.subr.mxu0 0.0
        %2453 = vmatpush1.msra.mxu0 0.0
        %2454 = vmatprep.mubr.f32.mxu0 0.0
        %2455 = vmatmul.mubr.f32.gmra.mrb[0].mxu0 %v2317
        %v2456 = vpop.f32.mrb[0].mxu0
        %v2457 = vadd.f32 %v2313, %v2456
        %v2458 = vpop.f32.mrb[0].mxu0
        %v2459 = vadd.f32 %v2313, %v2458
        %2460 = vdwg.mxu0
        %2461 = vmatprep.subr.mxu0 %v2243
        %2462 = vmatpush1.msra.mxu0 %v2242
        %2463 = vmatprep.subr.mxu0 %v2251
        %2464 = vmatpush1.msra.mxu0 %v2250
        %2465 = vmatprep.subr.mxu0 %v2259
        %2466 = vmatpush1.msra.mxu0 %v2258
        %2467 = vmatprep.subr.mxu0 %v2267
        %2468 = vmatpush1.msra.mxu0 %v2266
        %2469 = vmatprep.subr.mxu0 %v2275
        %2470 = vmatpush1.msra.mxu0 %v2274
        %2471 = vmatprep.subr.mxu0 %v2283
        %2472 = vmatpush1.msra.mxu0 %v2282
        %2473 = vmatprep.subr.mxu0 %v2291
        %2474 = vmatpush1.msra.mxu0 %v2290
        %2475 = vmatprep.subr.mxu0 %v2299
        %2476 = vmatpush1.msra.mxu0 %v2298
        %2477 = vmatprep.subr.mxu0 %v2307
        %2478 = vmatpush1.msra.mxu0 %v2306
        %2479 = vmatprep.subr.mxu0 0.0
        %2480 = vmatpush1.msra.mxu0 0.0
        %2481 = vmatprep.subr.mxu0 0.0
        %2482 = vmatpush1.msra.mxu0 0.0
        %2483 = vmatprep.subr.mxu0 0.0
        %2484 = vmatpush1.msra.mxu0 0.0
        %2485 = vmatprep.subr.mxu0 0.0
        %2486 = vmatpush1.msra.mxu0 0.0
        %2487 = vmatprep.subr.mxu0 0.0
        %2488 = vmatpush1.msra.mxu0 0.0
        %2489 = vmatprep.subr.mxu0 0.0
        %2490 = vmatpush1.msra.mxu0 0.0
        %2491 = vmatprep.subr.mxu0 0.0
        %2492 = vmatpush1.msra.mxu0 0.0
        %2493 = vmatprep.subr.mxu0 0.0
        %2494 = vmatpush1.msra.mxu0 0.0
        %2495 = vmatprep.subr.mxu0 0.0
        %2496 = vmatpush1.msra.mxu0 0.0
        %2497 = vmatprep.subr.mxu0 0.0
        %2498 = vmatpush1.msra.mxu0 0.0
        %2499 = vmatprep.subr.mxu0 0.0
        %2500 = vmatpush1.msra.mxu0 0.0
        %2501 = vmatprep.subr.mxu0 0.0
        %2502 = vmatpush1.msra.mxu0 0.0
        %2503 = vmatprep.subr.mxu0 0.0
        %2504 = vmatpush1.msra.mxu0 0.0
        %2505 = vmatprep.subr.mxu0 0.0
        %2506 = vmatpush1.msra.mxu0 0.0
        %2507 = vmatprep.subr.mxu0 0.0
        %2508 = vmatpush1.msra.mxu0 0.0
        %2509 = vmatprep.subr.mxu0 0.0
        %2510 = vmatpush1.msra.mxu0 0.0
        %2511 = vmatprep.subr.mxu0 0.0
        %2512 = vmatpush1.msra.mxu0 0.0
        %2513 = vmatprep.subr.mxu0 0.0
        %2514 = vmatpush1.msra.mxu0 0.0
        %2515 = vmatprep.subr.mxu0 0.0
        %2516 = vmatpush1.msra.mxu0 0.0
        %2517 = vmatprep.subr.mxu0 0.0
        %2518 = vmatpush1.msra.mxu0 0.0
        %2519 = vmatprep.subr.mxu0 0.0
        %2520 = vmatpush1.msra.mxu0 0.0
        %2521 = vmatprep.subr.mxu0 0.0
        %2522 = vmatpush1.msra.mxu0 0.0
        %2523 = vmatprep.subr.mxu0 0.0
        %2524 = vmatpush1.msra.mxu0 0.0
        %2525 = vmatprep.mubr.f32.mxu0 0.0
        %2526 = vmatmul.mubr.f32.gmra.mrb[0].mxu0 %v2317
        %v2527 = vpop.f32.mrb[0].mxu0
        %v2528 = vadd.f32 %v2313, %v2527
        %v2529 = vpop.f32.mrb[0].mxu0
        %v2530 = vadd.f32 %v2313, %v2529
        %2531 = vdwg.mxu0
        %2532 = vmatprep.subr.mxu0 %v2245
        %2533 = vmatpush1.msra.mxu0 %v2244
        %2534 = vmatprep.subr.mxu0 %v2253
        %2535 = vmatpush1.msra.mxu0 %v2252
        %2536 = vmatprep.subr.mxu0 %v2261
        %2537 = vmatpush1.msra.mxu0 %v2260
        %2538 = vmatprep.subr.mxu0 %v2269
        %2539 = vmatpush1.msra.mxu0 %v2268
        %2540 = vmatprep.subr.mxu0 %v2277
        %2541 = vmatpush1.msra.mxu0 %v2276
        %2542 = vmatprep.subr.mxu0 %v2285
        %2543 = vmatpush1.msra.mxu0 %v2284
        %2544 = vmatprep.subr.mxu0 %v2293
        %2545 = vmatpush1.msra.mxu0 %v2292
        %2546 = vmatprep.subr.mxu0 %v2301
        %2547 = vmatpush1.msra.mxu0 %v2300
        %2548 = vmatprep.subr.mxu0 %v2309
        %2549 = vmatpush1.msra.mxu0 %v2308
        %2550 = vmatprep.subr.mxu0 0.0
        %2551 = vmatpush1.msra.mxu0 0.0
        %2552 = vmatprep.subr.mxu0 0.0
        %2553 = vmatpush1.msra.mxu0 0.0
        %2554 = vmatprep.subr.mxu0 0.0
        %2555 = vmatpush1.msra.mxu0 0.0
        %2556 = vmatprep.subr.mxu0 0.0
        %2557 = vmatpush1.msra.mxu0 0.0
        %2558 = vmatprep.subr.mxu0 0.0
        %2559 = vmatpush1.msra.mxu0 0.0
        %2560 = vmatprep.subr.mxu0 0.0
        %2561 = vmatpush1.msra.mxu0 0.0
        %2562 = vmatprep.subr.mxu0 0.0
        %2563 = vmatpush1.msra.mxu0 0.0
        %2564 = vmatprep.subr.mxu0 0.0
        %2565 = vmatpush1.msra.mxu0 0.0
        %2566 = vmatprep.subr.mxu0 0.0
        %2567 = vmatpush1.msra.mxu0 0.0
        %2568 = vmatprep.subr.mxu0 0.0
        %2569 = vmatpush1.msra.mxu0 0.0
        %2570 = vmatprep.subr.mxu0 0.0
        %2571 = vmatpush1.msra.mxu0 0.0
        %2572 = vmatprep.subr.mxu0 0.0
        %2573 = vmatpush1.msra.mxu0 0.0
        %2574 = vmatprep.subr.mxu0 0.0
        %2575 = vmatpush1.msra.mxu0 0.0
        %2576 = vmatprep.subr.mxu0 0.0
        %2577 = vmatpush1.msra.mxu0 0.0
        %2578 = vmatprep.subr.mxu0 0.0
        %2579 = vmatpush1.msra.mxu0 0.0
        %2580 = vmatprep.subr.mxu0 0.0
        %2581 = vmatpush1.msra.mxu0 0.0
        %2582 = vmatprep.subr.mxu0 0.0
        %2583 = vmatpush1.msra.mxu0 0.0
        %2584 = vmatprep.subr.mxu0 0.0
        %2585 = vmatpush1.msra.mxu0 0.0
        %2586 = vmatprep.subr.mxu0 0.0
        %2587 = vmatpush1.msra.mxu0 0.0
        %2588 = vmatprep.subr.mxu0 0.0
        %2589 = vmatpush1.msra.mxu0 0.0
        %2590 = vmatprep.subr.mxu0 0.0
        %2591 = vmatpush1.msra.mxu0 0.0
        %2592 = vmatprep.subr.mxu0 0.0
        %2593 = vmatpush1.msra.mxu0 0.0
        %2594 = vmatprep.subr.mxu0 0.0
        %2595 = vmatpush1.msra.mxu0 0.0
        %2596 = vmatprep.mubr.f32.mxu0 0.0
        %2597 = vmatmul.mubr.f32.gmra.mrb[0].mxu0 %v2317
        %v2598 = vpop.f32.mrb[0].mxu0
        %v2599 = vadd.f32 %v2313, %v2598
        %v2600 = vpop.f32.mrb[0].mxu0
        %v2601 = vadd.f32 %v2313, %v2600
        %2602 = vdwg.mxu0
        %v2603 = vmax.f32 %v2386, 0.0
        %v2604 = vmax.f32 %v2388, 0.0
        %v2605 = vmax.f32 %v2457, 0.0
        %v2606 = vmax.f32 %v2459, 0.0
        %v2607 = vmax.f32 %v2528, 0.0
        %v2608 = vmax.f32 %v2530, 0.0
        %v2609 = vmax.f32 %v2599, 0.0
        %v2610 = vmax.f32 %v2601, 0.0
        %2611 = vst [vmem:[%s266] sm:$0xff] %v2603
        %2612 = vst [vmem:[%s266 + $0x8] sm:$0xff] %v2604
        %2613 = vst [vmem:[%s266 + $0x10] sm:$0xff] %v2605
        %2614 = vst [vmem:[%s266 + $0x18] sm:$0xff] %v2606
        %2615 = vst [vmem:[%s266 + $0x20] sm:$0xff] %v2607
        %2616 = vst [vmem:[%s266 + $0x28] sm:$0xff] %v2608
        %2617 = vst [vmem:[%s266 + $0x30] sm:$0xff] %v2609
        %2618 = vst [vmem:[%s266 + $0x38] sm:$0xff] %v2610
        %p2619 = scmp.lt.s32.totalorder %s18, 1
        %s2620 = scalar_select %p2619, %s18, 1
        %s2621 = smul.addr %s2620, 8
        %s2622 = smul.addr %s2621, 8
        %s2623 = scalar_lea.vmem %s6, %s2622
        // Predicated region
        $region49: #{decoder_block_forward.1} parent=43 // pred_check
          %p2624 = pneg %p167
        $region50: #{decoder_block_forward.1} parent=43 // pred_check_branch
          %2626 = sbr.rel (%p2624) target = $region52
        $region51: #{decoder_block_forward.1} parent=43 // pred_region
          _
        $region52: #{decoder_block_forward.1} parent=43 // pred_fallthru
          _
      $region44: #{decoder_block_forward.1} parent=5 // pred_fallthru
        _
      %p2627 = scmp.le.s32.totalorder 2, %s13
      // Predicated region
      $region53: #{decoder_block_forward.1} parent=5 // pred_check
        %p2628 = pneg %p2627
      $region54: #{decoder_block_forward.1} parent=5 // pred_check_branch
        %2630 = sbr.rel (%p2628) target = $region56
      $region55: #{decoder_block_forward.1} parent=5 // pred_region
        %s2631 = ssub.s32 %s13, 2
        // Predicated region
        $region57: #{decoder_block_forward.1} parent=55 // pred_check
          %p2632 = pneg %p173
        $region58: #{decoder_block_forward.1} parent=55 // pred_check_branch
          %2634 = sbr.rel (%p2632) target = $region60
        $region59: #{decoder_block_forward.1} parent=55 // pred_region
          %p2635 = scmp.lt.s32.totalorder %s19, 1
          %s2636 = scalar_select %p2635, %s19, 1
          %s2637 = smul.addr %s2636, 8
          %s2638 = smul.addr %s2637, 8
          %s2639 = scalar_lea.vmem %s6, %s2638
        $region60: #{decoder_block_forward.1} parent=55 // pred_fallthru
          _
      $region56: #{decoder_block_forward.1} parent=5 // pred_fallthru
        _
    $region6: #{decoder_block_forward.1} parent=1 // loop_footer
      %s17 = sadd.s32 1, %s13
    $region7: #{decoder_block_forward.1} parent=1 // loop_footer_branch
      %12 = sbr.rel target = $region3
    $region8: #{decoder_block_forward.1} parent=1 // loop_exit
      _
    %2640 = vsyncpa [#allocation5], 1
    %s2641 = scalar_lea.sflag [#allocation5], 1
    %2642 = vsyncpa %s2641, 1

</llo_original>
